<compile_context>
chip_gen: v6e
topology: v6e:2x2x1
jax: 0.10.0
libtpu: 0.0.40
codegen_flags: <defaults>
</compile_context>

<pallas_src>
import functools

import numpy as np
import jax
import jax.numpy as jnp
from jax.experimental import pallas as pl
from jax.experimental.pallas import tpu as pltpu

# scaled-down XLNet-base geometry
VOCAB = 100
D_MODEL = 32          # "encoder_out_size" analogue (768 in xlnet-base-cased)
N_HEAD = 4
D_HEAD = D_MODEL // N_HEAD
D_INNER = 64
N_LAYER = 2
LN_EPS = 1e-12        # XLNet layer_norm_eps


def _layer_norm(x, g, b):
    mu = jnp.mean(x, axis=-1, keepdims=True)
    var = jnp.mean((x - mu) ** 2, axis=-1, keepdims=True)
    return (x - mu) * jax.lax.rsqrt(var + LN_EPS) * g + b


def _make_kernel(BC, S, use_roll):
    """Build the fused-encoder kernel for a batch chunk of BC sequences of length S."""
    D = D_MODEL
    H = N_HEAD
    dh = D_HEAD
    R = BC * S                                   # rows handled per grid step
    scale = 1.0 / (dh ** 0.5)

    def rel_shift(bfull):
        # bd[h, i, j] = bfull[h, i, S - i + j]
        if use_roll:
            # per query-row i: np.roll(row_i, i) along the key axis, then keep cols [S:2S)
            rolled = pltpu.roll(bfull, 0, 2, stride=1, stride_axis=1)
            return rolled[:, :, S:]
        # fallback: previously-validated slice+concat shift
        return jnp.concatenate(
            [bfull[:, i:i + 1, S - i:2 * S - i] for i in range(S)], axis=1)

    def kernel(h_ref, mrow_ref, mcol_ref,
               kr_ref, wqkv_ref, wo_ref, w1_ref, w2_ref, vecs_ref,
               out_ref):
        h2 = h_ref[...]                                    # [R, D] row-flattened (b, s)
        neg = (mrow_ref[...] - 1.0) * 1e30                 # [BC, 1, S]; 0 attend, -1e30 masked

        for l in range(N_LAYER):                           # static unroll over layers
            vecs = vecs_ref[l]                             # [8, D_INNER] packed small vectors
            rwb, rrb = vecs[0:1, :D], vecs[1:2, :D]
            ln1g, ln1b = vecs[2:3, :D], vecs[3:4, :D]
            b1 = vecs[4:5, :]                              # [1, D_INNER]
            b2 = vecs[5:6, :D]
            ln2g, ln2b = vecs[6:7, :D], vecs[7:8, :D]
            kr_h = kr_ref[l]                               # [H, 2S, dh] (pos @ W_r, hoisted)

            # fused q|k|v projection over all rows of the chunk: one [R,D] @ [D,3D] matmul
            qkv = jnp.dot(h2, wqkv_ref[l], preferred_element_type=jnp.float32)  # [R, 3D]
            q, k, v = qkv[:, :D], qkv[:, D:2 * D], qkv[:, 2 * D:]

            # single head split for all four operand groups:
            #   rows = [q+rwb ; q+rrb ; k ; v]  -> [4R, D] -> [H, 4R, dh]
            blk = jnp.concatenate([q + rwb, q + rrb, k, v], axis=0)
            heads = jnp.stack([blk[:, n * dh:(n + 1) * dh] for n in range(H)], axis=0)

            def piece(p, bc):
                off = p * R + bc * S                       # static, 8-aligned sublane offsets
                return heads[:, off:off + S, :]            # [H, S, dh]

            ctx_rows = []
            for bc in range(BC):                           # static unroll over the chunk
                qw_b, qr_b = piece(0, bc), piece(1, bc)
                k_b, v_b = piece(2, bc), piece(3, bc)

                ac = jnp.einsum('hqd,hkd->hqk', qw_b, k_b,
                                preferred_element_type=jnp.float32)      # [H, S, S]
                bfull = jnp.einsum('hqd,hkd->hqk', qr_b, kr_h,
                                   preferred_element_type=jnp.float32)   # [H, S, 2S]
                score = (ac + rel_shift(bfull)) * scale + neg[bc]        # key mask broadcast

                m = jnp.max(score, axis=-1, keepdims=True)
                p_ = jnp.exp(score - m)
                attn = p_ / jnp.sum(p_, axis=-1, keepdims=True)          # exact softmax

                ctx = jnp.einsum('hqk,hkd->hqd', attn, v_b,
                                 preferred_element_type=jnp.float32)     # [H, S, dh]
                # merge heads back onto the lane axis -> [S, D]
                ctx_rows.append(jnp.concatenate([ctx[n] for n in range(H)], axis=-1))
            ctx_rows = ctx_rows[0] if BC == 1 else jnp.concatenate(ctx_rows, axis=0)  # [R, D]

            # single output projection matmul (replaces per-head einsum + head-sum)
            attn_out = jnp.dot(ctx_rows, wo_ref[l], preferred_element_type=jnp.float32)
            h1 = _layer_norm(h2 + attn_out, ln1g, ln1b)

            ff = jnp.dot(h1, w1_ref[l], preferred_element_type=jnp.float32) + b1
            # TODO(synk): HF XLNet uses exact erf GELU; tanh approximation used here.
            ff = jax.nn.gelu(ff, approximate=True)
            ff = jnp.dot(ff, w2_ref[l], preferred_element_type=jnp.float32) + b2
            h2 = _layer_norm(h1 + ff, ln2g, ln2b)

        # encoder_out * mask_input.unsqueeze(2) — fused into the same kernel
        out_ref[...] = h2 * mcol_ref[...]                  # [R, D] * [R, 1]

    return kernel


def relative_positional_encoding(S, d_model):
    # XLNet: pos_seq = arange(klen, -qlen, -1), sinusoidal embedding, length 2S
    pos_seq = jnp.arange(S, -S, -1.0, dtype=jnp.float32)                       # [2S]
    inv_freq = 1.0 / (10000.0 ** (jnp.arange(0, d_model, 2.0) / d_model))      # [D/2]
    sinusoid = pos_seq[:, None] * inv_freq[None, :]
    return jnp.concatenate([jnp.sin(sinusoid), jnp.cos(sinusoid)], axis=-1)    # [2S, D]


def init_params(key):
    std = 0.02
    key, ke = jax.random.split(key)
    params = {'word_emb': jax.random.normal(ke, (VOCAB, D_MODEL), jnp.float32) * std,
              'layers': []}
    for _ in range(N_LAYER):
        key, *ks = jax.random.split(key, 10)
        params['layers'].append(dict(
            wq=jax.random.normal(ks[0], (D_MODEL, D_MODEL), jnp.float32) * std,
            wk=jax.random.normal(ks[1], (D_MODEL, D_MODEL), jnp.float32) * std,
            wv=jax.random.normal(ks[2], (D_MODEL, D_MODEL), jnp.float32) * std,
            wr=jax.random.normal(ks[3], (D_MODEL, D_MODEL), jnp.float32) * std,
            rwb=jax.random.normal(ks[4], (N_HEAD, D_HEAD), jnp.float32) * std,
            rrb=jax.random.normal(ks[5], (N_HEAD, D_HEAD), jnp.float32) * std,
            wo=jax.random.normal(ks[6], (D_MODEL, D_MODEL), jnp.float32) * std,
            ln1g=jnp.ones((1, D_MODEL), jnp.float32),
            ln1b=jnp.zeros((1, D_MODEL), jnp.float32),
            w1=jax.random.normal(ks[7], (D_MODEL, D_INNER), jnp.float32) * std,
            b1=jnp.zeros((1, D_INNER), jnp.float32),
            w2=jax.random.normal(ks[8], (D_INNER, D_MODEL), jnp.float32) * std,
            b2=jnp.zeros((1, D_MODEL), jnp.float32),
            ln2g=jnp.ones((1, D_MODEL), jnp.float32),
            ln2b=jnp.zeros((1, D_MODEL), jnp.float32),
        ))
    return params


def pack_params(params, S):
    """Pack per-layer weights into a handful of stacked arrays (few DMA descriptors) and
    hoist the batch-independent positional projection kr = pos @ W_r.  Called ONCE."""
    pos = relative_positional_encoding(S, D_MODEL)     # [2S, D]
    wqkv, wo, w1, w2, vecs, kr = [], [], [], [], [], []
    for lp in params['layers']:
        wqkv.append(jnp.concatenate([lp['wq'], lp['wk'], lp['wv']], axis=1))   # [D, 3D]
        wo.append(lp['wo'])                                                    # [D, D]
        w1.append(lp['w1'])
        w2.append(lp['w2'])
        v = jnp.zeros((8, D_INNER), jnp.float32)
        v = v.at[0, :D_MODEL].set(lp['rwb'].reshape(-1))
        v = v.at[1, :D_MODEL].set(lp['rrb'].reshape(-1))
        v = v.at[2, :D_MODEL].set(lp['ln1g'].reshape(-1))
        v = v.at[3, :D_MODEL].set(lp['ln1b'].reshape(-1))
        v = v.at[4, :].set(lp['b1'].reshape(-1))
        v = v.at[5, :D_MODEL].set(lp['b2'].reshape(-1))
        v = v.at[6, :D_MODEL].set(lp['ln2g'].reshape(-1))
        v = v.at[7, :D_MODEL].set(lp['ln2b'].reshape(-1))
        vecs.append(v)
        kr_l = jnp.dot(pos, lp['wr'])                                          # [2S, D]
        kr.append(kr_l.reshape(2 * S, N_HEAD, D_HEAD).transpose(1, 0, 2))      # [H, 2S, dh]
    return dict(kr=jnp.stack(kr), wqkv=jnp.stack(wqkv), wo=jnp.stack(wo),
                w1=jnp.stack(w1), w2=jnp.stack(w2), vecs=jnp.stack(vecs))


def _default_num_chunks(B):
    """2-way batch chunking only where there are 2 TensorCores (v7x); otherwise a single
    grid step (grid steps are pure serial overhead on v5e/v6e)."""
    try:
        kind = jax.devices()[0].device_kind.lower()
    except Exception:
        kind = ''
    two_core = ('v7' in kind) or ('tpu7' in kind)
    return 2 if (two_core and B >= 2 and B % 2 == 0) else 1


def _strided_roll_matches_np(S):
    """Probe: does pltpu.roll with stride implement per-row np.roll(row_i, i)?  If not (or
    if it fails to lower), the kernel uses the slice-based relative shift instead."""
    shape = (N_HEAD, S, 2 * S)
    x = np.arange(np.prod(shape), dtype=np.float32).reshape(shape)

    def probe(x_ref, o_ref):
        o_ref[...] = pltpu.roll(x_ref[...], 0, 2, stride=1, stride_axis=1)

    try:
        out = pl.pallas_call(
            probe, out_shape=jax.ShapeDtypeStruct(shape, jnp.float32))(jnp.asarray(x))
        out = np.asarray(jax.block_until_ready(out))
    except Exception:
        return False
    ref = np.stack([np.roll(x[:, i, :], i, axis=-1) for i in range(S)], axis=1)
    return bool(np.array_equal(out, ref))


def encoder_xlnet_forward(word_emb, packed, text_inputs, mask_input,
                          len_seq=None, mode='', *, num_chunks=None, use_roll=False):
    """Mirrors Encoder_XLNet.forward: run the (synthetic) XLNet model in eval mode, then
    encoder_out * mask_input.unsqueeze(2).  `len_seq`/`mode` are unused, as in torch."""
    B, S = text_inputs.shape
    if num_chunks is None:
        num_chunks = _default_num_chunks(B)
    BC = B // num_chunks
    R = BC * S

    mask_f = mask_input.astype(jnp.float32)
    h = jnp.take(word_emb, text_inputs, axis=0).reshape(B * S, D_MODEL)   # glue (gather)
    mask_row = mask_f[:, None, :]                                         # [B, 1, S]
    mask_col = mask_f.reshape(B * S, 1)                                   # [B*S, 1]

    weights = [packed['kr'], packed['wqkv'], packed['wo'],
               packed['w1'], packed['w2'], packed['vecs']]

    def full(a):
        nd = a.ndim
        return pl.BlockSpec(a.shape, lambda c, _nd=nd: (0,) * _nd)

    in_specs = [pl.BlockSpec((R, D_MODEL), lambda c: (c, 0)),
                pl.BlockSpec((BC, 1, S), lambda c: (c, 0, 0)),
                pl.BlockSpec((R, 1), lambda c: (c, 0))] + [full(w) for w in weights]

    # advisory cost so XLA can overlap the embedding gather / mask prep with the kernel
    flops = N_LAYER * (2 * B * S * D_MODEL * 3 * D_MODEL
                       + 2 * B * S * D_MODEL * D_MODEL
                       + 4 * B * S * D_MODEL * D_INNER
                       + 8 * B * N_HEAD * S * S * D_HEAD)
    transcendentals = N_LAYER * (B * N_HEAD * S * S + B * S * D_INNER)
    bytes_accessed = 4 * (2 * B * S * D_MODEL + 2 * B * S
                          + sum(int(w.size) for w in weights))

    out_flat = pl.pallas_call(
        _make_kernel(BC, S, use_roll),
        out_shape=jax.ShapeDtypeStruct((B * S, D_MODEL), jnp.float32),
        grid=(num_chunks,),
        in_specs=in_specs,
        out_specs=pl.BlockSpec((R, D_MODEL), lambda c: (c, 0)),
        compiler_params=pltpu.CompilerParams(dimension_semantics=("parallel",)),
        cost_estimate=pl.CostEstimate(flops=flops, transcendentals=transcendentals,
                                      bytes_accessed=bytes_accessed),
    )(h, mask_row, mask_col, *weights)
    return out_flat.reshape(B, S, D_MODEL)


if __name__ == "__main__":
    key = jax.random.PRNGKey(0)
    params = init_params(key)

    B, S = 2, 8
    k_tok, _ = jax.random.split(jax.random.PRNGKey(0))
    text_inputs = jax.random.randint(k_tok, (B, S), 0, VOCAB, dtype=jnp.int32)
    mask_input = jnp.ones((B, S), jnp.float32)
    mask_input = mask_input.at[1, 5:].set(0.0)    # second sequence padded after position 5
    len_seq = jnp.array([S, 5], jnp.int32)        # unused by forward, as in the torch module

    packed = pack_params(params, S)               # packed ONCE; reused across forward calls
    use_roll = _strided_roll_matches_np(S)        # pick roll-based vs slice-based rel-shift

    fwd = jax.jit(functools.partial(encoder_xlnet_forward, use_roll=use_roll))
    try:
        out = jax.block_until_ready(
            fwd(params['word_emb'], packed, text_inputs, mask_input))
    except Exception:
        if not use_roll:
            raise
        # extremely defensive: fall back to the previously-validated shift path
        fwd = jax.jit(functools.partial(encoder_xlnet_forward, use_roll=False))
        out = jax.block_until_ready(
            fwd(params['word_emb'], packed, text_inputs, mask_input))

    assert out.shape == (B, S, D_MODEL)
    assert bool(jnp.all(out[1, 5:] == 0.0))       # masked positions zeroed by final multiply
    print("KERNEL_OK")
</pallas_src>

<mosaic_0001>
module attributes {stable_mosaic.version = 11 : i64} {
  func.func @probe(%arg0: memref<4x8x16xf32, #tpu.memory_space<vmem>>, %arg1: memref<4x8x16xf32, #tpu.memory_space<vmem>>) attributes {dimension_semantics = [], scalar_prefetch = 0 : i64, scratch_operands = 0 : i64, tpu.core_type = #tpu.core_type<tc>} {
    %c0 = arith.constant 0 : index
    %c0_0 = arith.constant 0 : index
    %c0_1 = arith.constant 0 : index
    %0 = vector.load %arg0[%c0, %c0_0, %c0_1] : memref<4x8x16xf32, #tpu.memory_space<vmem>>, vector<4x8x16xf32>
    %c0_i32 = arith.constant 0 : i32
    %1 = tpu.dynamic_rotate %0 by %c0_i32 dim 2 {stride = 1 : si32, stride_dimension = 1 : si32} : vector<4x8x16xf32>, i32 -> vector<4x8x16xf32>
    %c0_2 = arith.constant 0 : index
    %c0_3 = arith.constant 0 : index
    %c0_4 = arith.constant 0 : index
    %2 = vector.load %arg1[%c0_2, %c0_3, %c0_4] : memref<4x8x16xf32, #tpu.memory_space<vmem>>, vector<4x8x16xf32>
    tpu.vector_store %arg1[%c0_2, %c0_3, %c0_4], %1 {strides = array<i32>} : memref<4x8x16xf32, #tpu.memory_space<vmem>>, vector<4x8x16xf32>,
    return
  }
}

module attributes {stable_mosaic.version = 11 : i64} {
  func.func @kernel(%arg0: i32, %arg1: memref<16x32xf32, #tpu.memory_space<vmem>>, %arg2: memref<2x1x8xf32, #tpu.memory_space<vmem>>, %arg3: memref<16x1xf32, #tpu.memory_space<vmem>>, %arg4: memref<2x4x16x8xf32, #tpu.memory_space<vmem>>, %arg5: memref<2x32x96xf32, #tpu.memory_space<vmem>>, %arg6: memref<2x32x32xf32, #tpu.memory_space<vmem>>, %arg7: memref<2x32x64xf32, #tpu.memory_space<vmem>>, %arg8: memref<2x64x32xf32, #tpu.memory_space<vmem>>, %arg9: memref<2x8x64xf32, #tpu.memory_space<vmem>>, %arg10: memref<16x32xf32, #tpu.memory_space<vmem>>) attributes {dimension_semantics = [#tpu.dimension_semantics<parallel>], iteration_bounds = array<i64: 1>, scalar_prefetch = 0 : i64, scratch_operands = 0 : i64, tpu.core_type = #tpu.core_type<tc>, window_params = [{transform_indices = @transform_0, window_bounds = array<i64: 16, 32>}, {transform_indices = @transform_1, window_bounds = array<i64: 2, 1, 8>}, {transform_indices = @transform_2, window_bounds = array<i64: 16, 1>}, {pipeline_mode = #tpu.pipeline_mode<synchronous>, transform_indices = @transform_3, window_bounds = array<i64: 2, 4, 16, 8>}, {pipeline_mode = #tpu.pipeline_mode<synchronous>, transform_indices = @transform_4, window_bounds = array<i64: 2, 32, 96>}, {pipeline_mode = #tpu.pipeline_mode<synchronous>, transform_indices = @transform_5, window_bounds = array<i64: 2, 32, 32>}, {pipeline_mode = #tpu.pipeline_mode<synchronous>, transform_indices = @transform_6, window_bounds = array<i64: 2, 32, 64>}, {pipeline_mode = #tpu.pipeline_mode<synchronous>, transform_indices = @transform_7, window_bounds = array<i64: 2, 64, 32>}, {pipeline_mode = #tpu.pipeline_mode<synchronous>, transform_indices = @transform_8, window_bounds = array<i64: 2, 8, 64>}, {transform_indices = @transform_9, window_bounds = array<i64: 16, 32>}]} {
    %c0 = arith.constant 0 : index
    %c0_0 = arith.constant 0 : index
    %0 = vector.load %arg1[%c0, %c0_0] : memref<16x32xf32, #tpu.memory_space<vmem>>, vector<16x32xf32>
    %c0_1 = arith.constant 0 : index
    %c0_2 = arith.constant 0 : index
    %c0_3 = arith.constant 0 : index
    %1 = vector.load %arg2[%c0_1, %c0_2, %c0_3] : memref<2x1x8xf32, #tpu.memory_space<vmem>>, vector<2x1x8xf32>
    %cst = arith.constant 1.000000e+00 : f32
    %2 = vector.broadcast %cst : f32 to vector<2x1x8xf32>
    %3 = arith.subf %1, %2 : vector<2x1x8xf32>
    %cst_4 = arith.constant 1.000000e+30 : f32
    %4 = vector.broadcast %cst_4 : f32 to vector<2x1x8xf32>
    %5 = arith.mulf %3, %4 : vector<2x1x8xf32>
    %c0_5 = arith.constant 0 : index
    %c0_6 = arith.constant 0 : index
    %c0_7 = arith.constant 0 : index
    %6 = vector.load %arg9[%c0_5, %c0_6, %c0_7] : memref<2x8x64xf32, #tpu.memory_space<vmem>>, vector<1x8x64xf32>
    %7 = vector.shape_cast %6 : vector<1x8x64xf32> to vector<8x64xf32>
    %8 = vector.extract_strided_slice %7 {offsets = [0, 0], sizes = [1, 32], strides = [1, 1]} : vector<8x64xf32> to vector<1x32xf32>
    %9 = vector.extract_strided_slice %7 {offsets = [1, 0], sizes = [1, 32], strides = [1, 1]} : vector<8x64xf32> to vector<1x32xf32>
    %10 = vector.extract_strided_slice %7 {offsets = [2, 0], sizes = [1, 32], strides = [1, 1]} : vector<8x64xf32> to vector<1x32xf32>
    %11 = vector.extract_strided_slice %7 {offsets = [3, 0], sizes = [1, 32], strides = [1, 1]} : vector<8x64xf32> to vector<1x32xf32>
    %12 = vector.extract_strided_slice %7 {offsets = [4, 0], sizes = [1, 64], strides = [1, 1]} : vector<8x64xf32> to vector<1x64xf32>
    %13 = vector.extract_strided_slice %7 {offsets = [5, 0], sizes = [1, 32], strides = [1, 1]} : vector<8x64xf32> to vector<1x32xf32>
    %14 = vector.extract_strided_slice %7 {offsets = [6, 0], sizes = [1, 32], strides = [1, 1]} : vector<8x64xf32> to vector<1x32xf32>
    %15 = vector.extract_strided_slice %7 {offsets = [7, 0], sizes = [1, 32], strides = [1, 1]} : vector<8x64xf32> to vector<1x32xf32>
    %c0_8 = arith.constant 0 : index
    %c0_9 = arith.constant 0 : index
    %c0_10 = arith.constant 0 : index
    %c0_11 = arith.constant 0 : index
    %16 = vector.load %arg4[%c0_8, %c0_9, %c0_10, %c0_11] : memref<2x4x16x8xf32, #tpu.memory_space<vmem>>, vector<1x4x16x8xf32>
    %17 = vector.shape_cast %16 : vector<1x4x16x8xf32> to vector<4x16x8xf32>
    %c0_12 = arith.constant 0 : index
    %c0_13 = arith.constant 0 : index
    %c0_14 = arith.constant 0 : index
    %18 = vector.load %arg5[%c0_12, %c0_13, %c0_14] : memref<2x32x96xf32, #tpu.memory_space<vmem>>, vector<1x32x96xf32>
    %19 = vector.shape_cast %18 : vector<1x32x96xf32> to vector<32x96xf32>
    %cst_15 = arith.constant dense<0.000000e+00> : vector<16x96xf32>
    %20 = tpu.matmul %0, %19, %cst_15 {dimension_numbers = #tpu.dot_dimension_numbers<[1], [0], [0], [1], [0, 0, 1, 1], [], []>} : vector<16x32xf32>, vector<32x96xf32>, vector<16x96xf32> -> vector<16x96xf32>
    %21 = vector.extract_strided_slice %20 {offsets = [0, 0], sizes = [16, 32], strides = [1, 1]} : vector<16x96xf32> to vector<16x32xf32>
    %22 = vector.extract_strided_slice %20 {offsets = [0, 32], sizes = [16, 32], strides = [1, 1]} : vector<16x96xf32> to vector<16x32xf32>
    %23 = vector.extract_strided_slice %20 {offsets = [0, 64], sizes = [16, 32], strides = [1, 1]} : vector<16x96xf32> to vector<16x32xf32>
    %24 = vector.broadcast %8 : vector<1x32xf32> to vector<16x32xf32>
    %25 = arith.addf %21, %24 : vector<16x32xf32>
    %26 = vector.broadcast %9 : vector<1x32xf32> to vector<16x32xf32>
    %27 = arith.addf %21, %26 : vector<16x32xf32>
    %28 = tpu.concatenate %25, %27, %22, %23 in 0 : vector<16x32xf32>, vector<16x32xf32>, vector<16x32xf32>, vector<16x32xf32> -> vector<64x32xf32>
    %29 = vector.extract_strided_slice %28 {offsets = [0, 0], sizes = [64, 8], strides = [1, 1]} : vector<64x32xf32> to vector<64x8xf32>
    %30 = vector.extract_strided_slice %28 {offsets = [0, 8], sizes = [64, 8], strides = [1, 1]} : vector<64x32xf32> to vector<64x8xf32>
    %31 = vector.extract_strided_slice %28 {offsets = [0, 16], sizes = [64, 8], strides = [1, 1]} : vector<64x32xf32> to vector<64x8xf32>
    %32 = vector.extract_strided_slice %28 {offsets = [0, 24], sizes = [64, 8], strides = [1, 1]} : vector<64x32xf32> to vector<64x8xf32>
    %33 = vector.shape_cast %29 : vector<64x8xf32> to vector<1x64x8xf32>
    %34 = vector.shape_cast %30 : vector<64x8xf32> to vector<1x64x8xf32>
    %35 = vector.shape_cast %31 : vector<64x8xf32> to vector<1x64x8xf32>
    %36 = vector.shape_cast %32 : vector<64x8xf32> to vector<1x64x8xf32>
    %37 = tpu.concatenate %33, %34, %35, %36 in 0 : vector<1x64x8xf32>, vector<1x64x8xf32>, vector<1x64x8xf32>, vector<1x64x8xf32> -> vector<4x64x8xf32>
    %38 = vector.extract_strided_slice %37 {offsets = [0, 0, 0], sizes = [4, 8, 8], strides = [1, 1, 1]} : vector<4x64x8xf32> to vector<4x8x8xf32>
    %39 = vector.extract_strided_slice %37 {offsets = [0, 16, 0], sizes = [4, 8, 8], strides = [1, 1, 1]} : vector<4x64x8xf32> to vector<4x8x8xf32>
    %40 = vector.extract_strided_slice %37 {offsets = [0, 32, 0], sizes = [4, 8, 8], strides = [1, 1, 1]} : vector<4x64x8xf32> to vector<4x8x8xf32>
    %41 = vector.extract_strided_slice %37 {offsets = [0, 48, 0], sizes = [4, 8, 8], strides = [1, 1, 1]} : vector<4x64x8xf32> to vector<4x8x8xf32>
    "tpu.trace_start"() <{level = 10 : i32, message = "hqd,hkd->hqk"}> : () -> ()
    %cst_16 = arith.constant dense<0.000000e+00> : vector<4x8x8xf32>
    %42 = tpu.matmul %38, %40, %cst_16 {dimension_numbers = #tpu.dot_dimension_numbers<[2], [2], [1], [1], [0, 0, 0, 1, 1, 1], [0], [0]>} : vector<4x8x8xf32>, vector<4x8x8xf32>, vector<4x8x8xf32> -> vector<4x8x8xf32>
    %cst_17 = arith.constant dense<0.000000e+00> : vector<4x8x16xf32>
    %43 = tpu.matmul %39, %17, %cst_17 {dimension_numbers = #tpu.dot_dimension_numbers<[2], [2], [1], [1], [0, 0, 0, 1, 1, 1], [0], [0]>} : vector<4x8x8xf32>, vector<4x16x8xf32>, vector<4x8x16xf32> -> vector<4x8x16xf32>
    "tpu.trace_stop"() : () -> ()
    %44 = vector.extract_strided_slice %43 {offsets = [0, 0, 8], sizes = [4, 1, 8], strides = [1, 1, 1]} : vector<4x8x16xf32> to vector<4x1x8xf32>
    %45 = vector.extract_strided_slice %43 {offsets = [0, 1, 7], sizes = [4, 1, 8], strides = [1, 1, 1]} : vector<4x8x16xf32> to vector<4x1x8xf32>
    %46 = vector.extract_strided_slice %43 {offsets = [0, 2, 6], sizes = [4, 1, 8], strides = [1, 1, 1]} : vector<4x8x16xf32> to vector<4x1x8xf32>
    %47 = vector.extract_strided_slice %43 {offsets = [0, 3, 5], sizes = [4, 1, 8], strides = [1, 1, 1]} : vector<4x8x16xf32> to vector<4x1x8xf32>
    %48 = vector.extract_strided_slice %43 {offsets = [0, 4, 4], sizes = [4, 1, 8], strides = [1, 1, 1]} : vector<4x8x16xf32> to vector<4x1x8xf32>
    %49 = vector.extract_strided_slice %43 {offsets = [0, 5, 3], sizes = [4, 1, 8], strides = [1, 1, 1]} : vector<4x8x16xf32> to vector<4x1x8xf32>
    %50 = vector.extract_strided_slice %43 {offsets = [0, 6, 2], sizes = [4, 1, 8], strides = [1, 1, 1]} : vector<4x8x16xf32> to vector<4x1x8xf32>
    %51 = vector.extract_strided_slice %43 {offsets = [0, 7, 1], sizes = [4, 1, 8], strides = [1, 1, 1]} : vector<4x8x16xf32> to vector<4x1x8xf32>
    %52 = tpu.concatenate %44, %45, %46, %47, %48, %49, %50, %51 in 1 : vector<4x1x8xf32>, vector<4x1x8xf32>, vector<4x1x8xf32>, vector<4x1x8xf32>, vector<4x1x8xf32>, vector<4x1x8xf32>, vector<4x1x8xf32>, vector<4x1x8xf32> -> vector<4x8x8xf32>
    %53 = arith.addf %42, %52 : vector<4x8x8xf32>
    %cst_18 = arith.constant 0.353553385 : f32
    %54 = vector.broadcast %cst_18 : f32 to vector<4x8x8xf32>
    %55 = arith.mulf %53, %54 : vector<4x8x8xf32>
    %56 = vector.extract_strided_slice %5 {offsets = [0, 0, 0], sizes = [1, 1, 8], strides = [1, 1, 1]} : vector<2x1x8xf32> to vector<1x1x8xf32>
    %57 = vector.shape_cast %56 : vector<1x1x8xf32> to vector<1x8xf32>
    %58 = vector.shape_cast %57 : vector<1x8xf32> to vector<1x1x8xf32>
    %59 = vector.broadcast %58 : vector<1x1x8xf32> to vector<4x8x8xf32>
    %60 = arith.addf %55, %59 : vector<4x8x8xf32>
    %cst_19 = arith.constant dense<0xFF800000> : vector<4x8xf32>
    %61 = vector.multi_reduction <maximumf>, %60, %cst_19 [2] : vector<4x8x8xf32> to vector<4x8xf32>
    %62 = vector.shape_cast %61 : vector<4x8xf32> to vector<4x8x1xf32>
    %63 = vector.broadcast %62 : vector<4x8x1xf32> to vector<4x8x8xf32>
    %64 = arith.subf %60, %63 : vector<4x8x8xf32>
    %65 = math.exp %64 : vector<4x8x8xf32>
    %cst_20 = arith.constant dense<0.000000e+00> : vector<4x8xf32>
    %66 = vector.multi_reduction <add>, %65, %cst_20 [2] : vector<4x8x8xf32> to vector<4x8xf32>
    %67 = vector.shape_cast %66 : vector<4x8xf32> to vector<4x8x1xf32>
    %68 = vector.broadcast %67 : vector<4x8x1xf32> to vector<4x8x8xf32>
    %69 = arith.divf %65, %68 : vector<4x8x8xf32>
    "tpu.trace_start"() <{level = 10 : i32, message = "hqk,hkd->hqd"}> : () -> ()
    %cst_21 = arith.constant dense<0.000000e+00> : vector<4x8x8xf32>
    %70 = tpu.matmul %69, %41, %cst_21 {dimension_numbers = #tpu.dot_dimension_numbers<[2], [1], [1], [2], [0, 0, 0, 1, 1, 2], [0], [0]>} : vector<4x8x8xf32>, vector<4x8x8xf32>, vector<4x8x8xf32> -> vector<4x8x8xf32>
    "tpu.trace_stop"() : () -> ()
    %71 = vector.extract_strided_slice %70 {offsets = [0, 0, 0], sizes = [1, 8, 8], strides = [1, 1, 1]} : vector<4x8x8xf32> to vector<1x8x8xf32>
    %72 = vector.shape_cast %71 : vector<1x8x8xf32> to vector<8x8xf32>
    %73 = vector.extract_strided_slice %70 {offsets = [1, 0, 0], sizes = [1, 8, 8], strides = [1, 1, 1]} : vector<4x8x8xf32> to vector<1x8x8xf32>
    %74 = vector.shape_cast %73 : vector<1x8x8xf32> to vector<8x8xf32>
    %75 = vector.extract_strided_slice %70 {offsets = [2, 0, 0], sizes = [1, 8, 8], strides = [1, 1, 1]} : vector<4x8x8xf32> to vector<1x8x8xf32>
    %76 = vector.shape_cast %75 : vector<1x8x8xf32> to vector<8x8xf32>
    %77 = vector.extract_strided_slice %70 {offsets = [3, 0, 0], sizes = [1, 8, 8], strides = [1, 1, 1]} : vector<4x8x8xf32> to vector<1x8x8xf32>
    %78 = vector.shape_cast %77 : vector<1x8x8xf32> to vector<8x8xf32>
    %79 = tpu.concatenate %72, %74, %76, %78 in 1 : vector<8x8xf32>, vector<8x8xf32>, vector<8x8xf32>, vector<8x8xf32> -> vector<8x32xf32>
    %80 = vector.extract_strided_slice %37 {offsets = [0, 8, 0], sizes = [4, 8, 8], strides = [1, 1, 1]} : vector<4x64x8xf32> to vector<4x8x8xf32>
    %81 = vector.extract_strided_slice %37 {offsets = [0, 24, 0], sizes = [4, 8, 8], strides = [1, 1, 1]} : vector<4x64x8xf32> to vector<4x8x8xf32>
    %82 = vector.extract_strided_slice %37 {offsets = [0, 40, 0], sizes = [4, 8, 8], strides = [1, 1, 1]} : vector<4x64x8xf32> to vector<4x8x8xf32>
    %83 = vector.extract_strided_slice %37 {offsets = [0, 56, 0], sizes = [4, 8, 8], strides = [1, 1, 1]} : vector<4x64x8xf32> to vector<4x8x8xf32>
    "tpu.trace_start"() <{level = 10 : i32, message = "hqd,hkd->hqk"}> : () -> ()
    %cst_22 = arith.constant dense<0.000000e+00> : vector<4x8x8xf32>
    %84 = tpu.matmul %80, %82, %cst_22 {dimension_numbers = #tpu.dot_dimension_numbers<[2], [2], [1], [1], [0, 0, 0, 1, 1, 1], [0], [0]>} : vector<4x8x8xf32>, vector<4x8x8xf32>, vector<4x8x8xf32> -> vector<4x8x8xf32>
    %cst_23 = arith.constant dense<0.000000e+00> : vector<4x8x16xf32>
    %85 = tpu.matmul %81, %17, %cst_23 {dimension_numbers = #tpu.dot_dimension_numbers<[2], [2], [1], [1], [0, 0, 0, 1, 1, 1], [0], [0]>} : vector<4x8x8xf32>, vector<4x16x8xf32>, vector<4x8x16xf32> -> vector<4x8x16xf32>
    "tpu.trace_stop"() : () -> ()
    %86 = vector.extract_strided_slice %85 {offsets = [0, 0, 8], sizes = [4, 1, 8], strides = [1, 1, 1]} : vector<4x8x16xf32> to vector<4x1x8xf32>
    %87 = vector.extract_strided_slice %85 {offsets = [0, 1, 7], sizes = [4, 1, 8], strides = [1, 1, 1]} : vector<4x8x16xf32> to vector<4x1x8xf32>
    %88 = vector.extract_strided_slice %85 {offsets = [0, 2, 6], sizes = [4, 1, 8], strides = [1, 1, 1]} : vector<4x8x16xf32> to vector<4x1x8xf32>
    %89 = vector.extract_strided_slice %85 {offsets = [0, 3, 5], sizes = [4, 1, 8], strides = [1, 1, 1]} : vector<4x8x16xf32> to vector<4x1x8xf32>
    %90 = vector.extract_strided_slice %85 {offsets = [0, 4, 4], sizes = [4, 1, 8], strides = [1, 1, 1]} : vector<4x8x16xf32> to vector<4x1x8xf32>
    %91 = vector.extract_strided_slice %85 {offsets = [0, 5, 3], sizes = [4, 1, 8], strides = [1, 1, 1]} : vector<4x8x16xf32> to vector<4x1x8xf32>
    %92 = vector.extract_strided_slice %85 {offsets = [0, 6, 2], sizes = [4, 1, 8], strides = [1, 1, 1]} : vector<4x8x16xf32> to vector<4x1x8xf32>
    %93 = vector.extract_strided_slice %85 {offsets = [0, 7, 1], sizes = [4, 1, 8], strides = [1, 1, 1]} : vector<4x8x16xf32> to vector<4x1x8xf32>
    %94 = tpu.concatenate %86, %87, %88, %89, %90, %91, %92, %93 in 1 : vector<4x1x8xf32>, vector<4x1x8xf32>, vector<4x1x8xf32>, vector<4x1x8xf32>, vector<4x1x8xf32>, vector<4x1x8xf32>, vector<4x1x8xf32>, vector<4x1x8xf32> -> vector<4x8x8xf32>
    %95 = arith.addf %84, %94 : vector<4x8x8xf32>
    %cst_24 = arith.constant 0.353553385 : f32
    %96 = vector.broadcast %cst_24 : f32 to vector<4x8x8xf32>
    %97 = arith.mulf %95, %96 : vector<4x8x8xf32>
    %98 = vector.extract_strided_slice %5 {offsets = [1, 0, 0], sizes = [1, 1, 8], strides = [1, 1, 1]} : vector<2x1x8xf32> to vector<1x1x8xf32>
    %99 = vector.shape_cast %98 : vector<1x1x8xf32> to vector<1x8xf32>
    %100 = vector.shape_cast %99 : vector<1x8xf32> to vector<1x1x8xf32>
    %101 = vector.broadcast %100 : vector<1x1x8xf32> to vector<4x8x8xf32>
    %102 = arith.addf %97, %101 : vector<4x8x8xf32>
    %cst_25 = arith.constant dense<0xFF800000> : vector<4x8xf32>
    %103 = vector.multi_reduction <maximumf>, %102, %cst_25 [2] : vector<4x8x8xf32> to vector<4x8xf32>
    %104 = vector.shape_cast %103 : vector<4x8xf32> to vector<4x8x1xf32>
    %105 = vector.broadcast %104 : vector<4x8x1xf32> to vector<4x8x8xf32>
    %106 = arith.subf %102, %105 : vector<4x8x8xf32>
    %107 = math.exp %106 : vector<4x8x8xf32>
    %cst_26 = arith.constant dense<0.000000e+00> : vector<4x8xf32>
    %108 = vector.multi_reduction <add>, %107, %cst_26 [2] : vector<4x8x8xf32> to vector<4x8xf32>
    %109 = vector.shape_cast %108 : vector<4x8xf32> to vector<4x8x1xf32>
    %110 = vector.broadcast %109 : vector<4x8x1xf32> to vector<4x8x8xf32>
    %111 = arith.divf %107, %110 : vector<4x8x8xf32>
    "tpu.trace_start"() <{level = 10 : i32, message = "hqk,hkd->hqd"}> : () -> ()
    %cst_27 = arith.constant dense<0.000000e+00> : vector<4x8x8xf32>
    %112 = tpu.matmul %111, %83, %cst_27 {dimension_numbers = #tpu.dot_dimension_numbers<[2], [1], [1], [2], [0, 0, 0, 1, 1, 2], [0], [0]>} : vector<4x8x8xf32>, vector<4x8x8xf32>, vector<4x8x8xf32> -> vector<4x8x8xf32>
    "tpu.trace_stop"() : () -> ()
    %113 = vector.extract_strided_slice %112 {offsets = [0, 0, 0], sizes = [1, 8, 8], strides = [1, 1, 1]} : vector<4x8x8xf32> to vector<1x8x8xf32>
    %114 = vector.shape_cast %113 : vector<1x8x8xf32> to vector<8x8xf32>
    %115 = vector.extract_strided_slice %112 {offsets = [1, 0, 0], sizes = [1, 8, 8], strides = [1, 1, 1]} : vector<4x8x8xf32> to vector<1x8x8xf32>
    %116 = vector.shape_cast %115 : vector<1x8x8xf32> to vector<8x8xf32>
    %117 = vector.extract_strided_slice %112 {offsets = [2, 0, 0], sizes = [1, 8, 8], strides = [1, 1, 1]} : vector<4x8x8xf32> to vector<1x8x8xf32>
    %118 = vector.shape_cast %117 : vector<1x8x8xf32> to vector<8x8xf32>
    %119 = vector.extract_strided_slice %112 {offsets = [3, 0, 0], sizes = [1, 8, 8], strides = [1, 1, 1]} : vector<4x8x8xf32> to vector<1x8x8xf32>
    %120 = vector.shape_cast %119 : vector<1x8x8xf32> to vector<8x8xf32>
    %121 = tpu.concatenate %114, %116, %118, %120 in 1 : vector<8x8xf32>, vector<8x8xf32>, vector<8x8xf32>, vector<8x8xf32> -> vector<8x32xf32>
    %122 = tpu.concatenate %79, %121 in 0 : vector<8x32xf32>, vector<8x32xf32> -> vector<16x32xf32>
    %c0_28 = arith.constant 0 : index
    %c0_29 = arith.constant 0 : index
    %c0_30 = arith.constant 0 : index
    %123 = vector.load %arg6[%c0_28, %c0_29, %c0_30] : memref<2x32x32xf32, #tpu.memory_space<vmem>>, vector<1x32x32xf32>
    %124 = vector.shape_cast %123 : vector<1x32x32xf32> to vector<32x32xf32>
    %cst_31 = arith.constant dense<0.000000e+00> : vector<16x32xf32>
    %125 = tpu.matmul %122, %124, %cst_31 {dimension_numbers = #tpu.dot_dimension_numbers<[1], [0], [0], [1], [0, 0, 1, 1], [], []>} : vector<16x32xf32>, vector<32x32xf32>, vector<16x32xf32> -> vector<16x32xf32>
    %126 = arith.addf %0, %125 : vector<16x32xf32>
    %cst_32 = arith.constant dense<0.000000e+00> : vector<16xf32>
    %127 = vector.multi_reduction <add>, %126, %cst_32 [1] : vector<16x32xf32> to vector<16xf32>
    %128 = vector.shape_cast %127 : vector<16xf32> to vector<16x1xf32>
    %cst_33 = arith.constant 3.200000e+01 : f32
    %129 = vector.broadcast %cst_33 : f32 to vector<16x1xf32>
    %130 = arith.divf %128, %129 : vector<16x1xf32>
    %131 = vector.broadcast %130 : vector<16x1xf32> to vector<16x32xf32>
    %132 = arith.subf %126, %131 : vector<16x32xf32>
    %133 = arith.mulf %132, %132 : vector<16x32xf32>
    %cst_34 = arith.constant dense<0.000000e+00> : vector<16xf32>
    %134 = vector.multi_reduction <add>, %133, %cst_34 [1] : vector<16x32xf32> to vector<16xf32>
    %135 = vector.shape_cast %134 : vector<16xf32> to vector<16x1xf32>
    %cst_35 = arith.constant 3.200000e+01 : f32
    %136 = vector.broadcast %cst_35 : f32 to vector<16x1xf32>
    %137 = arith.divf %135, %136 : vector<16x1xf32>
    %138 = vector.broadcast %130 : vector<16x1xf32> to vector<16x32xf32>
    %139 = arith.subf %126, %138 : vector<16x32xf32>
    %cst_36 = arith.constant 9.99999996E-13 : f32
    %140 = vector.broadcast %cst_36 : f32 to vector<16x1xf32>
    %141 = arith.addf %137, %140 : vector<16x1xf32>
    %142 = math.rsqrt %141 : vector<16x1xf32>
    %143 = vector.broadcast %142 : vector<16x1xf32> to vector<16x32xf32>
    %144 = arith.mulf %139, %143 : vector<16x32xf32>
    %145 = vector.broadcast %10 : vector<1x32xf32> to vector<16x32xf32>
    %146 = arith.mulf %144, %145 : vector<16x32xf32>
    %147 = vector.broadcast %11 : vector<1x32xf32> to vector<16x32xf32>
    %148 = arith.addf %146, %147 : vector<16x32xf32>
    %c0_37 = arith.constant 0 : index
    %c0_38 = arith.constant 0 : index
    %c0_39 = arith.constant 0 : index
    %149 = vector.load %arg7[%c0_37, %c0_38, %c0_39] : memref<2x32x64xf32, #tpu.memory_space<vmem>>, vector<1x32x64xf32>
    %150 = vector.shape_cast %149 : vector<1x32x64xf32> to vector<32x64xf32>
    %cst_40 = arith.constant dense<0.000000e+00> : vector<16x64xf32>
    %151 = tpu.matmul %148, %150, %cst_40 {dimension_numbers = #tpu.dot_dimension_numbers<[1], [0], [0], [1], [0, 0, 1, 1], [], []>} : vector<16x32xf32>, vector<32x64xf32>, vector<16x64xf32> -> vector<16x64xf32>
    %152 = vector.broadcast %12 : vector<1x64xf32> to vector<16x64xf32>
    %153 = arith.addf %151, %152 : vector<16x64xf32>
    %154 = arith.mulf %153, %153 : vector<16x64xf32>
    %155 = arith.mulf %153, %154 : vector<16x64xf32>
    %cst_41 = arith.constant 4.471500e-02 : f32
    %156 = vector.broadcast %cst_41 : f32 to vector<16x64xf32>
    %157 = arith.mulf %156, %155 : vector<16x64xf32>
    %158 = arith.addf %153, %157 : vector<16x64xf32>
    %cst_42 = arith.constant 0.797884583 : f32
    %159 = vector.broadcast %cst_42 : f32 to vector<16x64xf32>
    %160 = arith.mulf %159, %158 : vector<16x64xf32>
    %161 = math.tanh %160 : vector<16x64xf32>
    %cst_43 = arith.constant 1.000000e+00 : f32
    %162 = vector.broadcast %cst_43 : f32 to vector<16x64xf32>
    %163 = arith.addf %162, %161 : vector<16x64xf32>
    %cst_44 = arith.constant 5.000000e-01 : f32
    %164 = vector.broadcast %cst_44 : f32 to vector<16x64xf32>
    %165 = arith.mulf %164, %163 : vector<16x64xf32>
    %166 = arith.mulf %153, %165 : vector<16x64xf32>
    %c0_45 = arith.constant 0 : index
    %c0_46 = arith.constant 0 : index
    %c0_47 = arith.constant 0 : index
    %167 = vector.load %arg8[%c0_45, %c0_46, %c0_47] : memref<2x64x32xf32, #tpu.memory_space<vmem>>, vector<1x64x32xf32>
    %168 = vector.shape_cast %167 : vector<1x64x32xf32> to vector<64x32xf32>
    %cst_48 = arith.constant dense<0.000000e+00> : vector<16x32xf32>
    %169 = tpu.matmul %166, %168, %cst_48 {dimension_numbers = #tpu.dot_dimension_numbers<[1], [0], [0], [1], [0, 0, 1, 1], [], []>} : vector<16x64xf32>, vector<64x32xf32>, vector<16x32xf32> -> vector<16x32xf32>
    %170 = vector.broadcast %13 : vector<1x32xf32> to vector<16x32xf32>
    %171 = arith.addf %169, %170 : vector<16x32xf32>
    %172 = arith.addf %148, %171 : vector<16x32xf32>
    %cst_49 = arith.constant dense<0.000000e+00> : vector<16xf32>
    %173 = vector.multi_reduction <add>, %172, %cst_49 [1] : vector<16x32xf32> to vector<16xf32>
    %174 = vector.shape_cast %173 : vector<16xf32> to vector<16x1xf32>
    %cst_50 = arith.constant 3.200000e+01 : f32
    %175 = vector.broadcast %cst_50 : f32 to vector<16x1xf32>
    %176 = arith.divf %174, %175 : vector<16x1xf32>
    %177 = vector.broadcast %176 : vector<16x1xf32> to vector<16x32xf32>
    %178 = arith.subf %172, %177 : vector<16x32xf32>
    %179 = arith.mulf %178, %178 : vector<16x32xf32>
    %cst_51 = arith.constant dense<0.000000e+00> : vector<16xf32>
    %180 = vector.multi_reduction <add>, %179, %cst_51 [1] : vector<16x32xf32> to vector<16xf32>
    %181 = vector.shape_cast %180 : vector<16xf32> to vector<16x1xf32>
    %cst_52 = arith.constant 3.200000e+01 : f32
    %182 = vector.broadcast %cst_52 : f32 to vector<16x1xf32>
    %183 = arith.divf %181, %182 : vector<16x1xf32>
    %184 = vector.broadcast %176 : vector<16x1xf32> to vector<16x32xf32>
    %185 = arith.subf %172, %184 : vector<16x32xf32>
    %cst_53 = arith.constant 9.99999996E-13 : f32
    %186 = vector.broadcast %cst_53 : f32 to vector<16x1xf32>
    %187 = arith.addf %183, %186 : vector<16x1xf32>
    %188 = math.rsqrt %187 : vector<16x1xf32>
    %189 = vector.broadcast %188 : vector<16x1xf32> to vector<16x32xf32>
    %190 = arith.mulf %185, %189 : vector<16x32xf32>
    %191 = vector.broadcast %14 : vector<1x32xf32> to vector<16x32xf32>
    %192 = arith.mulf %190, %191 : vector<16x32xf32>
    %193 = vector.broadcast %15 : vector<1x32xf32> to vector<16x32xf32>
    %194 = arith.addf %192, %193 : vector<16x32xf32>
    %c1 = arith.constant 1 : index
    %c0_54 = arith.constant 0 : index
    %c0_55 = arith.constant 0 : index
    %195 = vector.load %arg9[%c1, %c0_54, %c0_55] : memref<2x8x64xf32, #tpu.memory_space<vmem>>, vector<1x8x64xf32>
    %196 = vector.shape_cast %195 : vector<1x8x64xf32> to vector<8x64xf32>
    %197 = vector.extract_strided_slice %196 {offsets = [0, 0], sizes = [1, 32], strides = [1, 1]} : vector<8x64xf32> to vector<1x32xf32>
    %198 = vector.extract_strided_slice %196 {offsets = [1, 0], sizes = [1, 32], strides = [1, 1]} : vector<8x64xf32> to vector<1x32xf32>
    %199 = vector.extract_strided_slice %196 {offsets = [2, 0], sizes = [1, 32], strides = [1, 1]} : vector<8x64xf32> to vector<1x32xf32>
    %200 = vector.extract_strided_slice %196 {offsets = [3, 0], sizes = [1, 32], strides = [1, 1]} : vector<8x64xf32> to vector<1x32xf32>
    %201 = vector.extract_strided_slice %196 {offsets = [4, 0], sizes = [1, 64], strides = [1, 1]} : vector<8x64xf32> to vector<1x64xf32>
    %202 = vector.extract_strided_slice %196 {offsets = [5, 0], sizes = [1, 32], strides = [1, 1]} : vector<8x64xf32> to vector<1x32xf32>
    %203 = vector.extract_strided_slice %196 {offsets = [6, 0], sizes = [1, 32], strides = [1, 1]} : vector<8x64xf32> to vector<1x32xf32>
    %204 = vector.extract_strided_slice %196 {offsets = [7, 0], sizes = [1, 32], strides = [1, 1]} : vector<8x64xf32> to vector<1x32xf32>
    %c1_56 = arith.constant 1 : index
    %c0_57 = arith.constant 0 : index
    %c0_58 = arith.constant 0 : index
    %c0_59 = arith.constant 0 : index
    %205 = vector.load %arg4[%c1_56, %c0_57, %c0_58, %c0_59] : memref<2x4x16x8xf32, #tpu.memory_space<vmem>>, vector<1x4x16x8xf32>
    %206 = vector.shape_cast %205 : vector<1x4x16x8xf32> to vector<4x16x8xf32>
    %c1_60 = arith.constant 1 : index
    %c0_61 = arith.constant 0 : index
    %c0_62 = arith.constant 0 : index
    %207 = vector.load %arg5[%c1_60, %c0_61, %c0_62] : memref<2x32x96xf32, #tpu.memory_space<vmem>>, vector<1x32x96xf32>
    %208 = vector.shape_cast %207 : vector<1x32x96xf32> to vector<32x96xf32>
    %cst_63 = arith.constant dense<0.000000e+00> : vector<16x96xf32>
    %209 = tpu.matmul %194, %208, %cst_63 {dimension_numbers = #tpu.dot_dimension_numbers<[1], [0], [0], [1], [0, 0, 1, 1], [], []>} : vector<16x32xf32>, vector<32x96xf32>, vector<16x96xf32> -> vector<16x96xf32>
    %210 = vector.extract_strided_slice %209 {offsets = [0, 0], sizes = [16, 32], strides = [1, 1]} : vector<16x96xf32> to vector<16x32xf32>
    %211 = vector.extract_strided_slice %209 {offsets = [0, 32], sizes = [16, 32], strides = [1, 1]} : vector<16x96xf32> to vector<16x32xf32>
    %212 = vector.extract_strided_slice %209 {offsets = [0, 64], sizes = [16, 32], strides = [1, 1]} : vector<16x96xf32> to vector<16x32xf32>
    %213 = vector.broadcast %197 : vector<1x32xf32> to vector<16x32xf32>
    %214 = arith.addf %210, %213 : vector<16x32xf32>
    %215 = vector.broadcast %198 : vector<1x32xf32> to vector<16x32xf32>
    %216 = arith.addf %210, %215 : vector<16x32xf32>
    %217 = tpu.concatenate %214, %216, %211, %212 in 0 : vector<16x32xf32>, vector<16x32xf32>, vector<16x32xf32>, vector<16x32xf32> -> vector<64x32xf32>
    %218 = vector.extract_strided_slice %217 {offsets = [0, 0], sizes = [64, 8], strides = [1, 1]} : vector<64x32xf32> to vector<64x8xf32>
    %219 = vector.extract_strided_slice %217 {offsets = [0, 8], sizes = [64, 8], strides = [1, 1]} : vector<64x32xf32> to vector<64x8xf32>
    %220 = vector.extract_strided_slice %217 {offsets = [0, 16], sizes = [64, 8], strides = [1, 1]} : vector<64x32xf32> to vector<64x8xf32>
    %221 = vector.extract_strided_slice %217 {offsets = [0, 24], sizes = [64, 8], strides = [1, 1]} : vector<64x32xf32> to vector<64x8xf32>
    %222 = vector.shape_cast %218 : vector<64x8xf32> to vector<1x64x8xf32>
    %223 = vector.shape_cast %219 : vector<64x8xf32> to vector<1x64x8xf32>
    %224 = vector.shape_cast %220 : vector<64x8xf32> to vector<1x64x8xf32>
    %225 = vector.shape_cast %221 : vector<64x8xf32> to vector<1x64x8xf32>
    %226 = tpu.concatenate %222, %223, %224, %225 in 0 : vector<1x64x8xf32>, vector<1x64x8xf32>, vector<1x64x8xf32>, vector<1x64x8xf32> -> vector<4x64x8xf32>
    %227 = vector.extract_strided_slice %226 {offsets = [0, 0, 0], sizes = [4, 8, 8], strides = [1, 1, 1]} : vector<4x64x8xf32> to vector<4x8x8xf32>
    %228 = vector.extract_strided_slice %226 {offsets = [0, 16, 0], sizes = [4, 8, 8], strides = [1, 1, 1]} : vector<4x64x8xf32> to vector<4x8x8xf32>
    %229 = vector.extract_strided_slice %226 {offsets = [0, 32, 0], sizes = [4, 8, 8], strides = [1, 1, 1]} : vector<4x64x8xf32> to vector<4x8x8xf32>
    %230 = vector.extract_strided_slice %226 {offsets = [0, 48, 0], sizes = [4, 8, 8], strides = [1, 1, 1]} : vector<4x64x8xf32> to vector<4x8x8xf32>
    "tpu.trace_start"() <{level = 10 : i32, message = "hqd,hkd->hqk"}> : () -> ()
    %cst_64 = arith.constant dense<0.000000e+00> : vector<4x8x8xf32>
    %231 = tpu.matmul %227, %229, %cst_64 {dimension_numbers = #tpu.dot_dimension_numbers<[2], [2], [1], [1], [0, 0, 0, 1, 1, 1], [0], [0]>} : vector<4x8x8xf32>, vector<4x8x8xf32>, vector<4x8x8xf32> -> vector<4x8x8xf32>
    %cst_65 = arith.constant dense<0.000000e+00> : vector<4x8x16xf32>
    %232 = tpu.matmul %228, %206, %cst_65 {dimension_numbers = #tpu.dot_dimension_numbers<[2], [2], [1], [1], [0, 0, 0, 1, 1, 1], [0], [0]>} : vector<4x8x8xf32>, vector<4x16x8xf32>, vector<4x8x16xf32> -> vector<4x8x16xf32>
    "tpu.trace_stop"() : () -> ()
    %233 = vector.extract_strided_slice %232 {offsets = [0, 0, 8], sizes = [4, 1, 8], strides = [1, 1, 1]} : vector<4x8x16xf32> to vector<4x1x8xf32>
    %234 = vector.extract_strided_slice %232 {offsets = [0, 1, 7], sizes = [4, 1, 8], strides = [1, 1, 1]} : vector<4x8x16xf32> to vector<4x1x8xf32>
    %235 = vector.extract_strided_slice %232 {offsets = [0, 2, 6], sizes = [4, 1, 8], strides = [1, 1, 1]} : vector<4x8x16xf32> to vector<4x1x8xf32>
    %236 = vector.extract_strided_slice %232 {offsets = [0, 3, 5], sizes = [4, 1, 8], strides = [1, 1, 1]} : vector<4x8x16xf32> to vector<4x1x8xf32>
    %237 = vector.extract_strided_slice %232 {offsets = [0, 4, 4], sizes = [4, 1, 8], strides = [1, 1, 1]} : vector<4x8x16xf32> to vector<4x1x8xf32>
    %238 = vector.extract_strided_slice %232 {offsets = [0, 5, 3], sizes = [4, 1, 8], strides = [1, 1, 1]} : vector<4x8x16xf32> to vector<4x1x8xf32>
    %239 = vector.extract_strided_slice %232 {offsets = [0, 6, 2], sizes = [4, 1, 8], strides = [1, 1, 1]} : vector<4x8x16xf32> to vector<4x1x8xf32>
    %240 = vector.extract_strided_slice %232 {offsets = [0, 7, 1], sizes = [4, 1, 8], strides = [1, 1, 1]} : vector<4x8x16xf32> to vector<4x1x8xf32>
    %241 = tpu.concatenate %233, %234, %235, %236, %237, %238, %239, %240 in 1 : vector<4x1x8xf32>, vector<4x1x8xf32>, vector<4x1x8xf32>, vector<4x1x8xf32>, vector<4x1x8xf32>, vector<4x1x8xf32>, vector<4x1x8xf32>, vector<4x1x8xf32> -> vector<4x8x8xf32>
    %242 = arith.addf %231, %241 : vector<4x8x8xf32>
    %cst_66 = arith.constant 0.353553385 : f32
    %243 = vector.broadcast %cst_66 : f32 to vector<4x8x8xf32>
    %244 = arith.mulf %242, %243 : vector<4x8x8xf32>
    %245 = vector.extract_strided_slice %5 {offsets = [0, 0, 0], sizes = [1, 1, 8], strides = [1, 1, 1]} : vector<2x1x8xf32> to vector<1x1x8xf32>
    %246 = vector.shape_cast %245 : vector<1x1x8xf32> to vector<1x8xf32>
    %247 = vector.shape_cast %246 : vector<1x8xf32> to vector<1x1x8xf32>
    %248 = vector.broadcast %247 : vector<1x1x8xf32> to vector<4x8x8xf32>
    %249 = arith.addf %244, %248 : vector<4x8x8xf32>
    %cst_67 = arith.constant dense<0xFF800000> : vector<4x8xf32>
    %250 = vector.multi_reduction <maximumf>, %249, %cst_67 [2] : vector<4x8x8xf32> to vector<4x8xf32>
    %251 = vector.shape_cast %250 : vector<4x8xf32> to vector<4x8x1xf32>
    %252 = vector.broadcast %251 : vector<4x8x1xf32> to vector<4x8x8xf32>
    %253 = arith.subf %249, %252 : vector<4x8x8xf32>
    %254 = math.exp %253 : vector<4x8x8xf32>
    %cst_68 = arith.constant dense<0.000000e+00> : vector<4x8xf32>
    %255 = vector.multi_reduction <add>, %254, %cst_68 [2] : vector<4x8x8xf32> to vector<4x8xf32>
    %256 = vector.shape_cast %255 : vector<4x8xf32> to vector<4x8x1xf32>
    %257 = vector.broadcast %256 : vector<4x8x1xf32> to vector<4x8x8xf32>
    %258 = arith.divf %254, %257 : vector<4x8x8xf32>
    "tpu.trace_start"() <{level = 10 : i32, message = "hqk,hkd->hqd"}> : () -> ()
    %cst_69 = arith.constant dense<0.000000e+00> : vector<4x8x8xf32>
    %259 = tpu.matmul %258, %230, %cst_69 {dimension_numbers = #tpu.dot_dimension_numbers<[2], [1], [1], [2], [0, 0, 0, 1, 1, 2], [0], [0]>} : vector<4x8x8xf32>, vector<4x8x8xf32>, vector<4x8x8xf32> -> vector<4x8x8xf32>
    "tpu.trace_stop"() : () -> ()
    %260 = vector.extract_strided_slice %259 {offsets = [0, 0, 0], sizes = [1, 8, 8], strides = [1, 1, 1]} : vector<4x8x8xf32> to vector<1x8x8xf32>
    %261 = vector.shape_cast %260 : vector<1x8x8xf32> to vector<8x8xf32>
    %262 = vector.extract_strided_slice %259 {offsets = [1, 0, 0], sizes = [1, 8, 8], strides = [1, 1, 1]} : vector<4x8x8xf32> to vector<1x8x8xf32>
    %263 = vector.shape_cast %262 : vector<1x8x8xf32> to vector<8x8xf32>
    %264 = vector.extract_strided_slice %259 {offsets = [2, 0, 0], sizes = [1, 8, 8], strides = [1, 1, 1]} : vector<4x8x8xf32> to vector<1x8x8xf32>
    %265 = vector.shape_cast %264 : vector<1x8x8xf32> to vector<8x8xf32>
    %266 = vector.extract_strided_slice %259 {offsets = [3, 0, 0], sizes = [1, 8, 8], strides = [1, 1, 1]} : vector<4x8x8xf32> to vector<1x8x8xf32>
    %267 = vector.shape_cast %266 : vector<1x8x8xf32> to vector<8x8xf32>
    %268 = tpu.concatenate %261, %263, %265, %267 in 1 : vector<8x8xf32>, vector<8x8xf32>, vector<8x8xf32>, vector<8x8xf32> -> vector<8x32xf32>
    %269 = vector.extract_strided_slice %226 {offsets = [0, 8, 0], sizes = [4, 8, 8], strides = [1, 1, 1]} : vector<4x64x8xf32> to vector<4x8x8xf32>
    %270 = vector.extract_strided_slice %226 {offsets = [0, 24, 0], sizes = [4, 8, 8], strides = [1, 1, 1]} : vector<4x64x8xf32> to vector<4x8x8xf32>
    %271 = vector.extract_strided_slice %226 {offsets = [0, 40, 0], sizes = [4, 8, 8], strides = [1, 1, 1]} : vector<4x64x8xf32> to vector<4x8x8xf32>
    %272 = vector.extract_strided_slice %226 {offsets = [0, 56, 0], sizes = [4, 8, 8], strides = [1, 1, 1]} : vector<4x64x8xf32> to vector<4x8x8xf32>
    "tpu.trace_start"() <{level = 10 : i32, message = "hqd,hkd->hqk"}> : () -> ()
    %cst_70 = arith.constant dense<0.000000e+00> : vector<4x8x8xf32>
    %273 = tpu.matmul %269, %271, %cst_70 {dimension_numbers = #tpu.dot_dimension_numbers<[2], [2], [1], [1], [0, 0, 0, 1, 1, 1], [0], [0]>} : vector<4x8x8xf32>, vector<4x8x8xf32>, vector<4x8x8xf32> -> vector<4x8x8xf32>
    %cst_71 = arith.constant dense<0.000000e+00> : vector<4x8x16xf32>
    %274 = tpu.matmul %270, %206, %cst_71 {dimension_numbers = #tpu.dot_dimension_numbers<[2], [2], [1], [1], [0, 0, 0, 1, 1, 1], [0], [0]>} : vector<4x8x8xf32>, vector<4x16x8xf32>, vector<4x8x16xf32> -> vector<4x8x16xf32>
    "tpu.trace_stop"() : () -> ()
    %275 = vector.extract_strided_slice %274 {offsets = [0, 0, 8], sizes = [4, 1, 8], strides = [1, 1, 1]} : vector<4x8x16xf32> to vector<4x1x8xf32>
    %276 = vector.extract_strided_slice %274 {offsets = [0, 1, 7], sizes = [4, 1, 8], strides = [1, 1, 1]} : vector<4x8x16xf32> to vector<4x1x8xf32>
    %277 = vector.extract_strided_slice %274 {offsets = [0, 2, 6], sizes = [4, 1, 8], strides = [1, 1, 1]} : vector<4x8x16xf32> to vector<4x1x8xf32>
    %278 = vector.extract_strided_slice %274 {offsets = [0, 3, 5], sizes = [4, 1, 8], strides = [1, 1, 1]} : vector<4x8x16xf32> to vector<4x1x8xf32>
    %279 = vector.extract_strided_slice %274 {offsets = [0, 4, 4], sizes = [4, 1, 8], strides = [1, 1, 1]} : vector<4x8x16xf32> to vector<4x1x8xf32>
    %280 = vector.extract_strided_slice %274 {offsets = [0, 5, 3], sizes = [4, 1, 8], strides = [1, 1, 1]} : vector<4x8x16xf32> to vector<4x1x8xf32>
    %281 = vector.extract_strided_slice %274 {offsets = [0, 6, 2], sizes = [4, 1, 8], strides = [1, 1, 1]} : vector<4x8x16xf32> to vector<4x1x8xf32>
    %282 = vector.extract_strided_slice %274 {offsets = [0, 7, 1], sizes = [4, 1, 8], strides = [1, 1, 1]} : vector<4x8x16xf32> to vector<4x1x8xf32>
    %283 = tpu.concatenate %275, %276, %277, %278, %279, %280, %281, %282 in 1 : vector<4x1x8xf32>, vector<4x1x8xf32>, vector<4x1x8xf32>, vector<4x1x8xf32>, vector<4x1x8xf32>, vector<4x1x8xf32>, vector<4x1x8xf32>, vector<4x1x8xf32> -> vector<4x8x8xf32>
    %284 = arith.addf %273, %283 : vector<4x8x8xf32>
    %cst_72 = arith.constant 0.353553385 : f32
    %285 = vector.broadcast %cst_72 : f32 to vector<4x8x8xf32>
    %286 = arith.mulf %284, %285 : vector<4x8x8xf32>
    %287 = vector.extract_strided_slice %5 {offsets = [1, 0, 0], sizes = [1, 1, 8], strides = [1, 1, 1]} : vector<2x1x8xf32> to vector<1x1x8xf32>
    %288 = vector.shape_cast %287 : vector<1x1x8xf32> to vector<1x8xf32>
    %289 = vector.shape_cast %288 : vector<1x8xf32> to vector<1x1x8xf32>
    %290 = vector.broadcast %289 : vector<1x1x8xf32> to vector<4x8x8xf32>
    %291 = arith.addf %286, %290 : vector<4x8x8xf32>
    %cst_73 = arith.constant dense<0xFF800000> : vector<4x8xf32>
    %292 = vector.multi_reduction <maximumf>, %291, %cst_73 [2] : vector<4x8x8xf32> to vector<4x8xf32>
    %293 = vector.shape_cast %292 : vector<4x8xf32> to vector<4x8x1xf32>
    %294 = vector.broadcast %293 : vector<4x8x1xf32> to vector<4x8x8xf32>
    %295 = arith.subf %291, %294 : vector<4x8x8xf32>
    %296 = math.exp %295 : vector<4x8x8xf32>
    %cst_74 = arith.constant dense<0.000000e+00> : vector<4x8xf32>
    %297 = vector.multi_reduction <add>, %296, %cst_74 [2] : vector<4x8x8xf32> to vector<4x8xf32>
    %298 = vector.shape_cast %297 : vector<4x8xf32> to vector<4x8x1xf32>
    %299 = vector.broadcast %298 : vector<4x8x1xf32> to vector<4x8x8xf32>
    %300 = arith.divf %296, %299 : vector<4x8x8xf32>
    "tpu.trace_start"() <{level = 10 : i32, message = "hqk,hkd->hqd"}> : () -> ()
    %cst_75 = arith.constant dense<0.000000e+00> : vector<4x8x8xf32>
    %301 = tpu.matmul %300, %272, %cst_75 {dimension_numbers = #tpu.dot_dimension_numbers<[2], [1], [1], [2], [0, 0, 0, 1, 1, 2], [0], [0]>} : vector<4x8x8xf32>, vector<4x8x8xf32>, vector<4x8x8xf32> -> vector<4x8x8xf32>
    "tpu.trace_stop"() : () -> ()
    %302 = vector.extract_strided_slice %301 {offsets = [0, 0, 0], sizes = [1, 8, 8], strides = [1, 1, 1]} : vector<4x8x8xf32> to vector<1x8x8xf32>
    %303 = vector.shape_cast %302 : vector<1x8x8xf32> to vector<8x8xf32>
    %304 = vector.extract_strided_slice %301 {offsets = [1, 0, 0], sizes = [1, 8, 8], strides = [1, 1, 1]} : vector<4x8x8xf32> to vector<1x8x8xf32>
    %305 = vector.shape_cast %304 : vector<1x8x8xf32> to vector<8x8xf32>
    %306 = vector.extract_strided_slice %301 {offsets = [2, 0, 0], sizes = [1, 8, 8], strides = [1, 1, 1]} : vector<4x8x8xf32> to vector<1x8x8xf32>
    %307 = vector.shape_cast %306 : vector<1x8x8xf32> to vector<8x8xf32>
    %308 = vector.extract_strided_slice %301 {offsets = [3, 0, 0], sizes = [1, 8, 8], strides = [1, 1, 1]} : vector<4x8x8xf32> to vector<1x8x8xf32>
    %309 = vector.shape_cast %308 : vector<1x8x8xf32> to vector<8x8xf32>
    %310 = tpu.concatenate %303, %305, %307, %309 in 1 : vector<8x8xf32>, vector<8x8xf32>, vector<8x8xf32>, vector<8x8xf32> -> vector<8x32xf32>
    %311 = tpu.concatenate %268, %310 in 0 : vector<8x32xf32>, vector<8x32xf32> -> vector<16x32xf32>
    %c1_76 = arith.constant 1 : index
    %c0_77 = arith.constant 0 : index
    %c0_78 = arith.constant 0 : index
    %312 = vector.load %arg6[%c1_76, %c0_77, %c0_78] : memref<2x32x32xf32, #tpu.memory_space<vmem>>, vector<1x32x32xf32>
    %313 = vector.shape_cast %312 : vector<1x32x32xf32> to vector<32x32xf32>
    %cst_79 = arith.constant dense<0.000000e+00> : vector<16x32xf32>
    %314 = tpu.matmul %311, %313, %cst_79 {dimension_numbers = #tpu.dot_dimension_numbers<[1], [0], [0], [1], [0, 0, 1, 1], [], []>} : vector<16x32xf32>, vector<32x32xf32>, vector<16x32xf32> -> vector<16x32xf32>
    %315 = arith.addf %194, %314 : vector<16x32xf32>
    %cst_80 = arith.constant dense<0.000000e+00> : vector<16xf32>
    %316 = vector.multi_reduction <add>, %315, %cst_80 [1] : vector<16x32xf32> to vector<16xf32>
    %317 = vector.shape_cast %316 : vector<16xf32> to vector<16x1xf32>
    %cst_81 = arith.constant 3.200000e+01 : f32
    %318 = vector.broadcast %cst_81 : f32 to vector<16x1xf32>
    %319 = arith.divf %317, %318 : vector<16x1xf32>
    %320 = vector.broadcast %319 : vector<16x1xf32> to vector<16x32xf32>
    %321 = arith.subf %315, %320 : vector<16x32xf32>
    %322 = arith.mulf %321, %321 : vector<16x32xf32>
    %cst_82 = arith.constant dense<0.000000e+00> : vector<16xf32>
    %323 = vector.multi_reduction <add>, %322, %cst_82 [1] : vector<16x32xf32> to vector<16xf32>
    %324 = vector.shape_cast %323 : vector<16xf32> to vector<16x1xf32>
    %cst_83 = arith.constant 3.200000e+01 : f32
    %325 = vector.broadcast %cst_83 : f32 to vector<16x1xf32>
    %326 = arith.divf %324, %325 : vector<16x1xf32>
    %327 = vector.broadcast %319 : vector<16x1xf32> to vector<16x32xf32>
    %328 = arith.subf %315, %327 : vector<16x32xf32>
    %cst_84 = arith.constant 9.99999996E-13 : f32
    %329 = vector.broadcast %cst_84 : f32 to vector<16x1xf32>
    %330 = arith.addf %326, %329 : vector<16x1xf32>
    %331 = math.rsqrt %330 : vector<16x1xf32>
    %332 = vector.broadcast %331 : vector<16x1xf32> to vector<16x32xf32>
    %333 = arith.mulf %328, %332 : vector<16x32xf32>
    %334 = vector.broadcast %199 : vector<1x32xf32> to vector<16x32xf32>
    %335 = arith.mulf %333, %334 : vector<16x32xf32>
    %336 = vector.broadcast %200 : vector<1x32xf32> to vector<16x32xf32>
    %337 = arith.addf %335, %336 : vector<16x32xf32>
    %c1_85 = arith.constant 1 : index
    %c0_86 = arith.constant 0 : index
    %c0_87 = arith.constant 0 : index
    %338 = vector.load %arg7[%c1_85, %c0_86, %c0_87] : memref<2x32x64xf32, #tpu.memory_space<vmem>>, vector<1x32x64xf32>
    %339 = vector.shape_cast %338 : vector<1x32x64xf32> to vector<32x64xf32>
    %cst_88 = arith.constant dense<0.000000e+00> : vector<16x64xf32>
    %340 = tpu.matmul %337, %339, %cst_88 {dimension_numbers = #tpu.dot_dimension_numbers<[1], [0], [0], [1], [0, 0, 1, 1], [], []>} : vector<16x32xf32>, vector<32x64xf32>, vector<16x64xf32> -> vector<16x64xf32>
    %341 = vector.broadcast %201 : vector<1x64xf32> to vector<16x64xf32>
    %342 = arith.addf %340, %341 : vector<16x64xf32>
    %343 = arith.mulf %342, %342 : vector<16x64xf32>
    %344 = arith.mulf %342, %343 : vector<16x64xf32>
    %cst_89 = arith.constant 4.471500e-02 : f32
    %345 = vector.broadcast %cst_89 : f32 to vector<16x64xf32>
    %346 = arith.mulf %345, %344 : vector<16x64xf32>
    %347 = arith.addf %342, %346 : vector<16x64xf32>
    %cst_90 = arith.constant 0.797884583 : f32
    %348 = vector.broadcast %cst_90 : f32 to vector<16x64xf32>
    %349 = arith.mulf %348, %347 : vector<16x64xf32>
    %350 = math.tanh %349 : vector<16x64xf32>
    %cst_91 = arith.constant 1.000000e+00 : f32
    %351 = vector.broadcast %cst_91 : f32 to vector<16x64xf32>
    %352 = arith.addf %351, %350 : vector<16x64xf32>
    %cst_92 = arith.constant 5.000000e-01 : f32
    %353 = vector.broadcast %cst_92 : f32 to vector<16x64xf32>
    %354 = arith.mulf %353, %352 : vector<16x64xf32>
    %355 = arith.mulf %342, %354 : vector<16x64xf32>
    %c1_93 = arith.constant 1 : index
    %c0_94 = arith.constant 0 : index
    %c0_95 = arith.constant 0 : index
    %356 = vector.load %arg8[%c1_93, %c0_94, %c0_95] : memref<2x64x32xf32, #tpu.memory_space<vmem>>, vector<1x64x32xf32>
    %357 = vector.shape_cast %356 : vector<1x64x32xf32> to vector<64x32xf32>
    %cst_96 = arith.constant dense<0.000000e+00> : vector<16x32xf32>
    %358 = tpu.matmul %355, %357, %cst_96 {dimension_numbers = #tpu.dot_dimension_numbers<[1], [0], [0], [1], [0, 0, 1, 1], [], []>} : vector<16x64xf32>, vector<64x32xf32>, vector<16x32xf32> -> vector<16x32xf32>
    %359 = vector.broadcast %202 : vector<1x32xf32> to vector<16x32xf32>
    %360 = arith.addf %358, %359 : vector<16x32xf32>
    %361 = arith.addf %337, %360 : vector<16x32xf32>
    %cst_97 = arith.constant dense<0.000000e+00> : vector<16xf32>
    %362 = vector.multi_reduction <add>, %361, %cst_97 [1] : vector<16x32xf32> to vector<16xf32>
    %363 = vector.shape_cast %362 : vector<16xf32> to vector<16x1xf32>
    %cst_98 = arith.constant 3.200000e+01 : f32
    %364 = vector.broadcast %cst_98 : f32 to vector<16x1xf32>
    %365 = arith.divf %363, %364 : vector<16x1xf32>
    %366 = vector.broadcast %365 : vector<16x1xf32> to vector<16x32xf32>
    %367 = arith.subf %361, %366 : vector<16x32xf32>
    %368 = arith.mulf %367, %367 : vector<16x32xf32>
    %cst_99 = arith.constant dense<0.000000e+00> : vector<16xf32>
    %369 = vector.multi_reduction <add>, %368, %cst_99 [1] : vector<16x32xf32> to vector<16xf32>
    %370 = vector.shape_cast %369 : vector<16xf32> to vector<16x1xf32>
    %cst_100 = arith.constant 3.200000e+01 : f32
    %371 = vector.broadcast %cst_100 : f32 to vector<16x1xf32>
    %372 = arith.divf %370, %371 : vector<16x1xf32>
    %373 = vector.broadcast %365 : vector<16x1xf32> to vector<16x32xf32>
    %374 = arith.subf %361, %373 : vector<16x32xf32>
    %cst_101 = arith.constant 9.99999996E-13 : f32
    %375 = vector.broadcast %cst_101 : f32 to vector<16x1xf32>
    %376 = arith.addf %372, %375 : vector<16x1xf32>
    %377 = math.rsqrt %376 : vector<16x1xf32>
    %378 = vector.broadcast %377 : vector<16x1xf32> to vector<16x32xf32>
    %379 = arith.mulf %374, %378 : vector<16x32xf32>
    %380 = vector.broadcast %203 : vector<1x32xf32> to vector<16x32xf32>
    %381 = arith.mulf %379, %380 : vector<16x32xf32>
    %382 = vector.broadcast %204 : vector<1x32xf32> to vector<16x32xf32>
    %383 = arith.addf %381, %382 : vector<16x32xf32>
    %c0_102 = arith.constant 0 : index
    %c0_103 = arith.constant 0 : index
    %384 = vector.load %arg3[%c0_102, %c0_103] : memref<16x1xf32, #tpu.memory_space<vmem>>, vector<16x1xf32>
    %385 = vector.broadcast %384 : vector<16x1xf32> to vector<16x32xf32>
    %386 = arith.mulf %383, %385 : vector<16x32xf32>
    %c0_104 = arith.constant 0 : index
    %c0_105 = arith.constant 0 : index
    %387 = vector.load %arg10[%c0_104, %c0_105] : memref<16x32xf32, #tpu.memory_space<vmem>>, vector<16x32xf32>
    tpu.vector_store %arg10[%c0_104, %c0_105], %386 {strides = array<i32>} : memref<16x32xf32, #tpu.memory_space<vmem>>, vector<16x32xf32>,
    return
  }
  func.func @transform_0(%arg0: i32) -> (i32, i32) {
    %c0_i32 = arith.constant 0 : i32
    %c0_i32_0 = arith.constant 0 : i32
    return %arg0, %c0_i32 : i32, i32
  }
  func.func @transform_1(%arg0: i32) -> (i32, i32, i32) {
    %c0_i32 = arith.constant 0 : i32
    %c0_i32_0 = arith.constant 0 : i32
    %c0_i32_1 = arith.constant 0 : i32
    return %arg0, %c0_i32, %c0_i32_0 : i32, i32, i32
  }
  func.func @transform_2(%arg0: i32) -> (i32, i32) {
    %c0_i32 = arith.constant 0 : i32
    %c0_i32_0 = arith.constant 0 : i32
    return %arg0, %c0_i32 : i32, i32
  }
  func.func @transform_3(%arg0: i32) -> (i32, i32, i32, i32) {
    %c0_i32 = arith.constant 0 : i32
    %c0_i32_0 = arith.constant 0 : i32
    %c0_i32_1 = arith.constant 0 : i32
    %c0_i32_2 = arith.constant 0 : i32
    %c0_i32_3 = arith.constant 0 : i32
    return %c0_i32, %c0_i32_0, %c0_i32_1, %c0_i32_2 : i32, i32, i32, i32
  }
  func.func @transform_4(%arg0: i32) -> (i32, i32, i32) {
    %c0_i32 = arith.constant 0 : i32
    %c0_i32_0 = arith.constant 0 : i32
    %c0_i32_1 = arith.constant 0 : i32
    %c0_i32_2 = arith.constant 0 : i32
    return %c0_i32, %c0_i32_0, %c0_i32_1 : i32, i32, i32
  }
  func.func @transform_5(%arg0: i32) -> (i32, i32, i32) {
    %c0_i32 = arith.constant 0 : i32
    %c0_i32_0 = arith.constant 0 : i32
    %c0_i32_1 = arith.constant 0 : i32
    %c0_i32_2 = arith.constant 0 : i32
    return %c0_i32, %c0_i32_0, %c0_i32_1 : i32, i32, i32
  }
  func.func @transform_6(%arg0: i32) -> (i32, i32, i32) {
    %c0_i32 = arith.constant 0 : i32
    %c0_i32_0 = arith.constant 0 : i32
    %c0_i32_1 = arith.constant 0 : i32
    %c0_i32_2 = arith.constant 0 : i32
    return %c0_i32, %c0_i32_0, %c0_i32_1 : i32, i32, i32
  }
  func.func @transform_7(%arg0: i32) -> (i32, i32, i32) {
    %c0_i32 = arith.constant 0 : i32
    %c0_i32_0 = arith.constant 0 : i32
    %c0_i32_1 = arith.constant 0 : i32
    %c0_i32_2 = arith.constant 0 : i32
    return %c0_i32, %c0_i32_0, %c0_i32_1 : i32, i32, i32
  }
  func.func @transform_8(%arg0: i32) -> (i32, i32, i32) {
    %c0_i32 = arith.constant 0 : i32
    %c0_i32_0 = arith.constant 0 : i32
    %c0_i32_1 = arith.constant 0 : i32
    %c0_i32_2 = arith.constant 0 : i32
    return %c0_i32, %c0_i32_0, %c0_i32_1 : i32, i32, i32
  }
  func.func @transform_9(%arg0: i32) -> (i32, i32) {
    %c0_i32 = arith.constant 0 : i32
    %c0_i32_0 = arith.constant 0 : i32
    return %arg0, %c0_i32 : i32, i32
  }
}

</mosaic_0001>

<llo_original>
// kernel: encoder_xlnet_forward.1
$region0: #{encoder_xlnet_forward.1}
  #allocation0 [shape = 'u32[]', space=smem, size = 0x4, offset = 0x4, fixed_abs, tag = 'smem constant byte address 0x4 - core index']
  #allocation1 [shape = 'u32[144,128]{1,0:T(1,128)}', space=vmem, size = 0x12000, scoped, tag = 'internal scratch']
  %s0 = inlined_call_operand.vmem [shape: f32[16,32], index: 0, kind: input, shape index: {}]
  %s1 = inlined_call_operand.vmem [shape: f32[2,1,8], index: 1, kind: input, shape index: {}]
  %s2 = inlined_call_operand.vmem [shape: f32[16,1], index: 2, kind: input, shape index: {}]
  %s3 = inlined_call_operand.vmem [shape: f32[2,4,16,8], index: 3, kind: input, shape index: {}]
  %s4 = inlined_call_operand.vmem [shape: f32[2,32,96], index: 4, kind: input, shape index: {}]
  %s5 = inlined_call_operand.vmem [shape: f32[2,32,32], index: 5, kind: input, shape index: {}]
  %s6 = inlined_call_operand.vmem [shape: f32[2,32,64], index: 6, kind: input, shape index: {}]
  %s7 = inlined_call_operand.vmem [shape: f32[2,64,32], index: 7, kind: input, shape index: {}]
  %s8 = inlined_call_operand.vmem [shape: f32[2,8,64], index: 8, kind: input, shape index: {}]
  %s9 = inlined_call_operand.hbm [shape: f32[16,32], index: 9, kind: output, shape index: {}]
  %s10 = sld [smem:[#allocation0]]
  $region46: #{encoder_xlnet_forward.1} parent=0
    _
  %s12 = ssub.s32 1, %s10
  %s13 = scalar_select 0, %s12, %s10
  $region1: #{encoder_xlnet_forward.1} parent=0
    #allocation2 [shape = 'u8[8192]{0}', space=vmem, size = 0x2000, scoped, tag = 'output window, operand 0, single buffered']
    #allocation3 [shape = 's32[1]{0}', space=sflag, size = 0x4, scoped, tag = 'scoped memory for encoder_xlnet_forward.1']
    %14 = vsyncpa [#allocation3], 0
    // Predicated region
    $region2: #{encoder_xlnet_forward.1} parent=1 // pred_check
      _
    $region3: #{encoder_xlnet_forward.1} parent=1 // pred_check_branch
      %16 = sbr.rel (0) target = $region5
    $region4: #{encoder_xlnet_forward.1} parent=1 // pred_region
      _
    $region5: #{encoder_xlnet_forward.1} parent=1 // pred_fallthru
      _
    // Predicated region
    $region6: #{encoder_xlnet_forward.1} parent=1 // pred_check
      _
    $region7: #{encoder_xlnet_forward.1} parent=1 // pred_check_branch
      %18 = sbr.rel (0) target = $region9
    $region8: #{encoder_xlnet_forward.1} parent=1 // pred_region
      _
    $region9: #{encoder_xlnet_forward.1} parent=1 // pred_fallthru
      _
    // Predicated region
    $region10: #{encoder_xlnet_forward.1} parent=1 // pred_check
      _
    $region11: #{encoder_xlnet_forward.1} parent=1 // pred_check_branch
      %20 = sbr.rel (0) target = $region13
    $region12: #{encoder_xlnet_forward.1} parent=1 // pred_region
      _
    $region13: #{encoder_xlnet_forward.1} parent=1 // pred_fallthru
      _
    // Predicated region
    $region14: #{encoder_xlnet_forward.1} parent=1 // pred_check
      _
    $region15: #{encoder_xlnet_forward.1} parent=1 // pred_check_branch
      %22 = sbr.rel (0) target = $region17
    $region16: #{encoder_xlnet_forward.1} parent=1 // pred_region
      _
    $region17: #{encoder_xlnet_forward.1} parent=1 // pred_fallthru
      _
    // Predicated region
    $region18: #{encoder_xlnet_forward.1} parent=1 // pred_check
      _
    $region19: #{encoder_xlnet_forward.1} parent=1 // pred_check_branch
      %24 = sbr.rel (0) target = $region21
    $region20: #{encoder_xlnet_forward.1} parent=1 // pred_region
      _
    $region21: #{encoder_xlnet_forward.1} parent=1 // pred_fallthru
      _
    // Predicated region
    $region22: #{encoder_xlnet_forward.1} parent=1 // pred_check
      _
    $region23: #{encoder_xlnet_forward.1} parent=1 // pred_check_branch
      %26 = sbr.rel (0) target = $region25
    $region24: #{encoder_xlnet_forward.1} parent=1 // pred_region
      _
    $region25: #{encoder_xlnet_forward.1} parent=1 // pred_fallthru
      _
    // Predicated region
    $region26: #{encoder_xlnet_forward.1} parent=1 // pred_check
      _
    $region27: #{encoder_xlnet_forward.1} parent=1 // pred_check_branch
      %28 = sbr.rel (0) target = $region29
    $region28: #{encoder_xlnet_forward.1} parent=1 // pred_region
      _
    $region29: #{encoder_xlnet_forward.1} parent=1 // pred_fallthru
      _
    // Predicated region
    $region30: #{encoder_xlnet_forward.1} parent=1 // pred_check
      _
    $region31: #{encoder_xlnet_forward.1} parent=1 // pred_check_branch
      %30 = sbr.rel (0) target = $region33
    $region32: #{encoder_xlnet_forward.1} parent=1 // pred_region
      _
    $region33: #{encoder_xlnet_forward.1} parent=1 // pred_fallthru
      _
    // Predicated region
    $region34: #{encoder_xlnet_forward.1} parent=1 // pred_check
      _
    $region35: #{encoder_xlnet_forward.1} parent=1 // pred_check_branch
      %32 = sbr.rel (0) target = $region37
    $region36: #{encoder_xlnet_forward.1} parent=1 // pred_region
      _
    $region37: #{encoder_xlnet_forward.1} parent=1 // pred_fallthru
      _
    %v33 = vld [vmem:[%s0] sm:$0xff]
    %v34 = vld [vmem:[%s0 + $0x8] sm:$0xff]
    %v35 = vld [vmem:[%s1] sm:$0x1]
    %v36 = vld [vmem:[%s1 + $0x1] sm:$0x1]
    %v37 = vsub.f32 %v35, 1.0
    %v38 = vsub.f32 %v36, 1.0
    %v39 = vmul.f32 %v37, 1e+30
    %v40 = vmul.f32 %v38, 1e+30
    %v41 = vld [vmem:[%s8] sm:$0xff]
    %v42 = vld [vmem:[%s3] sm:$0xff]
    %v43 = vld [vmem:[%s3 + $0x8] sm:$0xff]
    %v44 = vld [vmem:[%s3 + $0x10] sm:$0xff]
    %v45 = vld [vmem:[%s3 + $0x18] sm:$0xff]
    %v46 = vld [vmem:[%s3 + $0x20] sm:$0xff]
    %v47 = vld [vmem:[%s3 + $0x28] sm:$0xff]
    %v48 = vld [vmem:[%s3 + $0x30] sm:$0xff]
    %v49 = vld [vmem:[%s3 + $0x38] sm:$0xff]
    %v50 = vld [vmem:[%s4] sm:$0xff]
    %v51 = vld [vmem:[%s4 + $0x8] sm:$0xff]
    %v52 = vld [vmem:[%s4 + $0x10] sm:$0xff]
    %v53 = vld [vmem:[%s4 + $0x18] sm:$0xff]
    %vm54 = vcmask 261120
    %v56 = vsel %vm54, %v33, 0
    %v59 = vsel %vm54, %v34, 0
    %61 = vmatprep.subr.mxu0 0.0
    %62 = vmatpush1.msra.mxu0 0.0
    %63 = vmatprep.subr.mxu0 0.0
    %64 = vmatpush1.msra.mxu0 0.0
    %65 = vmatprep.subr.mxu0 0.0
    %66 = vmatpush1.msra.mxu0 0.0
    %67 = vmatprep.subr.mxu0 0.0
    %68 = vmatpush1.msra.mxu0 0.0
    %69 = vmatprep.subr.mxu0 0.0
    %70 = vmatpush1.msra.mxu0 0.0
    %71 = vmatprep.subr.mxu0 0.0
    %72 = vmatpush1.msra.mxu0 0.0
    %73 = vmatprep.subr.mxu0 0.0
    %74 = vmatpush1.msra.mxu0 0.0
    %75 = vmatprep.subr.mxu0 0.0
    %76 = vmatpush1.msra.mxu0 0.0
    %77 = vmatprep.subr.mxu0 0.0
    %78 = vmatpush1.msra.mxu0 0.0
    %79 = vmatprep.subr.mxu0 0.0
    %80 = vmatpush1.msra.mxu0 0.0
    %81 = vmatprep.subr.mxu0 0.0
    %82 = vmatpush1.msra.mxu0 0.0
    %83 = vmatprep.subr.mxu0 0.0
    %84 = vmatpush1.msra.mxu0 0.0
    %85 = vmatprep.subr.mxu0 0.0
    %86 = vmatpush1.msra.mxu0 %v53
    %87 = vmatprep.subr.mxu0 0.0
    %88 = vmatpush1.msra.mxu0 %v52
    %89 = vmatprep.subr.mxu0 0.0
    %90 = vmatpush1.msra.mxu0 %v51
    %91 = vmatprep.subr.mxu0 0.0
    %92 = vmatpush1.msra.mxu0 %v50
    %93 = vmatprep.subr.mxu0 0.0
    %94 = vmatpush2.msra.mxu0 0.0
    %95 = vmatprep.subr.mxu0 0.0
    %96 = vmatpush2.msra.mxu0 0.0
    %97 = vmatprep.subr.mxu0 0.0
    %98 = vmatpush2.msra.mxu0 0.0
    %99 = vmatprep.subr.mxu0 0.0
    %100 = vmatpush2.msra.mxu0 0.0
    %101 = vmatprep.subr.mxu0 0.0
    %102 = vmatpush2.msra.mxu0 0.0
    %103 = vmatprep.subr.mxu0 0.0
    %104 = vmatpush2.msra.mxu0 0.0
    %105 = vmatprep.subr.mxu0 0.0
    %106 = vmatpush2.msra.mxu0 0.0
    %107 = vmatprep.subr.mxu0 0.0
    %108 = vmatpush2.msra.mxu0 0.0
    %109 = vmatprep.subr.mxu0 0.0
    %110 = vmatpush2.msra.mxu0 0.0
    %111 = vmatprep.subr.mxu0 0.0
    %112 = vmatpush2.msra.mxu0 0.0
    %113 = vmatprep.subr.mxu0 0.0
    %114 = vmatpush2.msra.mxu0 0.0
    %115 = vmatprep.subr.mxu0 0.0
    %116 = vmatpush2.msra.mxu0 0.0
    %117 = vmatprep.subr.mxu0 0.0
    %118 = vmatpush2.msra.mxu0 0.0
    %119 = vmatprep.subr.mxu0 0.0
    %120 = vmatpush2.msra.mxu0 0.0
    %121 = vmatprep.subr.mxu0 0.0
    %122 = vmatpush2.msra.mxu0 0.0
    %123 = vmatprep.subr.mxu0 0.0
    %124 = vmatpush2.msra.mxu0 0.0
    %125 = vmatprep.mubr.f32.mxu0 0.0
    %126 = vmatmul.mubr.f32.gmra.mxu0 %v56
    %v127 = vpop.f32.mrf.mxu0
    %v128 = vadd.f32 0.0, %v127
    %v129 = vpop.f32.mrf.mxu0
    %130 = vmatprep.mubr.f32.mxu0 0.0
    %131 = vmatmul.mubr.f32.gmra.mxu0 %v59
    %v132 = vpop.f32.mrf.mxu0
    %v133 = vadd.f32 0.0, %v132
    %v134 = vpop.f32.mrf.mxu0
    %135 = vdwg.mxu0
    %v136 = vlaneseq
    %v137 = vshrl.u32 %v136, 7
    %v138 = vsub.s32 0, %v137
    %v139 = vrot.slane %v41, %v138
    %v140 = vadd.f32 %v128, %v139
    %v141 = vadd.f32 %v133, %v139
    %v142 = vlaneseq
    %v143 = vshrl.u32 %v142, 7
    %v144 = vsub.s32 1, %v143
    %v145 = vrot.slane %v41, %v144
    %v146 = vadd.f32 %v128, %v145
    %v147 = vadd.f32 %v133, %v145
    %150 = vrot.lane.b32.xlu0 %v128, 96
    %v151 = vpop.permute.xlu0 %150
    %152 = vrot.lane.b32.xlu0 %v133, 96
    %v153 = vpop.permute.xlu0 %152
    %154 = vrot.lane.b32.xlu0 %v128, 64
    %v155 = vpop.permute.xlu0 %154
    %156 = vrot.lane.b32.xlu0 %v133, 64
    %v157 = vpop.permute.xlu0 %156
    %164 = vrot.lane.b32.xlu0 %v140, 120
    %v165 = vpop.permute.xlu0 %164
    %166 = vrot.lane.b32.xlu0 %v141, 120
    %v167 = vpop.permute.xlu0 %166
    %168 = vrot.lane.b32.xlu0 %v146, 120
    %v169 = vpop.permute.xlu0 %168
    %170 = vrot.lane.b32.xlu0 %v147, 120
    %v171 = vpop.permute.xlu0 %170
    %172 = vrot.lane.b32.xlu0 %v151, 120
    %v173 = vpop.permute.xlu0 %172
    %174 = vrot.lane.b32.xlu0 %v153, 120
    %v175 = vpop.permute.xlu0 %174
    %176 = vrot.lane.b32.xlu0 %v155, 120
    %v177 = vpop.permute.xlu0 %176
    %178 = vrot.lane.b32.xlu0 %v157, 120
    %v179 = vpop.permute.xlu0 %178
    %182 = vrot.lane.b32.xlu0 %v140, 112
    %v183 = vpop.permute.xlu0 %182
    %184 = vrot.lane.b32.xlu0 %v141, 112
    %v185 = vpop.permute.xlu0 %184
    %186 = vrot.lane.b32.xlu0 %v146, 112
    %v187 = vpop.permute.xlu0 %186
    %188 = vrot.lane.b32.xlu0 %v147, 112
    %v189 = vpop.permute.xlu0 %188
    %190 = vrot.lane.b32.xlu0 %v151, 112
    %v191 = vpop.permute.xlu0 %190
    %192 = vrot.lane.b32.xlu0 %v153, 112
    %v193 = vpop.permute.xlu0 %192
    %194 = vrot.lane.b32.xlu0 %v155, 112
    %v195 = vpop.permute.xlu0 %194
    %196 = vrot.lane.b32.xlu0 %v157, 112
    %v197 = vpop.permute.xlu0 %196
    %200 = vrot.lane.b32.xlu0 %v140, 104
    %v201 = vpop.permute.xlu0 %200
    %202 = vrot.lane.b32.xlu0 %v141, 104
    %v203 = vpop.permute.xlu0 %202
    %204 = vrot.lane.b32.xlu0 %v146, 104
    %v205 = vpop.permute.xlu0 %204
    %206 = vrot.lane.b32.xlu0 %v147, 104
    %v207 = vpop.permute.xlu0 %206
    %208 = vrot.lane.b32.xlu0 %v151, 104
    %v209 = vpop.permute.xlu0 %208
    %210 = vrot.lane.b32.xlu0 %v153, 104
    %v211 = vpop.permute.xlu0 %210
    %212 = vrot.lane.b32.xlu0 %v155, 104
    %v213 = vpop.permute.xlu0 %212
    %214 = vrot.lane.b32.xlu0 %v157, 104
    %v215 = vpop.permute.xlu0 %214
    %vm218 = vcmask 64512
    %v219 = vsel %vm218, %v146, 0
    %v222 = vsel %vm218, %v42, 0
    %v225 = vsel %vm218, %v43, 0
    %227 = vmatprep.subr.mxu0 0.0
    %228 = vmatpush1.xpose.msra.mxu0 0.0
    %229 = vmatprep.subr.mxu0 0.0
    %230 = vmatpush1.xpose.msra.mxu0 0.0
    %231 = vmatprep.subr.mxu0 0.0
    %232 = vmatpush1.xpose.msra.mxu0 0.0
    %233 = vmatprep.subr.mxu0 0.0
    %234 = vmatpush1.xpose.msra.mxu0 0.0
    %235 = vmatprep.subr.mxu0 0.0
    %236 = vmatpush1.xpose.msra.mxu0 0.0
    %237 = vmatprep.subr.mxu0 0.0
    %238 = vmatpush1.xpose.msra.mxu0 0.0
    %239 = vmatprep.subr.mxu0 0.0
    %240 = vmatpush1.xpose.msra.mxu0 0.0
    %241 = vmatprep.subr.mxu0 0.0
    %242 = vmatpush1.xpose.msra.mxu0 0.0
    %243 = vmatprep.subr.mxu0 0.0
    %244 = vmatpush1.xpose.msra.mxu0 0.0
    %245 = vmatprep.subr.mxu0 0.0
    %246 = vmatpush1.xpose.msra.mxu0 0.0
    %247 = vmatprep.subr.mxu0 0.0
    %248 = vmatpush1.xpose.msra.mxu0 0.0
    %249 = vmatprep.subr.mxu0 0.0
    %250 = vmatpush1.xpose.msra.mxu0 0.0
    %251 = vmatprep.subr.mxu0 0.0
    %252 = vmatpush1.xpose.msra.mxu0 0.0
    %253 = vmatprep.subr.mxu0 0.0
    %254 = vmatpush1.xpose.msra.mxu0 0.0
    %255 = vmatprep.subr.mxu0 0.0
    %256 = vmatpush1.xpose.msra.mxu0 %v225
    %257 = vmatprep.subr.mxu0 0.0
    %258 = vmatpush1.xpose.msra.mxu0 %v222
    %259 = vmatprep.subr.mxu0 0.0
    %260 = vmatpush2.xpose.msra.mxu0 0.0
    %261 = vmatprep.subr.mxu0 0.0
    %262 = vmatpush2.xpose.msra.mxu0 0.0
    %263 = vmatprep.subr.mxu0 0.0
    %264 = vmatpush2.xpose.msra.mxu0 0.0
    %265 = vmatprep.subr.mxu0 0.0
    %266 = vmatpush2.xpose.msra.mxu0 0.0
    %267 = vmatprep.subr.mxu0 0.0
    %268 = vmatpush2.xpose.msra.mxu0 0.0
    %269 = vmatprep.subr.mxu0 0.0
    %270 = vmatpush2.xpose.msra.mxu0 0.0
    %271 = vmatprep.subr.mxu0 0.0
    %272 = vmatpush2.xpose.msra.mxu0 0.0
    %273 = vmatprep.subr.mxu0 0.0
    %274 = vmatpush2.xpose.msra.mxu0 0.0
    %275 = vmatprep.subr.mxu0 0.0
    %276 = vmatpush2.xpose.msra.mxu0 0.0
    %277 = vmatprep.subr.mxu0 0.0
    %278 = vmatpush2.xpose.msra.mxu0 0.0
    %279 = vmatprep.subr.mxu0 0.0
    %280 = vmatpush2.xpose.msra.mxu0 0.0
    %281 = vmatprep.subr.mxu0 0.0
    %282 = vmatpush2.xpose.msra.mxu0 0.0
    %283 = vmatprep.subr.mxu0 0.0
    %284 = vmatpush2.xpose.msra.mxu0 0.0
    %285 = vmatprep.subr.mxu0 0.0
    %286 = vmatpush2.xpose.msra.mxu0 0.0
    %287 = vmatprep.subr.mxu0 0.0
    %288 = vmatpush2.xpose.msra.mxu0 0.0
    %289 = vmatprep.subr.mxu0 0.0
    %290 = vmatpush2.xpose.msra.mxu0 0.0
    %291 = vmatprep.mubr.f32.mxu0 0.0
    %292 = vmatmul.mubr.f32.gmra.mxu0 %v219
    %v293 = vpop.f32.mrf.mxu0
    %v294 = vadd.f32 0.0, %v293
    %v295 = vpop.f32.mrf.mxu0
    %296 = vdwg.mxu0
    %v297 = vsel %vm218, %v169, 0
    %v300 = vsel %vm218, %v44, 0
    %v303 = vsel %vm218, %v45, 0
    %305 = vmatprep.subr.mxu0 0.0
    %306 = vmatpush1.xpose.msra.mxu0 0.0
    %307 = vmatprep.subr.mxu0 0.0
    %308 = vmatpush1.xpose.msra.mxu0 0.0
    %309 = vmatprep.subr.mxu0 0.0
    %310 = vmatpush1.xpose.msra.mxu0 0.0
    %311 = vmatprep.subr.mxu0 0.0
    %312 = vmatpush1.xpose.msra.mxu0 0.0
    %313 = vmatprep.subr.mxu0 0.0
    %314 = vmatpush1.xpose.msra.mxu0 0.0
    %315 = vmatprep.subr.mxu0 0.0
    %316 = vmatpush1.xpose.msra.mxu0 0.0
    %317 = vmatprep.subr.mxu0 0.0
    %318 = vmatpush1.xpose.msra.mxu0 0.0
    %319 = vmatprep.subr.mxu0 0.0
    %320 = vmatpush1.xpose.msra.mxu0 0.0
    %321 = vmatprep.subr.mxu0 0.0
    %322 = vmatpush1.xpose.msra.mxu0 0.0
    %323 = vmatprep.subr.mxu0 0.0
    %324 = vmatpush1.xpose.msra.mxu0 0.0
    %325 = vmatprep.subr.mxu0 0.0
    %326 = vmatpush1.xpose.msra.mxu0 0.0
    %327 = vmatprep.subr.mxu0 0.0
    %328 = vmatpush1.xpose.msra.mxu0 0.0
    %329 = vmatprep.subr.mxu0 0.0
    %330 = vmatpush1.xpose.msra.mxu0 0.0
    %331 = vmatprep.subr.mxu0 0.0
    %332 = vmatpush1.xpose.msra.mxu0 0.0
    %333 = vmatprep.subr.mxu0 0.0
    %334 = vmatpush1.xpose.msra.mxu0 %v303
    %335 = vmatprep.subr.mxu0 0.0
    %336 = vmatpush1.xpose.msra.mxu0 %v300
    %337 = vmatprep.subr.mxu0 0.0
    %338 = vmatpush2.xpose.msra.mxu0 0.0
    %339 = vmatprep.subr.mxu0 0.0
    %340 = vmatpush2.xpose.msra.mxu0 0.0
    %341 = vmatprep.subr.mxu0 0.0
    %342 = vmatpush2.xpose.msra.mxu0 0.0
    %343 = vmatprep.subr.mxu0 0.0
    %344 = vmatpush2.xpose.msra.mxu0 0.0
    %345 = vmatprep.subr.mxu0 0.0
    %346 = vmatpush2.xpose.msra.mxu0 0.0
    %347 = vmatprep.subr.mxu0 0.0
    %348 = vmatpush2.xpose.msra.mxu0 0.0
    %349 = vmatprep.subr.mxu0 0.0
    %350 = vmatpush2.xpose.msra.mxu0 0.0
    %351 = vmatprep.subr.mxu0 0.0
    %352 = vmatpush2.xpose.msra.mxu0 0.0
    %353 = vmatprep.subr.mxu0 0.0
    %354 = vmatpush2.xpose.msra.mxu0 0.0
    %355 = vmatprep.subr.mxu0 0.0
    %356 = vmatpush2.xpose.msra.mxu0 0.0
    %357 = vmatprep.subr.mxu0 0.0
    %358 = vmatpush2.xpose.msra.mxu0 0.0
    %359 = vmatprep.subr.mxu0 0.0
    %360 = vmatpush2.xpose.msra.mxu0 0.0
    %361 = vmatprep.subr.mxu0 0.0
    %362 = vmatpush2.xpose.msra.mxu0 0.0
    %363 = vmatprep.subr.mxu0 0.0
    %364 = vmatpush2.xpose.msra.mxu0 0.0
    %365 = vmatprep.subr.mxu0 0.0
    %366 = vmatpush2.xpose.msra.mxu0 0.0
    %367 = vmatprep.subr.mxu0 0.0
    %368 = vmatpush2.xpose.msra.mxu0 0.0
    %369 = vmatprep.mubr.f32.mxu0 0.0
    %370 = vmatmul.mubr.f32.gmra.mxu0 %v297
    %v371 = vpop.f32.mrf.mxu0
    %v372 = vadd.f32 0.0, %v371
    %v373 = vpop.f32.mrf.mxu0
    %374 = vdwg.mxu0
    %v375 = vsel %vm218, %v187, 0
    %v378 = vsel %vm218, %v46, 0
    %v381 = vsel %vm218, %v47, 0
    %383 = vmatprep.subr.mxu0 0.0
    %384 = vmatpush1.xpose.msra.mxu0 0.0
    %385 = vmatprep.subr.mxu0 0.0
    %386 = vmatpush1.xpose.msra.mxu0 0.0
    %387 = vmatprep.subr.mxu0 0.0
    %388 = vmatpush1.xpose.msra.mxu0 0.0
    %389 = vmatprep.subr.mxu0 0.0
    %390 = vmatpush1.xpose.msra.mxu0 0.0
    %391 = vmatprep.subr.mxu0 0.0
    %392 = vmatpush1.xpose.msra.mxu0 0.0
    %393 = vmatprep.subr.mxu0 0.0
    %394 = vmatpush1.xpose.msra.mxu0 0.0
    %395 = vmatprep.subr.mxu0 0.0
    %396 = vmatpush1.xpose.msra.mxu0 0.0
    %397 = vmatprep.subr.mxu0 0.0
    %398 = vmatpush1.xpose.msra.mxu0 0.0
    %399 = vmatprep.subr.mxu0 0.0
    %400 = vmatpush1.xpose.msra.mxu0 0.0
    %401 = vmatprep.subr.mxu0 0.0
    %402 = vmatpush1.xpose.msra.mxu0 0.0
    %403 = vmatprep.subr.mxu0 0.0
    %404 = vmatpush1.xpose.msra.mxu0 0.0
    %405 = vmatprep.subr.mxu0 0.0
    %406 = vmatpush1.xpose.msra.mxu0 0.0
    %407 = vmatprep.subr.mxu0 0.0
    %408 = vmatpush1.xpose.msra.mxu0 0.0
    %409 = vmatprep.subr.mxu0 0.0
    %410 = vmatpush1.xpose.msra.mxu0 0.0
    %411 = vmatprep.subr.mxu0 0.0
    %412 = vmatpush1.xpose.msra.mxu0 %v381
    %413 = vmatprep.subr.mxu0 0.0
    %414 = vmatpush1.xpose.msra.mxu0 %v378
    %415 = vmatprep.subr.mxu0 0.0
    %416 = vmatpush2.xpose.msra.mxu0 0.0
    %417 = vmatprep.subr.mxu0 0.0
    %418 = vmatpush2.xpose.msra.mxu0 0.0
    %419 = vmatprep.subr.mxu0 0.0
    %420 = vmatpush2.xpose.msra.mxu0 0.0
    %421 = vmatprep.subr.mxu0 0.0
    %422 = vmatpush2.xpose.msra.mxu0 0.0
    %423 = vmatprep.subr.mxu0 0.0
    %424 = vmatpush2.xpose.msra.mxu0 0.0
    %425 = vmatprep.subr.mxu0 0.0
    %426 = vmatpush2.xpose.msra.mxu0 0.0
    %427 = vmatprep.subr.mxu0 0.0
    %428 = vmatpush2.xpose.msra.mxu0 0.0
    %429 = vmatprep.subr.mxu0 0.0
    %430 = vmatpush2.xpose.msra.mxu0 0.0
    %431 = vmatprep.subr.mxu0 0.0
    %432 = vmatpush2.xpose.msra.mxu0 0.0
    %433 = vmatprep.subr.mxu0 0.0
    %434 = vmatpush2.xpose.msra.mxu0 0.0
    %435 = vmatprep.subr.mxu0 0.0
    %436 = vmatpush2.xpose.msra.mxu0 0.0
    %437 = vmatprep.subr.mxu0 0.0
    %438 = vmatpush2.xpose.msra.mxu0 0.0
    %439 = vmatprep.subr.mxu0 0.0
    %440 = vmatpush2.xpose.msra.mxu0 0.0
    %441 = vmatprep.subr.mxu0 0.0
    %442 = vmatpush2.xpose.msra.mxu0 0.0
    %443 = vmatprep.subr.mxu0 0.0
    %444 = vmatpush2.xpose.msra.mxu0 0.0
    %445 = vmatprep.subr.mxu0 0.0
    %446 = vmatpush2.xpose.msra.mxu0 0.0
    %447 = vmatprep.mubr.f32.mxu0 0.0
    %448 = vmatmul.mubr.f32.gmra.mxu0 %v375
    %v449 = vpop.f32.mrf.mxu0
    %v450 = vadd.f32 0.0, %v449
    %v451 = vpop.f32.mrf.mxu0
    %452 = vdwg.mxu0
    %v453 = vsel %vm218, %v205, 0
    %v456 = vsel %vm218, %v48, 0
    %v459 = vsel %vm218, %v49, 0
    %461 = vmatprep.subr.mxu0 0.0
    %462 = vmatpush1.xpose.msra.mxu0 0.0
    %463 = vmatprep.subr.mxu0 0.0
    %464 = vmatpush1.xpose.msra.mxu0 0.0
    %465 = vmatprep.subr.mxu0 0.0
    %466 = vmatpush1.xpose.msra.mxu0 0.0
    %467 = vmatprep.subr.mxu0 0.0
    %468 = vmatpush1.xpose.msra.mxu0 0.0
    %469 = vmatprep.subr.mxu0 0.0
    %470 = vmatpush1.xpose.msra.mxu0 0.0
    %471 = vmatprep.subr.mxu0 0.0
    %472 = vmatpush1.xpose.msra.mxu0 0.0
    %473 = vmatprep.subr.mxu0 0.0
    %474 = vmatpush1.xpose.msra.mxu0 0.0
    %475 = vmatprep.subr.mxu0 0.0
    %476 = vmatpush1.xpose.msra.mxu0 0.0
    %477 = vmatprep.subr.mxu0 0.0
    %478 = vmatpush1.xpose.msra.mxu0 0.0
    %479 = vmatprep.subr.mxu0 0.0
    %480 = vmatpush1.xpose.msra.mxu0 0.0
    %481 = vmatprep.subr.mxu0 0.0
    %482 = vmatpush1.xpose.msra.mxu0 0.0
    %483 = vmatprep.subr.mxu0 0.0
    %484 = vmatpush1.xpose.msra.mxu0 0.0
    %485 = vmatprep.subr.mxu0 0.0
    %486 = vmatpush1.xpose.msra.mxu0 0.0
    %487 = vmatprep.subr.mxu0 0.0
    %488 = vmatpush1.xpose.msra.mxu0 0.0
    %489 = vmatprep.subr.mxu0 0.0
    %490 = vmatpush1.xpose.msra.mxu0 %v459
    %491 = vmatprep.subr.mxu0 0.0
    %492 = vmatpush1.xpose.msra.mxu0 %v456
    %493 = vmatprep.subr.mxu0 0.0
    %494 = vmatpush2.xpose.msra.mxu0 0.0
    %495 = vmatprep.subr.mxu0 0.0
    %496 = vmatpush2.xpose.msra.mxu0 0.0
    %497 = vmatprep.subr.mxu0 0.0
    %498 = vmatpush2.xpose.msra.mxu0 0.0
    %499 = vmatprep.subr.mxu0 0.0
    %500 = vmatpush2.xpose.msra.mxu0 0.0
    %501 = vmatprep.subr.mxu0 0.0
    %502 = vmatpush2.xpose.msra.mxu0 0.0
    %503 = vmatprep.subr.mxu0 0.0
    %504 = vmatpush2.xpose.msra.mxu0 0.0
    %505 = vmatprep.subr.mxu0 0.0
    %506 = vmatpush2.xpose.msra.mxu0 0.0
    %507 = vmatprep.subr.mxu0 0.0
    %508 = vmatpush2.xpose.msra.mxu0 0.0
    %509 = vmatprep.subr.mxu0 0.0
    %510 = vmatpush2.xpose.msra.mxu0 0.0
    %511 = vmatprep.subr.mxu0 0.0
    %512 = vmatpush2.xpose.msra.mxu0 0.0
    %513 = vmatprep.subr.mxu0 0.0
    %514 = vmatpush2.xpose.msra.mxu0 0.0
    %515 = vmatprep.subr.mxu0 0.0
    %516 = vmatpush2.xpose.msra.mxu0 0.0
    %517 = vmatprep.subr.mxu0 0.0
    %518 = vmatpush2.xpose.msra.mxu0 0.0
    %519 = vmatprep.subr.mxu0 0.0
    %520 = vmatpush2.xpose.msra.mxu0 0.0
    %521 = vmatprep.subr.mxu0 0.0
    %522 = vmatpush2.xpose.msra.mxu0 0.0
    %523 = vmatprep.subr.mxu0 0.0
    %524 = vmatpush2.xpose.msra.mxu0 0.0
    %525 = vmatprep.mubr.f32.mxu0 0.0
    %526 = vmatmul.mubr.f32.gmra.mxu0 %v453
    %v527 = vpop.f32.mrf.mxu0
    %v528 = vadd.f32 0.0, %v527
    %v529 = vpop.f32.mrf.mxu0
    %530 = vdwg.mxu0
    %535 = vrot.lane.b32.xlu0 %v294, 1
    %v536 = vpop.permute.xlu0 %535
    %537 = vrot.lane.b32.xlu0 %v372, 1
    %v538 = vpop.permute.xlu0 %537
    %539 = vrot.lane.b32.xlu0 %v450, 1
    %v540 = vpop.permute.xlu0 %539
    %541 = vrot.lane.b32.xlu0 %v528, 1
    %v542 = vpop.permute.xlu0 %541
    %547 = vrot.lane.b32.xlu0 %v294, 2
    %v548 = vpop.permute.xlu0 %547
    %549 = vrot.lane.b32.xlu0 %v372, 2
    %v550 = vpop.permute.xlu0 %549
    %551 = vrot.lane.b32.xlu0 %v450, 2
    %v552 = vpop.permute.xlu0 %551
    %553 = vrot.lane.b32.xlu0 %v528, 2
    %v554 = vpop.permute.xlu0 %553
    %559 = vrot.lane.b32.xlu0 %v294, 3
    %v560 = vpop.permute.xlu0 %559
    %561 = vrot.lane.b32.xlu0 %v372, 3
    %v562 = vpop.permute.xlu0 %561
    %563 = vrot.lane.b32.xlu0 %v450, 3
    %v564 = vpop.permute.xlu0 %563
    %565 = vrot.lane.b32.xlu0 %v528, 3
    %v566 = vpop.permute.xlu0 %565
    %571 = vrot.lane.b32.xlu0 %v294, 4
    %v572 = vpop.permute.xlu0 %571
    %573 = vrot.lane.b32.xlu0 %v372, 4
    %v574 = vpop.permute.xlu0 %573
    %575 = vrot.lane.b32.xlu0 %v450, 4
    %v576 = vpop.permute.xlu0 %575
    %577 = vrot.lane.b32.xlu0 %v528, 4
    %v578 = vpop.permute.xlu0 %577
    %583 = vrot.lane.b32.xlu0 %v294, 5
    %v584 = vpop.permute.xlu0 %583
    %585 = vrot.lane.b32.xlu0 %v372, 5
    %v586 = vpop.permute.xlu0 %585
    %587 = vrot.lane.b32.xlu0 %v450, 5
    %v588 = vpop.permute.xlu0 %587
    %589 = vrot.lane.b32.xlu0 %v528, 5
    %v590 = vpop.permute.xlu0 %589
    %595 = vrot.lane.b32.xlu0 %v294, 6
    %v596 = vpop.permute.xlu0 %595
    %597 = vrot.lane.b32.xlu0 %v372, 6
    %v598 = vpop.permute.xlu0 %597
    %599 = vrot.lane.b32.xlu0 %v450, 6
    %v600 = vpop.permute.xlu0 %599
    %601 = vrot.lane.b32.xlu0 %v528, 6
    %v602 = vpop.permute.xlu0 %601
    %607 = vrot.lane.b32.xlu0 %v294, 7
    %v608 = vpop.permute.xlu0 %607
    %609 = vrot.lane.b32.xlu0 %v372, 7
    %v610 = vpop.permute.xlu0 %609
    %611 = vrot.lane.b32.xlu0 %v450, 7
    %v612 = vpop.permute.xlu0 %611
    %613 = vrot.lane.b32.xlu0 %v528, 7
    %v614 = vpop.permute.xlu0 %613
    %vm619 = vcmask 1040384
    %v620 = vsel %vm619, %v294, %v536
    %v621 = vsel %vm619, %v372, %v538
    %v622 = vsel %vm619, %v450, %v540
    %v623 = vsel %vm619, %v528, %v542
    %vm624 = vcmask 1041408
    %v625 = vsel %vm624, %v620, %v548
    %v626 = vsel %vm624, %v621, %v550
    %v627 = vsel %vm624, %v622, %v552
    %v628 = vsel %vm624, %v623, %v554
    %vm629 = vcmask 1042432
    %v630 = vsel %vm629, %v625, %v560
    %v631 = vsel %vm629, %v626, %v562
    %v632 = vsel %vm629, %v627, %v564
    %v633 = vsel %vm629, %v628, %v566
    %vm634 = vcmask 1043456
    %v635 = vsel %vm634, %v630, %v572
    %v636 = vsel %vm634, %v631, %v574
    %v637 = vsel %vm634, %v632, %v576
    %v638 = vsel %vm634, %v633, %v578
    %vm639 = vcmask 1044480
    %v640 = vsel %vm639, %v635, %v584
    %v641 = vsel %vm639, %v636, %v586
    %v642 = vsel %vm639, %v637, %v588
    %v643 = vsel %vm639, %v638, %v590
    %vm644 = vcmask 1045504
    %v645 = vsel %vm644, %v640, %v596
    %v646 = vsel %vm644, %v641, %v598
    %v647 = vsel %vm644, %v642, %v600
    %v648 = vsel %vm644, %v643, %v602
    %vm649 = vcmask 1046528
    %v650 = vsel %vm649, %v645, %v608
    %v651 = vsel %vm649, %v646, %v610
    %v652 = vsel %vm649, %v647, %v612
    %v653 = vsel %vm649, %v648, %v614
    %655 = vrot.lane.b32.xlu0 %v650, 120
    %v656 = vpop.permute.xlu0 %655
    %v658 = vsel %vm218, %v140, 0
    %v660 = vsel %vm218, %v151, 0
    %662 = vmatprep.subr.mxu0 0.0
    %663 = vmatpush1.xpose.msra.mxu0 0.0
    %664 = vmatprep.subr.mxu0 0.0
    %665 = vmatpush1.xpose.msra.mxu0 0.0
    %666 = vmatprep.subr.mxu0 0.0
    %667 = vmatpush1.xpose.msra.mxu0 0.0
    %668 = vmatprep.subr.mxu0 0.0
    %669 = vmatpush1.xpose.msra.mxu0 0.0
    %670 = vmatprep.subr.mxu0 0.0
    %671 = vmatpush1.xpose.msra.mxu0 0.0
    %672 = vmatprep.subr.mxu0 0.0
    %673 = vmatpush1.xpose.msra.mxu0 0.0
    %674 = vmatprep.subr.mxu0 0.0
    %675 = vmatpush1.xpose.msra.mxu0 0.0
    %676 = vmatprep.subr.mxu0 0.0
    %677 = vmatpush1.xpose.msra.mxu0 0.0
    %678 = vmatprep.subr.mxu0 0.0
    %679 = vmatpush1.xpose.msra.mxu0 0.0
    %680 = vmatprep.subr.mxu0 0.0
    %681 = vmatpush1.xpose.msra.mxu0 0.0
    %682 = vmatprep.subr.mxu0 0.0
    %683 = vmatpush1.xpose.msra.mxu0 0.0
    %684 = vmatprep.subr.mxu0 0.0
    %685 = vmatpush1.xpose.msra.mxu0 0.0
    %686 = vmatprep.subr.mxu0 0.0
    %687 = vmatpush1.xpose.msra.mxu0 0.0
    %688 = vmatprep.subr.mxu0 0.0
    %689 = vmatpush1.xpose.msra.mxu0 0.0
    %690 = vmatprep.subr.mxu0 0.0
    %691 = vmatpush1.xpose.msra.mxu0 0.0
    %692 = vmatprep.subr.mxu0 0.0
    %693 = vmatpush1.xpose.msra.mxu0 %v660
    %694 = vmatprep.subr.mxu0 0.0
    %695 = vmatpush2.xpose.msra.mxu0 0.0
    %696 = vmatprep.subr.mxu0 0.0
    %697 = vmatpush2.xpose.msra.mxu0 0.0
    %698 = vmatprep.subr.mxu0 0.0
    %699 = vmatpush2.xpose.msra.mxu0 0.0
    %700 = vmatprep.subr.mxu0 0.0
    %701 = vmatpush2.xpose.msra.mxu0 0.0
    %702 = vmatprep.subr.mxu0 0.0
    %703 = vmatpush2.xpose.msra.mxu0 0.0
    %704 = vmatprep.subr.mxu0 0.0
    %705 = vmatpush2.xpose.msra.mxu0 0.0
    %706 = vmatprep.subr.mxu0 0.0
    %707 = vmatpush2.xpose.msra.mxu0 0.0
    %708 = vmatprep.subr.mxu0 0.0
    %709 = vmatpush2.xpose.msra.mxu0 0.0
    %710 = vmatprep.subr.mxu0 0.0
    %711 = vmatpush2.xpose.msra.mxu0 0.0
    %712 = vmatprep.subr.mxu0 0.0
    %713 = vmatpush2.xpose.msra.mxu0 0.0
    %714 = vmatprep.subr.mxu0 0.0
    %715 = vmatpush2.xpose.msra.mxu0 0.0
    %716 = vmatprep.subr.mxu0 0.0
    %717 = vmatpush2.xpose.msra.mxu0 0.0
    %718 = vmatprep.subr.mxu0 0.0
    %719 = vmatpush2.xpose.msra.mxu0 0.0
    %720 = vmatprep.subr.mxu0 0.0
    %721 = vmatpush2.xpose.msra.mxu0 0.0
    %722 = vmatprep.subr.mxu0 0.0
    %723 = vmatpush2.xpose.msra.mxu0 0.0
    %724 = vmatprep.subr.mxu0 0.0
    %725 = vmatpush2.xpose.msra.mxu0 0.0
    %726 = vmatprep.mubr.f32.mxu0 0.0
    %727 = vmatmul.mubr.f32.gmra.mxu0 %v658
    %v728 = vpop.f32.mrf.mxu0
    %v729 = vadd.f32 %v656, %v728
    %v730 = vpop.f32.mrf.mxu0
    %731 = vdwg.mxu0
    %733 = vrot.lane.b32.xlu0 %v651, 120
    %v734 = vpop.permute.xlu0 %733
    %v736 = vsel %vm218, %v165, 0
    %v738 = vsel %vm218, %v173, 0
    %740 = vmatprep.subr.mxu0 0.0
    %741 = vmatpush1.xpose.msra.mxu0 0.0
    %742 = vmatprep.subr.mxu0 0.0
    %743 = vmatpush1.xpose.msra.mxu0 0.0
    %744 = vmatprep.subr.mxu0 0.0
    %745 = vmatpush1.xpose.msra.mxu0 0.0
    %746 = vmatprep.subr.mxu0 0.0
    %747 = vmatpush1.xpose.msra.mxu0 0.0
    %748 = vmatprep.subr.mxu0 0.0
    %749 = vmatpush1.xpose.msra.mxu0 0.0
    %750 = vmatprep.subr.mxu0 0.0
    %751 = vmatpush1.xpose.msra.mxu0 0.0
    %752 = vmatprep.subr.mxu0 0.0
    %753 = vmatpush1.xpose.msra.mxu0 0.0
    %754 = vmatprep.subr.mxu0 0.0
    %755 = vmatpush1.xpose.msra.mxu0 0.0
    %756 = vmatprep.subr.mxu0 0.0
    %757 = vmatpush1.xpose.msra.mxu0 0.0
    %758 = vmatprep.subr.mxu0 0.0
    %759 = vmatpush1.xpose.msra.mxu0 0.0
    %760 = vmatprep.subr.mxu0 0.0
    %761 = vmatpush1.xpose.msra.mxu0 0.0
    %762 = vmatprep.subr.mxu0 0.0
    %763 = vmatpush1.xpose.msra.mxu0 0.0
    %764 = vmatprep.subr.mxu0 0.0
    %765 = vmatpush1.xpose.msra.mxu0 0.0
    %766 = vmatprep.subr.mxu0 0.0
    %767 = vmatpush1.xpose.msra.mxu0 0.0
    %768 = vmatprep.subr.mxu0 0.0
    %769 = vmatpush1.xpose.msra.mxu0 0.0
    %770 = vmatprep.subr.mxu0 0.0
    %771 = vmatpush1.xpose.msra.mxu0 %v738
    %772 = vmatprep.subr.mxu0 0.0
    %773 = vmatpush2.xpose.msra.mxu0 0.0
    %774 = vmatprep.subr.mxu0 0.0
    %775 = vmatpush2.xpose.msra.mxu0 0.0
    %776 = vmatprep.subr.mxu0 0.0
    %777 = vmatpush2.xpose.msra.mxu0 0.0
    %778 = vmatprep.subr.mxu0 0.0
    %779 = vmatpush2.xpose.msra.mxu0 0.0
    %780 = vmatprep.subr.mxu0 0.0
    %781 = vmatpush2.xpose.msra.mxu0 0.0
    %782 = vmatprep.subr.mxu0 0.0
    %783 = vmatpush2.xpose.msra.mxu0 0.0
    %784 = vmatprep.subr.mxu0 0.0
    %785 = vmatpush2.xpose.msra.mxu0 0.0
    %786 = vmatprep.subr.mxu0 0.0
    %787 = vmatpush2.xpose.msra.mxu0 0.0
    %788 = vmatprep.subr.mxu0 0.0
    %789 = vmatpush2.xpose.msra.mxu0 0.0
    %790 = vmatprep.subr.mxu0 0.0
    %791 = vmatpush2.xpose.msra.mxu0 0.0
    %792 = vmatprep.subr.mxu0 0.0
    %793 = vmatpush2.xpose.msra.mxu0 0.0
    %794 = vmatprep.subr.mxu0 0.0
    %795 = vmatpush2.xpose.msra.mxu0 0.0
    %796 = vmatprep.subr.mxu0 0.0
    %797 = vmatpush2.xpose.msra.mxu0 0.0
    %798 = vmatprep.subr.mxu0 0.0
    %799 = vmatpush2.xpose.msra.mxu0 0.0
    %800 = vmatprep.subr.mxu0 0.0
    %801 = vmatpush2.xpose.msra.mxu0 0.0
    %802 = vmatprep.subr.mxu0 0.0
    %803 = vmatpush2.xpose.msra.mxu0 0.0
    %804 = vmatprep.mubr.f32.mxu0 0.0
    %805 = vmatmul.mubr.f32.gmra.mxu0 %v736
    %v806 = vpop.f32.mrf.mxu0
    %v807 = vadd.f32 %v734, %v806
    %v808 = vpop.f32.mrf.mxu0
    %809 = vdwg.mxu0
    %811 = vrot.lane.b32.xlu0 %v652, 120
    %v812 = vpop.permute.xlu0 %811
    %v814 = vsel %vm218, %v183, 0
    %v816 = vsel %vm218, %v191, 0
    %818 = vmatprep.subr.mxu0 0.0
    %819 = vmatpush1.xpose.msra.mxu0 0.0
    %820 = vmatprep.subr.mxu0 0.0
    %821 = vmatpush1.xpose.msra.mxu0 0.0
    %822 = vmatprep.subr.mxu0 0.0
    %823 = vmatpush1.xpose.msra.mxu0 0.0
    %824 = vmatprep.subr.mxu0 0.0
    %825 = vmatpush1.xpose.msra.mxu0 0.0
    %826 = vmatprep.subr.mxu0 0.0
    %827 = vmatpush1.xpose.msra.mxu0 0.0
    %828 = vmatprep.subr.mxu0 0.0
    %829 = vmatpush1.xpose.msra.mxu0 0.0
    %830 = vmatprep.subr.mxu0 0.0
    %831 = vmatpush1.xpose.msra.mxu0 0.0
    %832 = vmatprep.subr.mxu0 0.0
    %833 = vmatpush1.xpose.msra.mxu0 0.0
    %834 = vmatprep.subr.mxu0 0.0
    %835 = vmatpush1.xpose.msra.mxu0 0.0
    %836 = vmatprep.subr.mxu0 0.0
    %837 = vmatpush1.xpose.msra.mxu0 0.0
    %838 = vmatprep.subr.mxu0 0.0
    %839 = vmatpush1.xpose.msra.mxu0 0.0
    %840 = vmatprep.subr.mxu0 0.0
    %841 = vmatpush1.xpose.msra.mxu0 0.0
    %842 = vmatprep.subr.mxu0 0.0
    %843 = vmatpush1.xpose.msra.mxu0 0.0
    %844 = vmatprep.subr.mxu0 0.0
    %845 = vmatpush1.xpose.msra.mxu0 0.0
    %846 = vmatprep.subr.mxu0 0.0
    %847 = vmatpush1.xpose.msra.mxu0 0.0
    %848 = vmatprep.subr.mxu0 0.0
    %849 = vmatpush1.xpose.msra.mxu0 %v816
    %850 = vmatprep.subr.mxu0 0.0
    %851 = vmatpush2.xpose.msra.mxu0 0.0
    %852 = vmatprep.subr.mxu0 0.0
    %853 = vmatpush2.xpose.msra.mxu0 0.0
    %854 = vmatprep.subr.mxu0 0.0
    %855 = vmatpush2.xpose.msra.mxu0 0.0
    %856 = vmatprep.subr.mxu0 0.0
    %857 = vmatpush2.xpose.msra.mxu0 0.0
    %858 = vmatprep.subr.mxu0 0.0
    %859 = vmatpush2.xpose.msra.mxu0 0.0
    %860 = vmatprep.subr.mxu0 0.0
    %861 = vmatpush2.xpose.msra.mxu0 0.0
    %862 = vmatprep.subr.mxu0 0.0
    %863 = vmatpush2.xpose.msra.mxu0 0.0
    %864 = vmatprep.subr.mxu0 0.0
    %865 = vmatpush2.xpose.msra.mxu0 0.0
    %866 = vmatprep.subr.mxu0 0.0
    %867 = vmatpush2.xpose.msra.mxu0 0.0
    %868 = vmatprep.subr.mxu0 0.0
    %869 = vmatpush2.xpose.msra.mxu0 0.0
    %870 = vmatprep.subr.mxu0 0.0
    %871 = vmatpush2.xpose.msra.mxu0 0.0
    %872 = vmatprep.subr.mxu0 0.0
    %873 = vmatpush2.xpose.msra.mxu0 0.0
    %874 = vmatprep.subr.mxu0 0.0
    %875 = vmatpush2.xpose.msra.mxu0 0.0
    %876 = vmatprep.subr.mxu0 0.0
    %877 = vmatpush2.xpose.msra.mxu0 0.0
    %878 = vmatprep.subr.mxu0 0.0
    %879 = vmatpush2.xpose.msra.mxu0 0.0
    %880 = vmatprep.subr.mxu0 0.0
    %881 = vmatpush2.xpose.msra.mxu0 0.0
    %882 = vmatprep.mubr.f32.mxu0 0.0
    %883 = vmatmul.mubr.f32.gmra.mxu0 %v814
    %v884 = vpop.f32.mrf.mxu0
    %v885 = vadd.f32 %v812, %v884
    %v886 = vpop.f32.mrf.mxu0
    %887 = vdwg.mxu0
    %889 = vrot.lane.b32.xlu0 %v653, 120
    %v890 = vpop.permute.xlu0 %889
    %v892 = vsel %vm218, %v201, 0
    %v894 = vsel %vm218, %v209, 0
    %896 = vmatprep.subr.mxu0 0.0
    %897 = vmatpush1.xpose.msra.mxu0 0.0
    %898 = vmatprep.subr.mxu0 0.0
    %899 = vmatpush1.xpose.msra.mxu0 0.0
    %900 = vmatprep.subr.mxu0 0.0
    %901 = vmatpush1.xpose.msra.mxu0 0.0
    %902 = vmatprep.subr.mxu0 0.0
    %903 = vmatpush1.xpose.msra.mxu0 0.0
    %904 = vmatprep.subr.mxu0 0.0
    %905 = vmatpush1.xpose.msra.mxu0 0.0
    %906 = vmatprep.subr.mxu0 0.0
    %907 = vmatpush1.xpose.msra.mxu0 0.0
    %908 = vmatprep.subr.mxu0 0.0
    %909 = vmatpush1.xpose.msra.mxu0 0.0
    %910 = vmatprep.subr.mxu0 0.0
    %911 = vmatpush1.xpose.msra.mxu0 0.0
    %912 = vmatprep.subr.mxu0 0.0
    %913 = vmatpush1.xpose.msra.mxu0 0.0
    %914 = vmatprep.subr.mxu0 0.0
    %915 = vmatpush1.xpose.msra.mxu0 0.0
    %916 = vmatprep.subr.mxu0 0.0
    %917 = vmatpush1.xpose.msra.mxu0 0.0
    %918 = vmatprep.subr.mxu0 0.0
    %919 = vmatpush1.xpose.msra.mxu0 0.0
    %920 = vmatprep.subr.mxu0 0.0
    %921 = vmatpush1.xpose.msra.mxu0 0.0
    %922 = vmatprep.subr.mxu0 0.0
    %923 = vmatpush1.xpose.msra.mxu0 0.0
    %924 = vmatprep.subr.mxu0 0.0
    %925 = vmatpush1.xpose.msra.mxu0 0.0
    %926 = vmatprep.subr.mxu0 0.0
    %927 = vmatpush1.xpose.msra.mxu0 %v894
    %928 = vmatprep.subr.mxu0 0.0
    %929 = vmatpush2.xpose.msra.mxu0 0.0
    %930 = vmatprep.subr.mxu0 0.0
    %931 = vmatpush2.xpose.msra.mxu0 0.0
    %932 = vmatprep.subr.mxu0 0.0
    %933 = vmatpush2.xpose.msra.mxu0 0.0
    %934 = vmatprep.subr.mxu0 0.0
    %935 = vmatpush2.xpose.msra.mxu0 0.0
    %936 = vmatprep.subr.mxu0 0.0
    %937 = vmatpush2.xpose.msra.mxu0 0.0
    %938 = vmatprep.subr.mxu0 0.0
    %939 = vmatpush2.xpose.msra.mxu0 0.0
    %940 = vmatprep.subr.mxu0 0.0
    %941 = vmatpush2.xpose.msra.mxu0 0.0
    %942 = vmatprep.subr.mxu0 0.0
    %943 = vmatpush2.xpose.msra.mxu0 0.0
    %944 = vmatprep.subr.mxu0 0.0
    %945 = vmatpush2.xpose.msra.mxu0 0.0
    %946 = vmatprep.subr.mxu0 0.0
    %947 = vmatpush2.xpose.msra.mxu0 0.0
    %948 = vmatprep.subr.mxu0 0.0
    %949 = vmatpush2.xpose.msra.mxu0 0.0
    %950 = vmatprep.subr.mxu0 0.0
    %951 = vmatpush2.xpose.msra.mxu0 0.0
    %952 = vmatprep.subr.mxu0 0.0
    %953 = vmatpush2.xpose.msra.mxu0 0.0
    %954 = vmatprep.subr.mxu0 0.0
    %955 = vmatpush2.xpose.msra.mxu0 0.0
    %956 = vmatprep.subr.mxu0 0.0
    %957 = vmatpush2.xpose.msra.mxu0 0.0
    %958 = vmatprep.subr.mxu0 0.0
    %959 = vmatpush2.xpose.msra.mxu0 0.0
    %960 = vmatprep.mubr.f32.mxu0 0.0
    %961 = vmatmul.mubr.f32.gmra.mxu0 %v892
    %v962 = vpop.f32.mrf.mxu0
    %v963 = vadd.f32 %v890, %v962
    %v964 = vpop.f32.mrf.mxu0
    %965 = vdwg.mxu0
    %v966 = vmul.f32 %v729, 0.35355338
    %v967 = vmul.f32 %v807, 0.35355338
    %v968 = vmul.f32 %v885, 0.35355338
    %v969 = vmul.f32 %v963, 0.35355338
    %v971 = vlaneseq
    %v972 = vshrl.u32 %v971, 7
    %v973 = vsub.s32 0, %v972
    %v974 = vrot.slane %v39, %v973
    %v976 = vadd.f32 %v966, %v974
    %v977 = vadd.f32 %v967, %v974
    %v978 = vadd.f32 %v968, %v974
    %v979 = vadd.f32 %v969, %v974
    %v980 = vsel %vm218, %v976, -inf
    %981 = vmax.xlane.f32.xlu0 %v980
    %v982 = vpop.xlane.xlu0 %981
    %v983 = vsel %vm218, %v977, -inf
    %984 = vmax.xlane.f32.xlu0 %v983
    %v985 = vpop.xlane.xlu0 %984
    %v986 = vsel %vm218, %v978, -inf
    %987 = vmax.xlane.f32.xlu0 %v986
    %v988 = vpop.xlane.xlu0 %987
    %v989 = vsel %vm218, %v979, -inf
    %990 = vmax.xlane.f32.xlu0 %v989
    %v991 = vpop.xlane.xlu0 %990
    %v992 = vsub.f32 %v976, %v982
    %v993 = vsub.f32 %v977, %v985
    %v994 = vsub.f32 %v978, %v988
    %v995 = vsub.f32 %v979, %v991
    %v996 = vmul.f32 %v992, 1.442695
    %v997 = vpow.pop %v996
    %v998 = vmul.f32 %v993, 1.442695
    %v999 = vpow.pop %v998
    %v1000 = vmul.f32 %v994, 1.442695
    %v1001 = vpow.pop %v1000
    %v1002 = vmul.f32 %v995, 1.442695
    %v1003 = vpow.pop %v1002
    %v1004 = vsel %vm218, %v997, 0.0
    %1005 = vadd.xlane.f32.xlu0 %v1004
    %v1006 = vpop.xlane.xlu0 %1005
    %v1007 = vsel %vm218, %v999, 0.0
    %1008 = vadd.xlane.f32.xlu0 %v1007
    %v1009 = vpop.xlane.xlu0 %1008
    %v1010 = vsel %vm218, %v1001, 0.0
    %1011 = vadd.xlane.f32.xlu0 %v1010
    %v1012 = vpop.xlane.xlu0 %1011
    %v1013 = vsel %vm218, %v1003, 0.0
    %1014 = vadd.xlane.f32.xlu0 %v1013
    %v1015 = vpop.xlane.xlu0 %1014
    %v1016 = vrcp.pop %v1006
    %v1017 = vmul.f32 %v997, %v1016
    %v1018 = vrcp.pop %v1009
    %v1019 = vmul.f32 %v999, %v1018
    %v1020 = vrcp.pop %v1012
    %v1021 = vmul.f32 %v1001, %v1020
    %v1022 = vrcp.pop %v1015
    %v1023 = vmul.f32 %v1003, %v1022
    %v1025 = vsel %vm218, %v1017, 0
    %1027 = vmatprep.subr.mxu0 0.0
    %1028 = vmatpush1.msra.mxu0 0.0
    %1029 = vmatprep.subr.mxu0 0.0
    %1030 = vmatpush1.msra.mxu0 0.0
    %1031 = vmatprep.subr.mxu0 0.0
    %1032 = vmatpush1.msra.mxu0 0.0
    %1033 = vmatprep.subr.mxu0 0.0
    %1034 = vmatpush1.msra.mxu0 0.0
    %1035 = vmatprep.subr.mxu0 0.0
    %1036 = vmatpush1.msra.mxu0 0.0
    %1037 = vmatprep.subr.mxu0 0.0
    %1038 = vmatpush1.msra.mxu0 0.0
    %1039 = vmatprep.subr.mxu0 0.0
    %1040 = vmatpush1.msra.mxu0 0.0
    %1041 = vmatprep.subr.mxu0 0.0
    %1042 = vmatpush1.msra.mxu0 0.0
    %1043 = vmatprep.subr.mxu0 0.0
    %1044 = vmatpush1.msra.mxu0 0.0
    %1045 = vmatprep.subr.mxu0 0.0
    %1046 = vmatpush1.msra.mxu0 0.0
    %1047 = vmatprep.subr.mxu0 0.0
    %1048 = vmatpush1.msra.mxu0 0.0
    %1049 = vmatprep.subr.mxu0 0.0
    %1050 = vmatpush1.msra.mxu0 0.0
    %1051 = vmatprep.subr.mxu0 0.0
    %1052 = vmatpush1.msra.mxu0 0.0
    %1053 = vmatprep.subr.mxu0 0.0
    %1054 = vmatpush1.msra.mxu0 0.0
    %1055 = vmatprep.subr.mxu0 0.0
    %1056 = vmatpush1.msra.mxu0 0.0
    %1057 = vmatprep.subr.mxu0 0.0
    %1058 = vmatpush1.msra.mxu0 %v155
    %1059 = vmatprep.subr.mxu0 0.0
    %1060 = vmatpush2.msra.mxu0 0.0
    %1061 = vmatprep.subr.mxu0 0.0
    %1062 = vmatpush2.msra.mxu0 0.0
    %1063 = vmatprep.subr.mxu0 0.0
    %1064 = vmatpush2.msra.mxu0 0.0
    %1065 = vmatprep.subr.mxu0 0.0
    %1066 = vmatpush2.msra.mxu0 0.0
    %1067 = vmatprep.subr.mxu0 0.0
    %1068 = vmatpush2.msra.mxu0 0.0
    %1069 = vmatprep.subr.mxu0 0.0
    %1070 = vmatpush2.msra.mxu0 0.0
    %1071 = vmatprep.subr.mxu0 0.0
    %1072 = vmatpush2.msra.mxu0 0.0
    %1073 = vmatprep.subr.mxu0 0.0
    %1074 = vmatpush2.msra.mxu0 0.0
    %1075 = vmatprep.subr.mxu0 0.0
    %1076 = vmatpush2.msra.mxu0 0.0
    %1077 = vmatprep.subr.mxu0 0.0
    %1078 = vmatpush2.msra.mxu0 0.0
    %1079 = vmatprep.subr.mxu0 0.0
    %1080 = vmatpush2.msra.mxu0 0.0
    %1081 = vmatprep.subr.mxu0 0.0
    %1082 = vmatpush2.msra.mxu0 0.0
    %1083 = vmatprep.subr.mxu0 0.0
    %1084 = vmatpush2.msra.mxu0 0.0
    %1085 = vmatprep.subr.mxu0 0.0
    %1086 = vmatpush2.msra.mxu0 0.0
    %1087 = vmatprep.subr.mxu0 0.0
    %1088 = vmatpush2.msra.mxu0 0.0
    %1089 = vmatprep.subr.mxu0 0.0
    %1090 = vmatpush2.msra.mxu0 0.0
    %1091 = vmatprep.mubr.f32.mxu0 0.0
    %1092 = vmatmul.mubr.f32.gmra.mxu0 %v1025
    %v1093 = vpop.f32.mrf.mxu0
    %v1094 = vadd.f32 0.0, %v1093
    %v1095 = vpop.f32.mrf.mxu0
    %1096 = vdwg.mxu0
    %v1098 = vsel %vm218, %v1019, 0
    %1100 = vmatprep.subr.mxu0 0.0
    %1101 = vmatpush1.msra.mxu0 0.0
    %1102 = vmatprep.subr.mxu0 0.0
    %1103 = vmatpush1.msra.mxu0 0.0
    %1104 = vmatprep.subr.mxu0 0.0
    %1105 = vmatpush1.msra.mxu0 0.0
    %1106 = vmatprep.subr.mxu0 0.0
    %1107 = vmatpush1.msra.mxu0 0.0
    %1108 = vmatprep.subr.mxu0 0.0
    %1109 = vmatpush1.msra.mxu0 0.0
    %1110 = vmatprep.subr.mxu0 0.0
    %1111 = vmatpush1.msra.mxu0 0.0
    %1112 = vmatprep.subr.mxu0 0.0
    %1113 = vmatpush1.msra.mxu0 0.0
    %1114 = vmatprep.subr.mxu0 0.0
    %1115 = vmatpush1.msra.mxu0 0.0
    %1116 = vmatprep.subr.mxu0 0.0
    %1117 = vmatpush1.msra.mxu0 0.0
    %1118 = vmatprep.subr.mxu0 0.0
    %1119 = vmatpush1.msra.mxu0 0.0
    %1120 = vmatprep.subr.mxu0 0.0
    %1121 = vmatpush1.msra.mxu0 0.0
    %1122 = vmatprep.subr.mxu0 0.0
    %1123 = vmatpush1.msra.mxu0 0.0
    %1124 = vmatprep.subr.mxu0 0.0
    %1125 = vmatpush1.msra.mxu0 0.0
    %1126 = vmatprep.subr.mxu0 0.0
    %1127 = vmatpush1.msra.mxu0 0.0
    %1128 = vmatprep.subr.mxu0 0.0
    %1129 = vmatpush1.msra.mxu0 0.0
    %1130 = vmatprep.subr.mxu0 0.0
    %1131 = vmatpush1.msra.mxu0 %v177
    %1132 = vmatprep.subr.mxu0 0.0
    %1133 = vmatpush2.msra.mxu0 0.0
    %1134 = vmatprep.subr.mxu0 0.0
    %1135 = vmatpush2.msra.mxu0 0.0
    %1136 = vmatprep.subr.mxu0 0.0
    %1137 = vmatpush2.msra.mxu0 0.0
    %1138 = vmatprep.subr.mxu0 0.0
    %1139 = vmatpush2.msra.mxu0 0.0
    %1140 = vmatprep.subr.mxu0 0.0
    %1141 = vmatpush2.msra.mxu0 0.0
    %1142 = vmatprep.subr.mxu0 0.0
    %1143 = vmatpush2.msra.mxu0 0.0
    %1144 = vmatprep.subr.mxu0 0.0
    %1145 = vmatpush2.msra.mxu0 0.0
    %1146 = vmatprep.subr.mxu0 0.0
    %1147 = vmatpush2.msra.mxu0 0.0
    %1148 = vmatprep.subr.mxu0 0.0
    %1149 = vmatpush2.msra.mxu0 0.0
    %1150 = vmatprep.subr.mxu0 0.0
    %1151 = vmatpush2.msra.mxu0 0.0
    %1152 = vmatprep.subr.mxu0 0.0
    %1153 = vmatpush2.msra.mxu0 0.0
    %1154 = vmatprep.subr.mxu0 0.0
    %1155 = vmatpush2.msra.mxu0 0.0
    %1156 = vmatprep.subr.mxu0 0.0
    %1157 = vmatpush2.msra.mxu0 0.0
    %1158 = vmatprep.subr.mxu0 0.0
    %1159 = vmatpush2.msra.mxu0 0.0
    %1160 = vmatprep.subr.mxu0 0.0
    %1161 = vmatpush2.msra.mxu0 0.0
    %1162 = vmatprep.subr.mxu0 0.0
    %1163 = vmatpush2.msra.mxu0 0.0
    %1164 = vmatprep.mubr.f32.mxu0 0.0
    %1165 = vmatmul.mubr.f32.gmra.mxu0 %v1098
    %v1166 = vpop.f32.mrf.mxu0
    %v1167 = vadd.f32 0.0, %v1166
    %v1168 = vpop.f32.mrf.mxu0
    %1169 = vdwg.mxu0
    %v1171 = vsel %vm218, %v1021, 0
    %1173 = vmatprep.subr.mxu0 0.0
    %1174 = vmatpush1.msra.mxu0 0.0
    %1175 = vmatprep.subr.mxu0 0.0
    %1176 = vmatpush1.msra.mxu0 0.0
    %1177 = vmatprep.subr.mxu0 0.0
    %1178 = vmatpush1.msra.mxu0 0.0
    %1179 = vmatprep.subr.mxu0 0.0
    %1180 = vmatpush1.msra.mxu0 0.0
    %1181 = vmatprep.subr.mxu0 0.0
    %1182 = vmatpush1.msra.mxu0 0.0
    %1183 = vmatprep.subr.mxu0 0.0
    %1184 = vmatpush1.msra.mxu0 0.0
    %1185 = vmatprep.subr.mxu0 0.0
    %1186 = vmatpush1.msra.mxu0 0.0
    %1187 = vmatprep.subr.mxu0 0.0
    %1188 = vmatpush1.msra.mxu0 0.0
    %1189 = vmatprep.subr.mxu0 0.0
    %1190 = vmatpush1.msra.mxu0 0.0
    %1191 = vmatprep.subr.mxu0 0.0
    %1192 = vmatpush1.msra.mxu0 0.0
    %1193 = vmatprep.subr.mxu0 0.0
    %1194 = vmatpush1.msra.mxu0 0.0
    %1195 = vmatprep.subr.mxu0 0.0
    %1196 = vmatpush1.msra.mxu0 0.0
    %1197 = vmatprep.subr.mxu0 0.0
    %1198 = vmatpush1.msra.mxu0 0.0
    %1199 = vmatprep.subr.mxu0 0.0
    %1200 = vmatpush1.msra.mxu0 0.0
    %1201 = vmatprep.subr.mxu0 0.0
    %1202 = vmatpush1.msra.mxu0 0.0
    %1203 = vmatprep.subr.mxu0 0.0
    %1204 = vmatpush1.msra.mxu0 %v195
    %1205 = vmatprep.subr.mxu0 0.0
    %1206 = vmatpush2.msra.mxu0 0.0
    %1207 = vmatprep.subr.mxu0 0.0
    %1208 = vmatpush2.msra.mxu0 0.0
    %1209 = vmatprep.subr.mxu0 0.0
    %1210 = vmatpush2.msra.mxu0 0.0
    %1211 = vmatprep.subr.mxu0 0.0
    %1212 = vmatpush2.msra.mxu0 0.0
    %1213 = vmatprep.subr.mxu0 0.0
    %1214 = vmatpush2.msra.mxu0 0.0
    %1215 = vmatprep.subr.mxu0 0.0
    %1216 = vmatpush2.msra.mxu0 0.0
    %1217 = vmatprep.subr.mxu0 0.0
    %1218 = vmatpush2.msra.mxu0 0.0
    %1219 = vmatprep.subr.mxu0 0.0
    %1220 = vmatpush2.msra.mxu0 0.0
    %1221 = vmatprep.subr.mxu0 0.0
    %1222 = vmatpush2.msra.mxu0 0.0
    %1223 = vmatprep.subr.mxu0 0.0
    %1224 = vmatpush2.msra.mxu0 0.0
    %1225 = vmatprep.subr.mxu0 0.0
    %1226 = vmatpush2.msra.mxu0 0.0
    %1227 = vmatprep.subr.mxu0 0.0
    %1228 = vmatpush2.msra.mxu0 0.0
    %1229 = vmatprep.subr.mxu0 0.0
    %1230 = vmatpush2.msra.mxu0 0.0
    %1231 = vmatprep.subr.mxu0 0.0
    %1232 = vmatpush2.msra.mxu0 0.0
    %1233 = vmatprep.subr.mxu0 0.0
    %1234 = vmatpush2.msra.mxu0 0.0
    %1235 = vmatprep.subr.mxu0 0.0
    %1236 = vmatpush2.msra.mxu0 0.0
    %1237 = vmatprep.mubr.f32.mxu0 0.0
    %1238 = vmatmul.mubr.f32.gmra.mxu0 %v1171
    %v1239 = vpop.f32.mrf.mxu0
    %v1240 = vadd.f32 0.0, %v1239
    %v1241 = vpop.f32.mrf.mxu0
    %1242 = vdwg.mxu0
    %v1244 = vsel %vm218, %v1023, 0
    %1246 = vmatprep.subr.mxu0 0.0
    %1247 = vmatpush1.msra.mxu0 0.0
    %1248 = vmatprep.subr.mxu0 0.0
    %1249 = vmatpush1.msra.mxu0 0.0
    %1250 = vmatprep.subr.mxu0 0.0
    %1251 = vmatpush1.msra.mxu0 0.0
    %1252 = vmatprep.subr.mxu0 0.0
    %1253 = vmatpush1.msra.mxu0 0.0
    %1254 = vmatprep.subr.mxu0 0.0
    %1255 = vmatpush1.msra.mxu0 0.0
    %1256 = vmatprep.subr.mxu0 0.0
    %1257 = vmatpush1.msra.mxu0 0.0
    %1258 = vmatprep.subr.mxu0 0.0
    %1259 = vmatpush1.msra.mxu0 0.0
    %1260 = vmatprep.subr.mxu0 0.0
    %1261 = vmatpush1.msra.mxu0 0.0
    %1262 = vmatprep.subr.mxu0 0.0
    %1263 = vmatpush1.msra.mxu0 0.0
    %1264 = vmatprep.subr.mxu0 0.0
    %1265 = vmatpush1.msra.mxu0 0.0
    %1266 = vmatprep.subr.mxu0 0.0
    %1267 = vmatpush1.msra.mxu0 0.0
    %1268 = vmatprep.subr.mxu0 0.0
    %1269 = vmatpush1.msra.mxu0 0.0
    %1270 = vmatprep.subr.mxu0 0.0
    %1271 = vmatpush1.msra.mxu0 0.0
    %1272 = vmatprep.subr.mxu0 0.0
    %1273 = vmatpush1.msra.mxu0 0.0
    %1274 = vmatprep.subr.mxu0 0.0
    %1275 = vmatpush1.msra.mxu0 0.0
    %1276 = vmatprep.subr.mxu0 0.0
    %1277 = vmatpush1.msra.mxu0 %v213
    %1278 = vmatprep.subr.mxu0 0.0
    %1279 = vmatpush2.msra.mxu0 0.0
    %1280 = vmatprep.subr.mxu0 0.0
    %1281 = vmatpush2.msra.mxu0 0.0
    %1282 = vmatprep.subr.mxu0 0.0
    %1283 = vmatpush2.msra.mxu0 0.0
    %1284 = vmatprep.subr.mxu0 0.0
    %1285 = vmatpush2.msra.mxu0 0.0
    %1286 = vmatprep.subr.mxu0 0.0
    %1287 = vmatpush2.msra.mxu0 0.0
    %1288 = vmatprep.subr.mxu0 0.0
    %1289 = vmatpush2.msra.mxu0 0.0
    %1290 = vmatprep.subr.mxu0 0.0
    %1291 = vmatpush2.msra.mxu0 0.0
    %1292 = vmatprep.subr.mxu0 0.0
    %1293 = vmatpush2.msra.mxu0 0.0
    %1294 = vmatprep.subr.mxu0 0.0
    %1295 = vmatpush2.msra.mxu0 0.0
    %1296 = vmatprep.subr.mxu0 0.0
    %1297 = vmatpush2.msra.mxu0 0.0
    %1298 = vmatprep.subr.mxu0 0.0
    %1299 = vmatpush2.msra.mxu0 0.0
    %1300 = vmatprep.subr.mxu0 0.0
    %1301 = vmatpush2.msra.mxu0 0.0
    %1302 = vmatprep.subr.mxu0 0.0
    %1303 = vmatpush2.msra.mxu0 0.0
    %1304 = vmatprep.subr.mxu0 0.0
    %1305 = vmatpush2.msra.mxu0 0.0
    %1306 = vmatprep.subr.mxu0 0.0
    %1307 = vmatpush2.msra.mxu0 0.0
    %1308 = vmatprep.subr.mxu0 0.0
    %1309 = vmatpush2.msra.mxu0 0.0
    %1310 = vmatprep.mubr.f32.mxu0 0.0
    %1311 = vmatmul.mubr.f32.gmra.mxu0 %v1244
    %v1312 = vpop.f32.mrf.mxu0
    %v1313 = vadd.f32 0.0, %v1312
    %v1314 = vpop.f32.mrf.mxu0
    %1315 = vdwg.mxu0
    %1317 = vrot.lane.b32.xlu0 %v1167, 8
    %v1318 = vpop.permute.xlu0 %1317
    %1321 = vrot.lane.b32.xlu0 %v1240, 16
    %v1322 = vpop.permute.xlu0 %1321
    %1325 = vrot.lane.b32.xlu0 %v1313, 24
    %v1326 = vpop.permute.xlu0 %1325
    %v1328 = vsel %vm218, %v1094, %v1318
    %vm1329 = vcmask 130048
    %v1330 = vsel %vm1329, %v1328, %v1322
    %vm1331 = vcmask 195584
    %v1332 = vsel %vm1331, %v1330, %v1326
    %v1333 = vsel %vm218, %v147, 0
    %1335 = vmatprep.subr.mxu0 0.0
    %1336 = vmatpush1.xpose.msra.mxu0 0.0
    %1337 = vmatprep.subr.mxu0 0.0
    %1338 = vmatpush1.xpose.msra.mxu0 0.0
    %1339 = vmatprep.subr.mxu0 0.0
    %1340 = vmatpush1.xpose.msra.mxu0 0.0
    %1341 = vmatprep.subr.mxu0 0.0
    %1342 = vmatpush1.xpose.msra.mxu0 0.0
    %1343 = vmatprep.subr.mxu0 0.0
    %1344 = vmatpush1.xpose.msra.mxu0 0.0
    %1345 = vmatprep.subr.mxu0 0.0
    %1346 = vmatpush1.xpose.msra.mxu0 0.0
    %1347 = vmatprep.subr.mxu0 0.0
    %1348 = vmatpush1.xpose.msra.mxu0 0.0
    %1349 = vmatprep.subr.mxu0 0.0
    %1350 = vmatpush1.xpose.msra.mxu0 0.0
    %1351 = vmatprep.subr.mxu0 0.0
    %1352 = vmatpush1.xpose.msra.mxu0 0.0
    %1353 = vmatprep.subr.mxu0 0.0
    %1354 = vmatpush1.xpose.msra.mxu0 0.0
    %1355 = vmatprep.subr.mxu0 0.0
    %1356 = vmatpush1.xpose.msra.mxu0 0.0
    %1357 = vmatprep.subr.mxu0 0.0
    %1358 = vmatpush1.xpose.msra.mxu0 0.0
    %1359 = vmatprep.subr.mxu0 0.0
    %1360 = vmatpush1.xpose.msra.mxu0 0.0
    %1361 = vmatprep.subr.mxu0 0.0
    %1362 = vmatpush1.xpose.msra.mxu0 0.0
    %1363 = vmatprep.subr.mxu0 0.0
    %1364 = vmatpush1.xpose.msra.mxu0 %v225
    %1365 = vmatprep.subr.mxu0 0.0
    %1366 = vmatpush1.xpose.msra.mxu0 %v222
    %1367 = vmatprep.subr.mxu0 0.0
    %1368 = vmatpush2.xpose.msra.mxu0 0.0
    %1369 = vmatprep.subr.mxu0 0.0
    %1370 = vmatpush2.xpose.msra.mxu0 0.0
    %1371 = vmatprep.subr.mxu0 0.0
    %1372 = vmatpush2.xpose.msra.mxu0 0.0
    %1373 = vmatprep.subr.mxu0 0.0
    %1374 = vmatpush2.xpose.msra.mxu0 0.0
    %1375 = vmatprep.subr.mxu0 0.0
    %1376 = vmatpush2.xpose.msra.mxu0 0.0
    %1377 = vmatprep.subr.mxu0 0.0
    %1378 = vmatpush2.xpose.msra.mxu0 0.0
    %1379 = vmatprep.subr.mxu0 0.0
    %1380 = vmatpush2.xpose.msra.mxu0 0.0
    %1381 = vmatprep.subr.mxu0 0.0
    %1382 = vmatpush2.xpose.msra.mxu0 0.0
    %1383 = vmatprep.subr.mxu0 0.0
    %1384 = vmatpush2.xpose.msra.mxu0 0.0
    %1385 = vmatprep.subr.mxu0 0.0
    %1386 = vmatpush2.xpose.msra.mxu0 0.0
    %1387 = vmatprep.subr.mxu0 0.0
    %1388 = vmatpush2.xpose.msra.mxu0 0.0
    %1389 = vmatprep.subr.mxu0 0.0
    %1390 = vmatpush2.xpose.msra.mxu0 0.0
    %1391 = vmatprep.subr.mxu0 0.0
    %1392 = vmatpush2.xpose.msra.mxu0 0.0
    %1393 = vmatprep.subr.mxu0 0.0
    %1394 = vmatpush2.xpose.msra.mxu0 0.0
    %1395 = vmatprep.subr.mxu0 0.0
    %1396 = vmatpush2.xpose.msra.mxu0 0.0
    %1397 = vmatprep.subr.mxu0 0.0
    %1398 = vmatpush2.xpose.msra.mxu0 0.0
    %1399 = vmatprep.mubr.f32.mxu0 0.0
    %1400 = vmatmul.mubr.f32.gmra.mxu0 %v1333
    %v1401 = vpop.f32.mrf.mxu0
    %v1402 = vadd.f32 0.0, %v1401
    %v1403 = vpop.f32.mrf.mxu0
    %1404 = vdwg.mxu0
    %v1405 = vsel %vm218, %v171, 0
    %1407 = vmatprep.subr.mxu0 0.0
    %1408 = vmatpush1.xpose.msra.mxu0 0.0
    %1409 = vmatprep.subr.mxu0 0.0
    %1410 = vmatpush1.xpose.msra.mxu0 0.0
    %1411 = vmatprep.subr.mxu0 0.0
    %1412 = vmatpush1.xpose.msra.mxu0 0.0
    %1413 = vmatprep.subr.mxu0 0.0
    %1414 = vmatpush1.xpose.msra.mxu0 0.0
    %1415 = vmatprep.subr.mxu0 0.0
    %1416 = vmatpush1.xpose.msra.mxu0 0.0
    %1417 = vmatprep.subr.mxu0 0.0
    %1418 = vmatpush1.xpose.msra.mxu0 0.0
    %1419 = vmatprep.subr.mxu0 0.0
    %1420 = vmatpush1.xpose.msra.mxu0 0.0
    %1421 = vmatprep.subr.mxu0 0.0
    %1422 = vmatpush1.xpose.msra.mxu0 0.0
    %1423 = vmatprep.subr.mxu0 0.0
    %1424 = vmatpush1.xpose.msra.mxu0 0.0
    %1425 = vmatprep.subr.mxu0 0.0
    %1426 = vmatpush1.xpose.msra.mxu0 0.0
    %1427 = vmatprep.subr.mxu0 0.0
    %1428 = vmatpush1.xpose.msra.mxu0 0.0
    %1429 = vmatprep.subr.mxu0 0.0
    %1430 = vmatpush1.xpose.msra.mxu0 0.0
    %1431 = vmatprep.subr.mxu0 0.0
    %1432 = vmatpush1.xpose.msra.mxu0 0.0
    %1433 = vmatprep.subr.mxu0 0.0
    %1434 = vmatpush1.xpose.msra.mxu0 0.0
    %1435 = vmatprep.subr.mxu0 0.0
    %1436 = vmatpush1.xpose.msra.mxu0 %v303
    %1437 = vmatprep.subr.mxu0 0.0
    %1438 = vmatpush1.xpose.msra.mxu0 %v300
    %1439 = vmatprep.subr.mxu0 0.0
    %1440 = vmatpush2.xpose.msra.mxu0 0.0
    %1441 = vmatprep.subr.mxu0 0.0
    %1442 = vmatpush2.xpose.msra.mxu0 0.0
    %1443 = vmatprep.subr.mxu0 0.0
    %1444 = vmatpush2.xpose.msra.mxu0 0.0
    %1445 = vmatprep.subr.mxu0 0.0
    %1446 = vmatpush2.xpose.msra.mxu0 0.0
    %1447 = vmatprep.subr.mxu0 0.0
    %1448 = vmatpush2.xpose.msra.mxu0 0.0
    %1449 = vmatprep.subr.mxu0 0.0
    %1450 = vmatpush2.xpose.msra.mxu0 0.0
    %1451 = vmatprep.subr.mxu0 0.0
    %1452 = vmatpush2.xpose.msra.mxu0 0.0
    %1453 = vmatprep.subr.mxu0 0.0
    %1454 = vmatpush2.xpose.msra.mxu0 0.0
    %1455 = vmatprep.subr.mxu0 0.0
    %1456 = vmatpush2.xpose.msra.mxu0 0.0
    %1457 = vmatprep.subr.mxu0 0.0
    %1458 = vmatpush2.xpose.msra.mxu0 0.0
    %1459 = vmatprep.subr.mxu0 0.0
    %1460 = vmatpush2.xpose.msra.mxu0 0.0
    %1461 = vmatprep.subr.mxu0 0.0
    %1462 = vmatpush2.xpose.msra.mxu0 0.0
    %1463 = vmatprep.subr.mxu0 0.0
    %1464 = vmatpush2.xpose.msra.mxu0 0.0
    %1465 = vmatprep.subr.mxu0 0.0
    %1466 = vmatpush2.xpose.msra.mxu0 0.0
    %1467 = vmatprep.subr.mxu0 0.0
    %1468 = vmatpush2.xpose.msra.mxu0 0.0
    %1469 = vmatprep.subr.mxu0 0.0
    %1470 = vmatpush2.xpose.msra.mxu0 0.0
    %1471 = vmatprep.mubr.f32.mxu0 0.0
    %1472 = vmatmul.mubr.f32.gmra.mxu0 %v1405
    %v1473 = vpop.f32.mrf.mxu0
    %v1474 = vadd.f32 0.0, %v1473
    %v1475 = vpop.f32.mrf.mxu0
    %1476 = vdwg.mxu0
    %v1477 = vsel %vm218, %v189, 0
    %1479 = vmatprep.subr.mxu0 0.0
    %1480 = vmatpush1.xpose.msra.mxu0 0.0
    %1481 = vmatprep.subr.mxu0 0.0
    %1482 = vmatpush1.xpose.msra.mxu0 0.0
    %1483 = vmatprep.subr.mxu0 0.0
    %1484 = vmatpush1.xpose.msra.mxu0 0.0
    %1485 = vmatprep.subr.mxu0 0.0
    %1486 = vmatpush1.xpose.msra.mxu0 0.0
    %1487 = vmatprep.subr.mxu0 0.0
    %1488 = vmatpush1.xpose.msra.mxu0 0.0
    %1489 = vmatprep.subr.mxu0 0.0
    %1490 = vmatpush1.xpose.msra.mxu0 0.0
    %1491 = vmatprep.subr.mxu0 0.0
    %1492 = vmatpush1.xpose.msra.mxu0 0.0
    %1493 = vmatprep.subr.mxu0 0.0
    %1494 = vmatpush1.xpose.msra.mxu0 0.0
    %1495 = vmatprep.subr.mxu0 0.0
    %1496 = vmatpush1.xpose.msra.mxu0 0.0
    %1497 = vmatprep.subr.mxu0 0.0
    %1498 = vmatpush1.xpose.msra.mxu0 0.0
    %1499 = vmatprep.subr.mxu0 0.0
    %1500 = vmatpush1.xpose.msra.mxu0 0.0
    %1501 = vmatprep.subr.mxu0 0.0
    %1502 = vmatpush1.xpose.msra.mxu0 0.0
    %1503 = vmatprep.subr.mxu0 0.0
    %1504 = vmatpush1.xpose.msra.mxu0 0.0
    %1505 = vmatprep.subr.mxu0 0.0
    %1506 = vmatpush1.xpose.msra.mxu0 0.0
    %1507 = vmatprep.subr.mxu0 0.0
    %1508 = vmatpush1.xpose.msra.mxu0 %v381
    %1509 = vmatprep.subr.mxu0 0.0
    %1510 = vmatpush1.xpose.msra.mxu0 %v378
    %1511 = vmatprep.subr.mxu0 0.0
    %1512 = vmatpush2.xpose.msra.mxu0 0.0
    %1513 = vmatprep.subr.mxu0 0.0
    %1514 = vmatpush2.xpose.msra.mxu0 0.0
    %1515 = vmatprep.subr.mxu0 0.0
    %1516 = vmatpush2.xpose.msra.mxu0 0.0
    %1517 = vmatprep.subr.mxu0 0.0
    %1518 = vmatpush2.xpose.msra.mxu0 0.0
    %1519 = vmatprep.subr.mxu0 0.0
    %1520 = vmatpush2.xpose.msra.mxu0 0.0
    %1521 = vmatprep.subr.mxu0 0.0
    %1522 = vmatpush2.xpose.msra.mxu0 0.0
    %1523 = vmatprep.subr.mxu0 0.0
    %1524 = vmatpush2.xpose.msra.mxu0 0.0
    %1525 = vmatprep.subr.mxu0 0.0
    %1526 = vmatpush2.xpose.msra.mxu0 0.0
    %1527 = vmatprep.subr.mxu0 0.0
    %1528 = vmatpush2.xpose.msra.mxu0 0.0
    %1529 = vmatprep.subr.mxu0 0.0
    %1530 = vmatpush2.xpose.msra.mxu0 0.0
    %1531 = vmatprep.subr.mxu0 0.0
    %1532 = vmatpush2.xpose.msra.mxu0 0.0
    %1533 = vmatprep.subr.mxu0 0.0
    %1534 = vmatpush2.xpose.msra.mxu0 0.0
    %1535 = vmatprep.subr.mxu0 0.0
    %1536 = vmatpush2.xpose.msra.mxu0 0.0
    %1537 = vmatprep.subr.mxu0 0.0
    %1538 = vmatpush2.xpose.msra.mxu0 0.0
    %1539 = vmatprep.subr.mxu0 0.0
    %1540 = vmatpush2.xpose.msra.mxu0 0.0
    %1541 = vmatprep.subr.mxu0 0.0
    %1542 = vmatpush2.xpose.msra.mxu0 0.0
    %1543 = vmatprep.mubr.f32.mxu0 0.0
    %1544 = vmatmul.mubr.f32.gmra.mxu0 %v1477
    %v1545 = vpop.f32.mrf.mxu0
    %v1546 = vadd.f32 0.0, %v1545
    %v1547 = vpop.f32.mrf.mxu0
    %1548 = vdwg.mxu0
    %v1549 = vsel %vm218, %v207, 0
    %1551 = vmatprep.subr.mxu0 0.0
    %1552 = vmatpush1.xpose.msra.mxu0 0.0
    %1553 = vmatprep.subr.mxu0 0.0
    %1554 = vmatpush1.xpose.msra.mxu0 0.0
    %1555 = vmatprep.subr.mxu0 0.0
    %1556 = vmatpush1.xpose.msra.mxu0 0.0
    %1557 = vmatprep.subr.mxu0 0.0
    %1558 = vmatpush1.xpose.msra.mxu0 0.0
    %1559 = vmatprep.subr.mxu0 0.0
    %1560 = vmatpush1.xpose.msra.mxu0 0.0
    %1561 = vmatprep.subr.mxu0 0.0
    %1562 = vmatpush1.xpose.msra.mxu0 0.0
    %1563 = vmatprep.subr.mxu0 0.0
    %1564 = vmatpush1.xpose.msra.mxu0 0.0
    %1565 = vmatprep.subr.mxu0 0.0
    %1566 = vmatpush1.xpose.msra.mxu0 0.0
    %1567 = vmatprep.subr.mxu0 0.0
    %1568 = vmatpush1.xpose.msra.mxu0 0.0
    %1569 = vmatprep.subr.mxu0 0.0
    %1570 = vmatpush1.xpose.msra.mxu0 0.0
    %1571 = vmatprep.subr.mxu0 0.0
    %1572 = vmatpush1.xpose.msra.mxu0 0.0
    %1573 = vmatprep.subr.mxu0 0.0
    %1574 = vmatpush1.xpose.msra.mxu0 0.0
    %1575 = vmatprep.subr.mxu0 0.0
    %1576 = vmatpush1.xpose.msra.mxu0 0.0
    %1577 = vmatprep.subr.mxu0 0.0
    %1578 = vmatpush1.xpose.msra.mxu0 0.0
    %1579 = vmatprep.subr.mxu0 0.0
    %1580 = vmatpush1.xpose.msra.mxu0 %v459
    %1581 = vmatprep.subr.mxu0 0.0
    %1582 = vmatpush1.xpose.msra.mxu0 %v456
    %1583 = vmatprep.subr.mxu0 0.0
    %1584 = vmatpush2.xpose.msra.mxu0 0.0
    %1585 = vmatprep.subr.mxu0 0.0
    %1586 = vmatpush2.xpose.msra.mxu0 0.0
    %1587 = vmatprep.subr.mxu0 0.0
    %1588 = vmatpush2.xpose.msra.mxu0 0.0
    %1589 = vmatprep.subr.mxu0 0.0
    %1590 = vmatpush2.xpose.msra.mxu0 0.0
    %1591 = vmatprep.subr.mxu0 0.0
    %1592 = vmatpush2.xpose.msra.mxu0 0.0
    %1593 = vmatprep.subr.mxu0 0.0
    %1594 = vmatpush2.xpose.msra.mxu0 0.0
    %1595 = vmatprep.subr.mxu0 0.0
    %1596 = vmatpush2.xpose.msra.mxu0 0.0
    %1597 = vmatprep.subr.mxu0 0.0
    %1598 = vmatpush2.xpose.msra.mxu0 0.0
    %1599 = vmatprep.subr.mxu0 0.0
    %1600 = vmatpush2.xpose.msra.mxu0 0.0
    %1601 = vmatprep.subr.mxu0 0.0
    %1602 = vmatpush2.xpose.msra.mxu0 0.0
    %1603 = vmatprep.subr.mxu0 0.0
    %1604 = vmatpush2.xpose.msra.mxu0 0.0
    %1605 = vmatprep.subr.mxu0 0.0
    %1606 = vmatpush2.xpose.msra.mxu0 0.0
    %1607 = vmatprep.subr.mxu0 0.0
    %1608 = vmatpush2.xpose.msra.mxu0 0.0
    %1609 = vmatprep.subr.mxu0 0.0
    %1610 = vmatpush2.xpose.msra.mxu0 0.0
    %1611 = vmatprep.subr.mxu0 0.0
    %1612 = vmatpush2.xpose.msra.mxu0 0.0
    %1613 = vmatprep.subr.mxu0 0.0
    %1614 = vmatpush2.xpose.msra.mxu0 0.0
    %1615 = vmatprep.mubr.f32.mxu0 0.0
    %1616 = vmatmul.mubr.f32.gmra.mxu0 %v1549
    %v1617 = vpop.f32.mrf.mxu0
    %v1618 = vadd.f32 0.0, %v1617
    %v1619 = vpop.f32.mrf.mxu0
    %1620 = vdwg.mxu0
    %1625 = vrot.lane.b32.xlu0 %v1402, 1
    %v1626 = vpop.permute.xlu0 %1625
    %1627 = vrot.lane.b32.xlu0 %v1474, 1
    %v1628 = vpop.permute.xlu0 %1627
    %1629 = vrot.lane.b32.xlu0 %v1546, 1
    %v1630 = vpop.permute.xlu0 %1629
    %1631 = vrot.lane.b32.xlu0 %v1618, 1
    %v1632 = vpop.permute.xlu0 %1631
    %1637 = vrot.lane.b32.xlu0 %v1402, 2
    %v1638 = vpop.permute.xlu0 %1637
    %1639 = vrot.lane.b32.xlu0 %v1474, 2
    %v1640 = vpop.permute.xlu0 %1639
    %1641 = vrot.lane.b32.xlu0 %v1546, 2
    %v1642 = vpop.permute.xlu0 %1641
    %1643 = vrot.lane.b32.xlu0 %v1618, 2
    %v1644 = vpop.permute.xlu0 %1643
    %1649 = vrot.lane.b32.xlu0 %v1402, 3
    %v1650 = vpop.permute.xlu0 %1649
    %1651 = vrot.lane.b32.xlu0 %v1474, 3
    %v1652 = vpop.permute.xlu0 %1651
    %1653 = vrot.lane.b32.xlu0 %v1546, 3
    %v1654 = vpop.permute.xlu0 %1653
    %1655 = vrot.lane.b32.xlu0 %v1618, 3
    %v1656 = vpop.permute.xlu0 %1655
    %1661 = vrot.lane.b32.xlu0 %v1402, 4
    %v1662 = vpop.permute.xlu0 %1661
    %1663 = vrot.lane.b32.xlu0 %v1474, 4
    %v1664 = vpop.permute.xlu0 %1663
    %1665 = vrot.lane.b32.xlu0 %v1546, 4
    %v1666 = vpop.permute.xlu0 %1665
    %1667 = vrot.lane.b32.xlu0 %v1618, 4
    %v1668 = vpop.permute.xlu0 %1667
    %1673 = vrot.lane.b32.xlu0 %v1402, 5
    %v1674 = vpop.permute.xlu0 %1673
    %1675 = vrot.lane.b32.xlu0 %v1474, 5
    %v1676 = vpop.permute.xlu0 %1675
    %1677 = vrot.lane.b32.xlu0 %v1546, 5
    %v1678 = vpop.permute.xlu0 %1677
    %1679 = vrot.lane.b32.xlu0 %v1618, 5
    %v1680 = vpop.permute.xlu0 %1679
    %1685 = vrot.lane.b32.xlu0 %v1402, 6
    %v1686 = vpop.permute.xlu0 %1685
    %1687 = vrot.lane.b32.xlu0 %v1474, 6
    %v1688 = vpop.permute.xlu0 %1687
    %1689 = vrot.lane.b32.xlu0 %v1546, 6
    %v1690 = vpop.permute.xlu0 %1689
    %1691 = vrot.lane.b32.xlu0 %v1618, 6
    %v1692 = vpop.permute.xlu0 %1691
    %1697 = vrot.lane.b32.xlu0 %v1402, 7
    %v1698 = vpop.permute.xlu0 %1697
    %1699 = vrot.lane.b32.xlu0 %v1474, 7
    %v1700 = vpop.permute.xlu0 %1699
    %1701 = vrot.lane.b32.xlu0 %v1546, 7
    %v1702 = vpop.permute.xlu0 %1701
    %1703 = vrot.lane.b32.xlu0 %v1618, 7
    %v1704 = vpop.permute.xlu0 %1703
    %v1709 = vsel %vm619, %v1402, %v1626
    %v1710 = vsel %vm619, %v1474, %v1628
    %v1711 = vsel %vm619, %v1546, %v1630
    %v1712 = vsel %vm619, %v1618, %v1632
    %v1713 = vsel %vm624, %v1709, %v1638
    %v1714 = vsel %vm624, %v1710, %v1640
    %v1715 = vsel %vm624, %v1711, %v1642
    %v1716 = vsel %vm624, %v1712, %v1644
    %v1717 = vsel %vm629, %v1713, %v1650
    %v1718 = vsel %vm629, %v1714, %v1652
    %v1719 = vsel %vm629, %v1715, %v1654
    %v1720 = vsel %vm629, %v1716, %v1656
    %v1721 = vsel %vm634, %v1717, %v1662
    %v1722 = vsel %vm634, %v1718, %v1664
    %v1723 = vsel %vm634, %v1719, %v1666
    %v1724 = vsel %vm634, %v1720, %v1668
    %v1725 = vsel %vm639, %v1721, %v1674
    %v1726 = vsel %vm639, %v1722, %v1676
    %v1727 = vsel %vm639, %v1723, %v1678
    %v1728 = vsel %vm639, %v1724, %v1680
    %v1729 = vsel %vm644, %v1725, %v1686
    %v1730 = vsel %vm644, %v1726, %v1688
    %v1731 = vsel %vm644, %v1727, %v1690
    %v1732 = vsel %vm644, %v1728, %v1692
    %v1733 = vsel %vm649, %v1729, %v1698
    %v1734 = vsel %vm649, %v1730, %v1700
    %v1735 = vsel %vm649, %v1731, %v1702
    %v1736 = vsel %vm649, %v1732, %v1704
    %1738 = vrot.lane.b32.xlu0 %v1733, 120
    %v1739 = vpop.permute.xlu0 %1738
    %v1741 = vsel %vm218, %v141, 0
    %v1743 = vsel %vm218, %v153, 0
    %1745 = vmatprep.subr.mxu0 0.0
    %1746 = vmatpush1.xpose.msra.mxu0 0.0
    %1747 = vmatprep.subr.mxu0 0.0
    %1748 = vmatpush1.xpose.msra.mxu0 0.0
    %1749 = vmatprep.subr.mxu0 0.0
    %1750 = vmatpush1.xpose.msra.mxu0 0.0
    %1751 = vmatprep.subr.mxu0 0.0
    %1752 = vmatpush1.xpose.msra.mxu0 0.0
    %1753 = vmatprep.subr.mxu0 0.0
    %1754 = vmatpush1.xpose.msra.mxu0 0.0
    %1755 = vmatprep.subr.mxu0 0.0
    %1756 = vmatpush1.xpose.msra.mxu0 0.0
    %1757 = vmatprep.subr.mxu0 0.0
    %1758 = vmatpush1.xpose.msra.mxu0 0.0
    %1759 = vmatprep.subr.mxu0 0.0
    %1760 = vmatpush1.xpose.msra.mxu0 0.0
    %1761 = vmatprep.subr.mxu0 0.0
    %1762 = vmatpush1.xpose.msra.mxu0 0.0
    %1763 = vmatprep.subr.mxu0 0.0
    %1764 = vmatpush1.xpose.msra.mxu0 0.0
    %1765 = vmatprep.subr.mxu0 0.0
    %1766 = vmatpush1.xpose.msra.mxu0 0.0
    %1767 = vmatprep.subr.mxu0 0.0
    %1768 = vmatpush1.xpose.msra.mxu0 0.0
    %1769 = vmatprep.subr.mxu0 0.0
    %1770 = vmatpush1.xpose.msra.mxu0 0.0
    %1771 = vmatprep.subr.mxu0 0.0
    %1772 = vmatpush1.xpose.msra.mxu0 0.0
    %1773 = vmatprep.subr.mxu0 0.0
    %1774 = vmatpush1.xpose.msra.mxu0 0.0
    %1775 = vmatprep.subr.mxu0 0.0
    %1776 = vmatpush1.xpose.msra.mxu0 %v1743
    %1777 = vmatprep.subr.mxu0 0.0
    %1778 = vmatpush2.xpose.msra.mxu0 0.0
    %1779 = vmatprep.subr.mxu0 0.0
    %1780 = vmatpush2.xpose.msra.mxu0 0.0
    %1781 = vmatprep.subr.mxu0 0.0
    %1782 = vmatpush2.xpose.msra.mxu0 0.0
    %1783 = vmatprep.subr.mxu0 0.0
    %1784 = vmatpush2.xpose.msra.mxu0 0.0
    %1785 = vmatprep.subr.mxu0 0.0
    %1786 = vmatpush2.xpose.msra.mxu0 0.0
    %1787 = vmatprep.subr.mxu0 0.0
    %1788 = vmatpush2.xpose.msra.mxu0 0.0
    %1789 = vmatprep.subr.mxu0 0.0
    %1790 = vmatpush2.xpose.msra.mxu0 0.0
    %1791 = vmatprep.subr.mxu0 0.0
    %1792 = vmatpush2.xpose.msra.mxu0 0.0
    %1793 = vmatprep.subr.mxu0 0.0
    %1794 = vmatpush2.xpose.msra.mxu0 0.0
    %1795 = vmatprep.subr.mxu0 0.0
    %1796 = vmatpush2.xpose.msra.mxu0 0.0
    %1797 = vmatprep.subr.mxu0 0.0
    %1798 = vmatpush2.xpose.msra.mxu0 0.0
    %1799 = vmatprep.subr.mxu0 0.0
    %1800 = vmatpush2.xpose.msra.mxu0 0.0
    %1801 = vmatprep.subr.mxu0 0.0
    %1802 = vmatpush2.xpose.msra.mxu0 0.0
    %1803 = vmatprep.subr.mxu0 0.0
    %1804 = vmatpush2.xpose.msra.mxu0 0.0
    %1805 = vmatprep.subr.mxu0 0.0
    %1806 = vmatpush2.xpose.msra.mxu0 0.0
    %1807 = vmatprep.subr.mxu0 0.0
    %1808 = vmatpush2.xpose.msra.mxu0 0.0
    %1809 = vmatprep.mubr.f32.mxu0 0.0
    %1810 = vmatmul.mubr.f32.gmra.mxu0 %v1741
    %v1811 = vpop.f32.mrf.mxu0
    %v1812 = vadd.f32 %v1739, %v1811
    %v1813 = vpop.f32.mrf.mxu0
    %1814 = vdwg.mxu0
    %1816 = vrot.lane.b32.xlu0 %v1734, 120
    %v1817 = vpop.permute.xlu0 %1816
    %v1819 = vsel %vm218, %v167, 0
    %v1821 = vsel %vm218, %v175, 0
    %1823 = vmatprep.subr.mxu0 0.0
    %1824 = vmatpush1.xpose.msra.mxu0 0.0
    %1825 = vmatprep.subr.mxu0 0.0
    %1826 = vmatpush1.xpose.msra.mxu0 0.0
    %1827 = vmatprep.subr.mxu0 0.0
    %1828 = vmatpush1.xpose.msra.mxu0 0.0
    %1829 = vmatprep.subr.mxu0 0.0
    %1830 = vmatpush1.xpose.msra.mxu0 0.0
    %1831 = vmatprep.subr.mxu0 0.0
    %1832 = vmatpush1.xpose.msra.mxu0 0.0
    %1833 = vmatprep.subr.mxu0 0.0
    %1834 = vmatpush1.xpose.msra.mxu0 0.0
    %1835 = vmatprep.subr.mxu0 0.0
    %1836 = vmatpush1.xpose.msra.mxu0 0.0
    %1837 = vmatprep.subr.mxu0 0.0
    %1838 = vmatpush1.xpose.msra.mxu0 0.0
    %1839 = vmatprep.subr.mxu0 0.0
    %1840 = vmatpush1.xpose.msra.mxu0 0.0
    %1841 = vmatprep.subr.mxu0 0.0
    %1842 = vmatpush1.xpose.msra.mxu0 0.0
    %1843 = vmatprep.subr.mxu0 0.0
    %1844 = vmatpush1.xpose.msra.mxu0 0.0
    %1845 = vmatprep.subr.mxu0 0.0
    %1846 = vmatpush1.xpose.msra.mxu0 0.0
    %1847 = vmatprep.subr.mxu0 0.0
    %1848 = vmatpush1.xpose.msra.mxu0 0.0
    %1849 = vmatprep.subr.mxu0 0.0
    %1850 = vmatpush1.xpose.msra.mxu0 0.0
    %1851 = vmatprep.subr.mxu0 0.0
    %1852 = vmatpush1.xpose.msra.mxu0 0.0
    %1853 = vmatprep.subr.mxu0 0.0
    %1854 = vmatpush1.xpose.msra.mxu0 %v1821
    %1855 = vmatprep.subr.mxu0 0.0
    %1856 = vmatpush2.xpose.msra.mxu0 0.0
    %1857 = vmatprep.subr.mxu0 0.0
    %1858 = vmatpush2.xpose.msra.mxu0 0.0
    %1859 = vmatprep.subr.mxu0 0.0
    %1860 = vmatpush2.xpose.msra.mxu0 0.0
    %1861 = vmatprep.subr.mxu0 0.0
    %1862 = vmatpush2.xpose.msra.mxu0 0.0
    %1863 = vmatprep.subr.mxu0 0.0
    %1864 = vmatpush2.xpose.msra.mxu0 0.0
    %1865 = vmatprep.subr.mxu0 0.0
    %1866 = vmatpush2.xpose.msra.mxu0 0.0
    %1867 = vmatprep.subr.mxu0 0.0
    %1868 = vmatpush2.xpose.msra.mxu0 0.0
    %1869 = vmatprep.subr.mxu0 0.0
    %1870 = vmatpush2.xpose.msra.mxu0 0.0
    %1871 = vmatprep.subr.mxu0 0.0
    %1872 = vmatpush2.xpose.msra.mxu0 0.0
    %1873 = vmatprep.subr.mxu0 0.0
    %1874 = vmatpush2.xpose.msra.mxu0 0.0
    %1875 = vmatprep.subr.mxu0 0.0
    %1876 = vmatpush2.xpose.msra.mxu0 0.0
    %1877 = vmatprep.subr.mxu0 0.0
    %1878 = vmatpush2.xpose.msra.mxu0 0.0
    %1879 = vmatprep.subr.mxu0 0.0
    %1880 = vmatpush2.xpose.msra.mxu0 0.0
    %1881 = vmatprep.subr.mxu0 0.0
    %1882 = vmatpush2.xpose.msra.mxu0 0.0
    %1883 = vmatprep.subr.mxu0 0.0
    %1884 = vmatpush2.xpose.msra.mxu0 0.0
    %1885 = vmatprep.subr.mxu0 0.0
    %1886 = vmatpush2.xpose.msra.mxu0 0.0
    %1887 = vmatprep.mubr.f32.mxu0 0.0
    %1888 = vmatmul.mubr.f32.gmra.mxu0 %v1819
    %v1889 = vpop.f32.mrf.mxu0
    %v1890 = vadd.f32 %v1817, %v1889
    %v1891 = vpop.f32.mrf.mxu0
    %1892 = vdwg.mxu0
    %1894 = vrot.lane.b32.xlu0 %v1735, 120
    %v1895 = vpop.permute.xlu0 %1894
    %v1897 = vsel %vm218, %v185, 0
    %v1899 = vsel %vm218, %v193, 0
    %1901 = vmatprep.subr.mxu0 0.0
    %1902 = vmatpush1.xpose.msra.mxu0 0.0
    %1903 = vmatprep.subr.mxu0 0.0
    %1904 = vmatpush1.xpose.msra.mxu0 0.0
    %1905 = vmatprep.subr.mxu0 0.0
    %1906 = vmatpush1.xpose.msra.mxu0 0.0
    %1907 = vmatprep.subr.mxu0 0.0
    %1908 = vmatpush1.xpose.msra.mxu0 0.0
    %1909 = vmatprep.subr.mxu0 0.0
    %1910 = vmatpush1.xpose.msra.mxu0 0.0
    %1911 = vmatprep.subr.mxu0 0.0
    %1912 = vmatpush1.xpose.msra.mxu0 0.0
    %1913 = vmatprep.subr.mxu0 0.0
    %1914 = vmatpush1.xpose.msra.mxu0 0.0
    %1915 = vmatprep.subr.mxu0 0.0
    %1916 = vmatpush1.xpose.msra.mxu0 0.0
    %1917 = vmatprep.subr.mxu0 0.0
    %1918 = vmatpush1.xpose.msra.mxu0 0.0
    %1919 = vmatprep.subr.mxu0 0.0
    %1920 = vmatpush1.xpose.msra.mxu0 0.0
    %1921 = vmatprep.subr.mxu0 0.0
    %1922 = vmatpush1.xpose.msra.mxu0 0.0
    %1923 = vmatprep.subr.mxu0 0.0
    %1924 = vmatpush1.xpose.msra.mxu0 0.0
    %1925 = vmatprep.subr.mxu0 0.0
    %1926 = vmatpush1.xpose.msra.mxu0 0.0
    %1927 = vmatprep.subr.mxu0 0.0
    %1928 = vmatpush1.xpose.msra.mxu0 0.0
    %1929 = vmatprep.subr.mxu0 0.0
    %1930 = vmatpush1.xpose.msra.mxu0 0.0
    %1931 = vmatprep.subr.mxu0 0.0
    %1932 = vmatpush1.xpose.msra.mxu0 %v1899
    %1933 = vmatprep.subr.mxu0 0.0
    %1934 = vmatpush2.xpose.msra.mxu0 0.0
    %1935 = vmatprep.subr.mxu0 0.0
    %1936 = vmatpush2.xpose.msra.mxu0 0.0
    %1937 = vmatprep.subr.mxu0 0.0
    %1938 = vmatpush2.xpose.msra.mxu0 0.0
    %1939 = vmatprep.subr.mxu0 0.0
    %1940 = vmatpush2.xpose.msra.mxu0 0.0
    %1941 = vmatprep.subr.mxu0 0.0
    %1942 = vmatpush2.xpose.msra.mxu0 0.0
    %1943 = vmatprep.subr.mxu0 0.0
    %1944 = vmatpush2.xpose.msra.mxu0 0.0
    %1945 = vmatprep.subr.mxu0 0.0
    %1946 = vmatpush2.xpose.msra.mxu0 0.0
    %1947 = vmatprep.subr.mxu0 0.0
    %1948 = vmatpush2.xpose.msra.mxu0 0.0
    %1949 = vmatprep.subr.mxu0 0.0
    %1950 = vmatpush2.xpose.msra.mxu0 0.0
    %1951 = vmatprep.subr.mxu0 0.0
    %1952 = vmatpush2.xpose.msra.mxu0 0.0
    %1953 = vmatprep.subr.mxu0 0.0
    %1954 = vmatpush2.xpose.msra.mxu0 0.0
    %1955 = vmatprep.subr.mxu0 0.0
    %1956 = vmatpush2.xpose.msra.mxu0 0.0
    %1957 = vmatprep.subr.mxu0 0.0
    %1958 = vmatpush2.xpose.msra.mxu0 0.0
    %1959 = vmatprep.subr.mxu0 0.0
    %1960 = vmatpush2.xpose.msra.mxu0 0.0
    %1961 = vmatprep.subr.mxu0 0.0
    %1962 = vmatpush2.xpose.msra.mxu0 0.0
    %1963 = vmatprep.subr.mxu0 0.0
    %1964 = vmatpush2.xpose.msra.mxu0 0.0
    %1965 = vmatprep.mubr.f32.mxu0 0.0
    %1966 = vmatmul.mubr.f32.gmra.mxu0 %v1897
    %v1967 = vpop.f32.mrf.mxu0
    %v1968 = vadd.f32 %v1895, %v1967
    %v1969 = vpop.f32.mrf.mxu0
    %1970 = vdwg.mxu0
    %1972 = vrot.lane.b32.xlu0 %v1736, 120
    %v1973 = vpop.permute.xlu0 %1972
    %v1975 = vsel %vm218, %v203, 0
    %v1977 = vsel %vm218, %v211, 0
    %1979 = vmatprep.subr.mxu0 0.0
    %1980 = vmatpush1.xpose.msra.mxu0 0.0
    %1981 = vmatprep.subr.mxu0 0.0
    %1982 = vmatpush1.xpose.msra.mxu0 0.0
    %1983 = vmatprep.subr.mxu0 0.0
    %1984 = vmatpush1.xpose.msra.mxu0 0.0
    %1985 = vmatprep.subr.mxu0 0.0
    %1986 = vmatpush1.xpose.msra.mxu0 0.0
    %1987 = vmatprep.subr.mxu0 0.0
    %1988 = vmatpush1.xpose.msra.mxu0 0.0
    %1989 = vmatprep.subr.mxu0 0.0
    %1990 = vmatpush1.xpose.msra.mxu0 0.0
    %1991 = vmatprep.subr.mxu0 0.0
    %1992 = vmatpush1.xpose.msra.mxu0 0.0
    %1993 = vmatprep.subr.mxu0 0.0
    %1994 = vmatpush1.xpose.msra.mxu0 0.0
    %1995 = vmatprep.subr.mxu0 0.0
    %1996 = vmatpush1.xpose.msra.mxu0 0.0
    %1997 = vmatprep.subr.mxu0 0.0
    %1998 = vmatpush1.xpose.msra.mxu0 0.0
    %1999 = vmatprep.subr.mxu0 0.0
    %2000 = vmatpush1.xpose.msra.mxu0 0.0
    %2001 = vmatprep.subr.mxu0 0.0
    %2002 = vmatpush1.xpose.msra.mxu0 0.0
    %2003 = vmatprep.subr.mxu0 0.0
    %2004 = vmatpush1.xpose.msra.mxu0 0.0
    %2005 = vmatprep.subr.mxu0 0.0
    %2006 = vmatpush1.xpose.msra.mxu0 0.0
    %2007 = vmatprep.subr.mxu0 0.0
    %2008 = vmatpush1.xpose.msra.mxu0 0.0
    %2009 = vmatprep.subr.mxu0 0.0
    %2010 = vmatpush1.xpose.msra.mxu0 %v1977
    %2011 = vmatprep.subr.mxu0 0.0
    %2012 = vmatpush2.xpose.msra.mxu0 0.0
    %2013 = vmatprep.subr.mxu0 0.0
    %2014 = vmatpush2.xpose.msra.mxu0 0.0
    %2015 = vmatprep.subr.mxu0 0.0
    %2016 = vmatpush2.xpose.msra.mxu0 0.0
    %2017 = vmatprep.subr.mxu0 0.0
    %2018 = vmatpush2.xpose.msra.mxu0 0.0
    %2019 = vmatprep.subr.mxu0 0.0
    %2020 = vmatpush2.xpose.msra.mxu0 0.0
    %2021 = vmatprep.subr.mxu0 0.0
    %2022 = vmatpush2.xpose.msra.mxu0 0.0
    %2023 = vmatprep.subr.mxu0 0.0
    %2024 = vmatpush2.xpose.msra.mxu0 0.0
    %2025 = vmatprep.subr.mxu0 0.0
    %2026 = vmatpush2.xpose.msra.mxu0 0.0
    %2027 = vmatprep.subr.mxu0 0.0
    %2028 = vmatpush2.xpose.msra.mxu0 0.0
    %2029 = vmatprep.subr.mxu0 0.0
    %2030 = vmatpush2.xpose.msra.mxu0 0.0
    %2031 = vmatprep.subr.mxu0 0.0
    %2032 = vmatpush2.xpose.msra.mxu0 0.0
    %2033 = vmatprep.subr.mxu0 0.0
    %2034 = vmatpush2.xpose.msra.mxu0 0.0
    %2035 = vmatprep.subr.mxu0 0.0
    %2036 = vmatpush2.xpose.msra.mxu0 0.0
    %2037 = vmatprep.subr.mxu0 0.0
    %2038 = vmatpush2.xpose.msra.mxu0 0.0
    %2039 = vmatprep.subr.mxu0 0.0
    %2040 = vmatpush2.xpose.msra.mxu0 0.0
    %2041 = vmatprep.subr.mxu0 0.0
    %2042 = vmatpush2.xpose.msra.mxu0 0.0
    %2043 = vmatprep.mubr.f32.mxu0 0.0
    %2044 = vmatmul.mubr.f32.gmra.mxu0 %v1975
    %v2045 = vpop.f32.mrf.mxu0
    %v2046 = vadd.f32 %v1973, %v2045
    %v2047 = vpop.f32.mrf.mxu0
    %2048 = vdwg.mxu0
    %v2049 = vmul.f32 %v1812, 0.35355338
    %v2050 = vmul.f32 %v1890, 0.35355338
    %v2051 = vmul.f32 %v1968, 0.35355338
    %v2052 = vmul.f32 %v2046, 0.35355338
    %v2054 = vlaneseq
    %v2055 = vshrl.u32 %v2054, 7
    %v2056 = vsub.s32 0, %v2055
    %v2057 = vrot.slane %v40, %v2056
    %v2059 = vadd.f32 %v2049, %v2057
    %v2060 = vadd.f32 %v2050, %v2057
    %v2061 = vadd.f32 %v2051, %v2057
    %v2062 = vadd.f32 %v2052, %v2057
    %v2063 = vsel %vm218, %v2059, -inf
    %2064 = vmax.xlane.f32.xlu0 %v2063
    %v2065 = vpop.xlane.xlu0 %2064
    %v2066 = vsel %vm218, %v2060, -inf
    %2067 = vmax.xlane.f32.xlu0 %v2066
    %v2068 = vpop.xlane.xlu0 %2067
    %v2069 = vsel %vm218, %v2061, -inf
    %2070 = vmax.xlane.f32.xlu0 %v2069
    %v2071 = vpop.xlane.xlu0 %2070
    %v2072 = vsel %vm218, %v2062, -inf
    %2073 = vmax.xlane.f32.xlu0 %v2072
    %v2074 = vpop.xlane.xlu0 %2073
    %v2075 = vsub.f32 %v2059, %v2065
    %v2076 = vsub.f32 %v2060, %v2068
    %v2077 = vsub.f32 %v2061, %v2071
    %v2078 = vsub.f32 %v2062, %v2074
    %v2079 = vmul.f32 %v2075, 1.442695
    %v2080 = vpow.pop %v2079
    %v2081 = vmul.f32 %v2076, 1.442695
    %v2082 = vpow.pop %v2081
    %v2083 = vmul.f32 %v2077, 1.442695
    %v2084 = vpow.pop %v2083
    %v2085 = vmul.f32 %v2078, 1.442695
    %v2086 = vpow.pop %v2085
    %v2087 = vsel %vm218, %v2080, 0.0
    %2088 = vadd.xlane.f32.xlu0 %v2087
    %v2089 = vpop.xlane.xlu0 %2088
    %v2090 = vsel %vm218, %v2082, 0.0
    %2091 = vadd.xlane.f32.xlu0 %v2090
    %v2092 = vpop.xlane.xlu0 %2091
    %v2093 = vsel %vm218, %v2084, 0.0
    %2094 = vadd.xlane.f32.xlu0 %v2093
    %v2095 = vpop.xlane.xlu0 %2094
    %v2096 = vsel %vm218, %v2086, 0.0
    %2097 = vadd.xlane.f32.xlu0 %v2096
    %v2098 = vpop.xlane.xlu0 %2097
    %v2099 = vrcp.pop %v2089
    %v2100 = vmul.f32 %v2080, %v2099
    %v2101 = vrcp.pop %v2092
    %v2102 = vmul.f32 %v2082, %v2101
    %v2103 = vrcp.pop %v2095
    %v2104 = vmul.f32 %v2084, %v2103
    %v2105 = vrcp.pop %v2098
    %v2106 = vmul.f32 %v2086, %v2105
    %v2108 = vsel %vm218, %v2100, 0
    %2110 = vmatprep.subr.mxu0 0.0
    %2111 = vmatpush1.msra.mxu0 0.0
    %2112 = vmatprep.subr.mxu0 0.0
    %2113 = vmatpush1.msra.mxu0 0.0
    %2114 = vmatprep.subr.mxu0 0.0
    %2115 = vmatpush1.msra.mxu0 0.0
    %2116 = vmatprep.subr.mxu0 0.0
    %2117 = vmatpush1.msra.mxu0 0.0
    %2118 = vmatprep.subr.mxu0 0.0
    %2119 = vmatpush1.msra.mxu0 0.0
    %2120 = vmatprep.subr.mxu0 0.0
    %2121 = vmatpush1.msra.mxu0 0.0
    %2122 = vmatprep.subr.mxu0 0.0
    %2123 = vmatpush1.msra.mxu0 0.0
    %2124 = vmatprep.subr.mxu0 0.0
    %2125 = vmatpush1.msra.mxu0 0.0
    %2126 = vmatprep.subr.mxu0 0.0
    %2127 = vmatpush1.msra.mxu0 0.0
    %2128 = vmatprep.subr.mxu0 0.0
    %2129 = vmatpush1.msra.mxu0 0.0
    %2130 = vmatprep.subr.mxu0 0.0
    %2131 = vmatpush1.msra.mxu0 0.0
    %2132 = vmatprep.subr.mxu0 0.0
    %2133 = vmatpush1.msra.mxu0 0.0
    %2134 = vmatprep.subr.mxu0 0.0
    %2135 = vmatpush1.msra.mxu0 0.0
    %2136 = vmatprep.subr.mxu0 0.0
    %2137 = vmatpush1.msra.mxu0 0.0
    %2138 = vmatprep.subr.mxu0 0.0
    %2139 = vmatpush1.msra.mxu0 0.0
    %2140 = vmatprep.subr.mxu0 0.0
    %2141 = vmatpush1.msra.mxu0 %v157
    %2142 = vmatprep.subr.mxu0 0.0
    %2143 = vmatpush2.msra.mxu0 0.0
    %2144 = vmatprep.subr.mxu0 0.0
    %2145 = vmatpush2.msra.mxu0 0.0
    %2146 = vmatprep.subr.mxu0 0.0
    %2147 = vmatpush2.msra.mxu0 0.0
    %2148 = vmatprep.subr.mxu0 0.0
    %2149 = vmatpush2.msra.mxu0 0.0
    %2150 = vmatprep.subr.mxu0 0.0
    %2151 = vmatpush2.msra.mxu0 0.0
    %2152 = vmatprep.subr.mxu0 0.0
    %2153 = vmatpush2.msra.mxu0 0.0
    %2154 = vmatprep.subr.mxu0 0.0
    %2155 = vmatpush2.msra.mxu0 0.0
    %2156 = vmatprep.subr.mxu0 0.0
    %2157 = vmatpush2.msra.mxu0 0.0
    %2158 = vmatprep.subr.mxu0 0.0
    %2159 = vmatpush2.msra.mxu0 0.0
    %2160 = vmatprep.subr.mxu0 0.0
    %2161 = vmatpush2.msra.mxu0 0.0
    %2162 = vmatprep.subr.mxu0 0.0
    %2163 = vmatpush2.msra.mxu0 0.0
    %2164 = vmatprep.subr.mxu0 0.0
    %2165 = vmatpush2.msra.mxu0 0.0
    %2166 = vmatprep.subr.mxu0 0.0
    %2167 = vmatpush2.msra.mxu0 0.0
    %2168 = vmatprep.subr.mxu0 0.0
    %2169 = vmatpush2.msra.mxu0 0.0
    %2170 = vmatprep.subr.mxu0 0.0
    %2171 = vmatpush2.msra.mxu0 0.0
    %2172 = vmatprep.subr.mxu0 0.0
    %2173 = vmatpush2.msra.mxu0 0.0
    %2174 = vmatprep.mubr.f32.mxu0 0.0
    %2175 = vmatmul.mubr.f32.gmra.mxu0 %v2108
    %v2176 = vpop.f32.mrf.mxu0
    %v2177 = vadd.f32 0.0, %v2176
    %v2178 = vpop.f32.mrf.mxu0
    %2179 = vdwg.mxu0
    %v2181 = vsel %vm218, %v2102, 0
    %2183 = vmatprep.subr.mxu0 0.0
    %2184 = vmatpush1.msra.mxu0 0.0
    %2185 = vmatprep.subr.mxu0 0.0
    %2186 = vmatpush1.msra.mxu0 0.0
    %2187 = vmatprep.subr.mxu0 0.0
    %2188 = vmatpush1.msra.mxu0 0.0
    %2189 = vmatprep.subr.mxu0 0.0
    %2190 = vmatpush1.msra.mxu0 0.0
    %2191 = vmatprep.subr.mxu0 0.0
    %2192 = vmatpush1.msra.mxu0 0.0
    %2193 = vmatprep.subr.mxu0 0.0
    %2194 = vmatpush1.msra.mxu0 0.0
    %2195 = vmatprep.subr.mxu0 0.0
    %2196 = vmatpush1.msra.mxu0 0.0
    %2197 = vmatprep.subr.mxu0 0.0
    %2198 = vmatpush1.msra.mxu0 0.0
    %2199 = vmatprep.subr.mxu0 0.0
    %2200 = vmatpush1.msra.mxu0 0.0
    %2201 = vmatprep.subr.mxu0 0.0
    %2202 = vmatpush1.msra.mxu0 0.0
    %2203 = vmatprep.subr.mxu0 0.0
    %2204 = vmatpush1.msra.mxu0 0.0
    %2205 = vmatprep.subr.mxu0 0.0
    %2206 = vmatpush1.msra.mxu0 0.0
    %2207 = vmatprep.subr.mxu0 0.0
    %2208 = vmatpush1.msra.mxu0 0.0
    %2209 = vmatprep.subr.mxu0 0.0
    %2210 = vmatpush1.msra.mxu0 0.0
    %2211 = vmatprep.subr.mxu0 0.0
    %2212 = vmatpush1.msra.mxu0 0.0
    %2213 = vmatprep.subr.mxu0 0.0
    %2214 = vmatpush1.msra.mxu0 %v179
    %2215 = vmatprep.subr.mxu0 0.0
    %2216 = vmatpush2.msra.mxu0 0.0
    %2217 = vmatprep.subr.mxu0 0.0
    %2218 = vmatpush2.msra.mxu0 0.0
    %2219 = vmatprep.subr.mxu0 0.0
    %2220 = vmatpush2.msra.mxu0 0.0
    %2221 = vmatprep.subr.mxu0 0.0
    %2222 = vmatpush2.msra.mxu0 0.0
    %2223 = vmatprep.subr.mxu0 0.0
    %2224 = vmatpush2.msra.mxu0 0.0
    %2225 = vmatprep.subr.mxu0 0.0
    %2226 = vmatpush2.msra.mxu0 0.0
    %2227 = vmatprep.subr.mxu0 0.0
    %2228 = vmatpush2.msra.mxu0 0.0
    %2229 = vmatprep.subr.mxu0 0.0
    %2230 = vmatpush2.msra.mxu0 0.0
    %2231 = vmatprep.subr.mxu0 0.0
    %2232 = vmatpush2.msra.mxu0 0.0
    %2233 = vmatprep.subr.mxu0 0.0
    %2234 = vmatpush2.msra.mxu0 0.0
    %2235 = vmatprep.subr.mxu0 0.0
    %2236 = vmatpush2.msra.mxu0 0.0
    %2237 = vmatprep.subr.mxu0 0.0
    %2238 = vmatpush2.msra.mxu0 0.0
    %2239 = vmatprep.subr.mxu0 0.0
    %2240 = vmatpush2.msra.mxu0 0.0
    %2241 = vmatprep.subr.mxu0 0.0
    %2242 = vmatpush2.msra.mxu0 0.0
    %2243 = vmatprep.subr.mxu0 0.0
    %2244 = vmatpush2.msra.mxu0 0.0
    %2245 = vmatprep.subr.mxu0 0.0
    %2246 = vmatpush2.msra.mxu0 0.0
    %2247 = vmatprep.mubr.f32.mxu0 0.0
    %2248 = vmatmul.mubr.f32.gmra.mxu0 %v2181
    %v2249 = vpop.f32.mrf.mxu0
    %v2250 = vadd.f32 0.0, %v2249
    %v2251 = vpop.f32.mrf.mxu0
    %2252 = vdwg.mxu0
    %v2254 = vsel %vm218, %v2104, 0
    %2256 = vmatprep.subr.mxu0 0.0
    %2257 = vmatpush1.msra.mxu0 0.0
    %2258 = vmatprep.subr.mxu0 0.0
    %2259 = vmatpush1.msra.mxu0 0.0
    %2260 = vmatprep.subr.mxu0 0.0
    %2261 = vmatpush1.msra.mxu0 0.0
    %2262 = vmatprep.subr.mxu0 0.0
    %2263 = vmatpush1.msra.mxu0 0.0
    %2264 = vmatprep.subr.mxu0 0.0
    %2265 = vmatpush1.msra.mxu0 0.0
    %2266 = vmatprep.subr.mxu0 0.0
    %2267 = vmatpush1.msra.mxu0 0.0
    %2268 = vmatprep.subr.mxu0 0.0
    %2269 = vmatpush1.msra.mxu0 0.0
    %2270 = vmatprep.subr.mxu0 0.0
    %2271 = vmatpush1.msra.mxu0 0.0
    %2272 = vmatprep.subr.mxu0 0.0
    %2273 = vmatpush1.msra.mxu0 0.0
    %2274 = vmatprep.subr.mxu0 0.0
    %2275 = vmatpush1.msra.mxu0 0.0
    %2276 = vmatprep.subr.mxu0 0.0
    %2277 = vmatpush1.msra.mxu0 0.0
    %2278 = vmatprep.subr.mxu0 0.0
    %2279 = vmatpush1.msra.mxu0 0.0
    %2280 = vmatprep.subr.mxu0 0.0
    %2281 = vmatpush1.msra.mxu0 0.0
    %2282 = vmatprep.subr.mxu0 0.0
    %2283 = vmatpush1.msra.mxu0 0.0
    %2284 = vmatprep.subr.mxu0 0.0
    %2285 = vmatpush1.msra.mxu0 0.0
    %2286 = vmatprep.subr.mxu0 0.0
    %2287 = vmatpush1.msra.mxu0 %v197
    %2288 = vmatprep.subr.mxu0 0.0
    %2289 = vmatpush2.msra.mxu0 0.0
    %2290 = vmatprep.subr.mxu0 0.0
    %2291 = vmatpush2.msra.mxu0 0.0
    %2292 = vmatprep.subr.mxu0 0.0
    %2293 = vmatpush2.msra.mxu0 0.0
    %2294 = vmatprep.subr.mxu0 0.0
    %2295 = vmatpush2.msra.mxu0 0.0
    %2296 = vmatprep.subr.mxu0 0.0
    %2297 = vmatpush2.msra.mxu0 0.0
    %2298 = vmatprep.subr.mxu0 0.0
    %2299 = vmatpush2.msra.mxu0 0.0
    %2300 = vmatprep.subr.mxu0 0.0
    %2301 = vmatpush2.msra.mxu0 0.0
    %2302 = vmatprep.subr.mxu0 0.0
    %2303 = vmatpush2.msra.mxu0 0.0
    %2304 = vmatprep.subr.mxu0 0.0
    %2305 = vmatpush2.msra.mxu0 0.0
    %2306 = vmatprep.subr.mxu0 0.0
    %2307 = vmatpush2.msra.mxu0 0.0
    %2308 = vmatprep.subr.mxu0 0.0
    %2309 = vmatpush2.msra.mxu0 0.0
    %2310 = vmatprep.subr.mxu0 0.0
    %2311 = vmatpush2.msra.mxu0 0.0
    %2312 = vmatprep.subr.mxu0 0.0
    %2313 = vmatpush2.msra.mxu0 0.0
    %2314 = vmatprep.subr.mxu0 0.0
    %2315 = vmatpush2.msra.mxu0 0.0
    %2316 = vmatprep.subr.mxu0 0.0
    %2317 = vmatpush2.msra.mxu0 0.0
    %2318 = vmatprep.subr.mxu0 0.0
    %2319 = vmatpush2.msra.mxu0 0.0
    %2320 = vmatprep.mubr.f32.mxu0 0.0
    %2321 = vmatmul.mubr.f32.gmra.mxu0 %v2254
    %v2322 = vpop.f32.mrf.mxu0
    %v2323 = vadd.f32 0.0, %v2322
    %v2324 = vpop.f32.mrf.mxu0
    %2325 = vdwg.mxu0
    %v2327 = vsel %vm218, %v2106, 0
    %2329 = vmatprep.subr.mxu0 0.0
    %2330 = vmatpush1.msra.mxu0 0.0
    %2331 = vmatprep.subr.mxu0 0.0
    %2332 = vmatpush1.msra.mxu0 0.0
    %2333 = vmatprep.subr.mxu0 0.0
    %2334 = vmatpush1.msra.mxu0 0.0
    %2335 = vmatprep.subr.mxu0 0.0
    %2336 = vmatpush1.msra.mxu0 0.0
    %2337 = vmatprep.subr.mxu0 0.0
    %2338 = vmatpush1.msra.mxu0 0.0
    %2339 = vmatprep.subr.mxu0 0.0
    %2340 = vmatpush1.msra.mxu0 0.0
    %2341 = vmatprep.subr.mxu0 0.0
    %2342 = vmatpush1.msra.mxu0 0.0
    %2343 = vmatprep.subr.mxu0 0.0
    %2344 = vmatpush1.msra.mxu0 0.0
    %2345 = vmatprep.subr.mxu0 0.0
    %2346 = vmatpush1.msra.mxu0 0.0
    %2347 = vmatprep.subr.mxu0 0.0
    %2348 = vmatpush1.msra.mxu0 0.0
    %2349 = vmatprep.subr.mxu0 0.0
    %2350 = vmatpush1.msra.mxu0 0.0
    %2351 = vmatprep.subr.mxu0 0.0
    %2352 = vmatpush1.msra.mxu0 0.0
    %2353 = vmatprep.subr.mxu0 0.0
    %2354 = vmatpush1.msra.mxu0 0.0
    %2355 = vmatprep.subr.mxu0 0.0
    %2356 = vmatpush1.msra.mxu0 0.0
    %2357 = vmatprep.subr.mxu0 0.0
    %2358 = vmatpush1.msra.mxu0 0.0
    %2359 = vmatprep.subr.mxu0 0.0
    %2360 = vmatpush1.msra.mxu0 %v215
    %2361 = vmatprep.subr.mxu0 0.0
    %2362 = vmatpush2.msra.mxu0 0.0
    %2363 = vmatprep.subr.mxu0 0.0
    %2364 = vmatpush2.msra.mxu0 0.0
    %2365 = vmatprep.subr.mxu0 0.0
    %2366 = vmatpush2.msra.mxu0 0.0
    %2367 = vmatprep.subr.mxu0 0.0
    %2368 = vmatpush2.msra.mxu0 0.0
    %2369 = vmatprep.subr.mxu0 0.0
    %2370 = vmatpush2.msra.mxu0 0.0
    %2371 = vmatprep.subr.mxu0 0.0
    %2372 = vmatpush2.msra.mxu0 0.0
    %2373 = vmatprep.subr.mxu0 0.0
    %2374 = vmatpush2.msra.mxu0 0.0
    %2375 = vmatprep.subr.mxu0 0.0
    %2376 = vmatpush2.msra.mxu0 0.0
    %2377 = vmatprep.subr.mxu0 0.0
    %2378 = vmatpush2.msra.mxu0 0.0
    %2379 = vmatprep.subr.mxu0 0.0
    %2380 = vmatpush2.msra.mxu0 0.0
    %2381 = vmatprep.subr.mxu0 0.0
    %2382 = vmatpush2.msra.mxu0 0.0
    %2383 = vmatprep.subr.mxu0 0.0
    %2384 = vmatpush2.msra.mxu0 0.0
    %2385 = vmatprep.subr.mxu0 0.0
    %2386 = vmatpush2.msra.mxu0 0.0
    %2387 = vmatprep.subr.mxu0 0.0
    %2388 = vmatpush2.msra.mxu0 0.0
    %2389 = vmatprep.subr.mxu0 0.0
    %2390 = vmatpush2.msra.mxu0 0.0
    %2391 = vmatprep.subr.mxu0 0.0
    %2392 = vmatpush2.msra.mxu0 0.0
    %2393 = vmatprep.mubr.f32.mxu0 0.0
    %2394 = vmatmul.mubr.f32.gmra.mxu0 %v2327
    %v2395 = vpop.f32.mrf.mxu0
    %v2396 = vadd.f32 0.0, %v2395
    %v2397 = vpop.f32.mrf.mxu0
    %2398 = vdwg.mxu0
    %2400 = vrot.lane.b32.xlu0 %v2250, 8
    %v2401 = vpop.permute.xlu0 %2400
    %2404 = vrot.lane.b32.xlu0 %v2323, 16
    %v2405 = vpop.permute.xlu0 %2404
    %2408 = vrot.lane.b32.xlu0 %v2396, 24
    %v2409 = vpop.permute.xlu0 %2408
    %v2411 = vsel %vm218, %v2177, %v2401
    %v2412 = vsel %vm1329, %v2411, %v2405
    %v2413 = vsel %vm1331, %v2412, %v2409
    %v2414 = vld [vmem:[%s5] sm:$0xff]
    %v2415 = vld [vmem:[%s5 + $0x8] sm:$0xff]
    %v2416 = vld [vmem:[%s5 + $0x10] sm:$0xff]
    %v2417 = vld [vmem:[%s5 + $0x18] sm:$0xff]
    %v2419 = vsel %vm54, %v1332, 0
    %v2422 = vsel %vm54, %v2413, 0
    %2424 = vmatprep.subr.mxu0 0.0
    %2425 = vmatpush1.msra.mxu0 0.0
    %2426 = vmatprep.subr.mxu0 0.0
    %2427 = vmatpush1.msra.mxu0 0.0
    %2428 = vmatprep.subr.mxu0 0.0
    %2429 = vmatpush1.msra.mxu0 0.0
    %2430 = vmatprep.subr.mxu0 0.0
    %2431 = vmatpush1.msra.mxu0 0.0
    %2432 = vmatprep.subr.mxu0 0.0
    %2433 = vmatpush1.msra.mxu0 0.0
    %2434 = vmatprep.subr.mxu0 0.0
    %2435 = vmatpush1.msra.mxu0 0.0
    %2436 = vmatprep.subr.mxu0 0.0
    %2437 = vmatpush1.msra.mxu0 0.0
    %2438 = vmatprep.subr.mxu0 0.0
    %2439 = vmatpush1.msra.mxu0 0.0
    %2440 = vmatprep.subr.mxu0 0.0
    %2441 = vmatpush1.msra.mxu0 0.0
    %2442 = vmatprep.subr.mxu0 0.0
    %2443 = vmatpush1.msra.mxu0 0.0
    %2444 = vmatprep.subr.mxu0 0.0
    %2445 = vmatpush1.msra.mxu0 0.0
    %2446 = vmatprep.subr.mxu0 0.0
    %2447 = vmatpush1.msra.mxu0 0.0
    %2448 = vmatprep.subr.mxu0 0.0
    %2449 = vmatpush1.msra.mxu0 %v2417
    %2450 = vmatprep.subr.mxu0 0.0
    %2451 = vmatpush1.msra.mxu0 %v2416
    %2452 = vmatprep.subr.mxu0 0.0
    %2453 = vmatpush1.msra.mxu0 %v2415
    %2454 = vmatprep.subr.mxu0 0.0
    %2455 = vmatpush1.msra.mxu0 %v2414
    %2456 = vmatprep.subr.mxu0 0.0
    %2457 = vmatpush2.msra.mxu0 0.0
    %2458 = vmatprep.subr.mxu0 0.0
    %2459 = vmatpush2.msra.mxu0 0.0
    %2460 = vmatprep.subr.mxu0 0.0
    %2461 = vmatpush2.msra.mxu0 0.0
    %2462 = vmatprep.subr.mxu0 0.0
    %2463 = vmatpush2.msra.mxu0 0.0
    %2464 = vmatprep.subr.mxu0 0.0
    %2465 = vmatpush2.msra.mxu0 0.0
    %2466 = vmatprep.subr.mxu0 0.0
    %2467 = vmatpush2.msra.mxu0 0.0
    %2468 = vmatprep.subr.mxu0 0.0
    %2469 = vmatpush2.msra.mxu0 0.0
    %2470 = vmatprep.subr.mxu0 0.0
    %2471 = vmatpush2.msra.mxu0 0.0
    %2472 = vmatprep.subr.mxu0 0.0
    %2473 = vmatpush2.msra.mxu0 0.0
    %2474 = vmatprep.subr.mxu0 0.0
    %2475 = vmatpush2.msra.mxu0 0.0
    %2476 = vmatprep.subr.mxu0 0.0
    %2477 = vmatpush2.msra.mxu0 0.0
    %2478 = vmatprep.subr.mxu0 0.0
    %2479 = vmatpush2.msra.mxu0 0.0
    %2480 = vmatprep.subr.mxu0 0.0
    %2481 = vmatpush2.msra.mxu0 0.0
    %2482 = vmatprep.subr.mxu0 0.0
    %2483 = vmatpush2.msra.mxu0 0.0
    %2484 = vmatprep.subr.mxu0 0.0
    %2485 = vmatpush2.msra.mxu0 0.0
    %2486 = vmatprep.subr.mxu0 0.0
    %2487 = vmatpush2.msra.mxu0 0.0
    %2488 = vmatprep.mubr.f32.mxu0 0.0
    %2489 = vmatmul.mubr.f32.gmra.mxu0 %v2419
    %v2490 = vpop.f32.mrf.mxu0
    %v2491 = vadd.f32 0.0, %v2490
    %v2492 = vpop.f32.mrf.mxu0
    %2493 = vmatprep.mubr.f32.mxu0 0.0
    %2494 = vmatmul.mubr.f32.gmra.mxu0 %v2422
    %v2495 = vpop.f32.mrf.mxu0
    %v2496 = vadd.f32 0.0, %v2495
    %v2497 = vpop.f32.mrf.mxu0
    %2498 = vdwg.mxu0
    %v2499 = vadd.f32 %v33, %v2491
    %v2500 = vadd.f32 %v34, %v2496
    %v2501 = vsel %vm54, %v2499, 0.0
    %2502 = vadd.xlane.f32.xlu0 %v2501
    %v2503 = vpop.xlane.xlu0 %2502
    %v2504 = vsel %vm54, %v2500, 0.0
    %2505 = vadd.xlane.f32.xlu0 %v2504
    %v2506 = vpop.xlane.xlu0 %2505
    %v2507 = vrcp.pop 32.0
    %v2508 = vmul.f32 %v2503, %v2507
    %v2509 = vmul.f32 %v2506, %v2507
    %v2510 = vsub.f32 %v2499, %v2508
    %v2511 = vsub.f32 %v2500, %v2509
    %v2512 = vmul.f32 %v2510, %v2510
    %v2513 = vmul.f32 %v2511, %v2511
    %v2514 = vsel %vm54, %v2512, 0.0
    %2515 = vadd.xlane.f32.xlu0 %v2514
    %v2516 = vpop.xlane.xlu0 %2515
    %v2517 = vsel %vm54, %v2513, 0.0
    %2518 = vadd.xlane.f32.xlu0 %v2517
    %v2519 = vpop.xlane.xlu0 %2518
    %v2520 = vmul.f32 %v2516, %v2507
    %v2521 = vmul.f32 %v2519, %v2507
    %v2522 = vadd.f32 %v2520, 1e-12
    %v2523 = vadd.f32 %v2521, 1e-12
    %v2524 = vrsqrt.pop %v2522
    %v2525 = vrsqrt.pop %v2523
    %v2526 = vmul.f32 %v2510, %v2524
    %v2527 = vmul.f32 %v2511, %v2525
    %v2528 = vlaneseq
    %v2529 = vshrl.u32 %v2528, 7
    %v2530 = vsub.s32 2, %v2529
    %v2531 = vrot.slane %v41, %v2530
    %v2532 = vmul.f32 %v2526, %v2531
    %v2533 = vmul.f32 %v2527, %v2531
    %v2534 = vlaneseq
    %v2535 = vshrl.u32 %v2534, 7
    %v2536 = vsub.s32 3, %v2535
    %v2537 = vrot.slane %v41, %v2536
    %v2538 = vadd.f32 %v2532, %v2537
    %v2539 = vadd.f32 %v2533, %v2537
    %v2540 = vld [vmem:[%s6] sm:$0xff]
    %v2541 = vld [vmem:[%s6 + $0x8] sm:$0xff]
    %v2542 = vld [vmem:[%s6 + $0x10] sm:$0xff]
    %v2543 = vld [vmem:[%s6 + $0x18] sm:$0xff]
    %v2544 = vlaneseq
    %v2545 = vshrl.u32 %v2544, 7
    %v2546 = vsub.s32 4, %v2545
    %v2547 = vrot.slane %v41, %v2546
    %v2549 = vsel %vm54, %v2538, 0
    %v2552 = vsel %vm54, %v2539, 0
    %2554 = vmatprep.subr.mxu0 0.0
    %2555 = vmatpush1.msra.mxu0 0.0
    %2556 = vmatprep.subr.mxu0 0.0
    %2557 = vmatpush1.msra.mxu0 0.0
    %2558 = vmatprep.subr.mxu0 0.0
    %2559 = vmatpush1.msra.mxu0 0.0
    %2560 = vmatprep.subr.mxu0 0.0
    %2561 = vmatpush1.msra.mxu0 0.0
    %2562 = vmatprep.subr.mxu0 0.0
    %2563 = vmatpush1.msra.mxu0 0.0
    %2564 = vmatprep.subr.mxu0 0.0
    %2565 = vmatpush1.msra.mxu0 0.0
    %2566 = vmatprep.subr.mxu0 0.0
    %2567 = vmatpush1.msra.mxu0 0.0
    %2568 = vmatprep.subr.mxu0 0.0
    %2569 = vmatpush1.msra.mxu0 0.0
    %2570 = vmatprep.subr.mxu0 0.0
    %2571 = vmatpush1.msra.mxu0 0.0
    %2572 = vmatprep.subr.mxu0 0.0
    %2573 = vmatpush1.msra.mxu0 0.0
    %2574 = vmatprep.subr.mxu0 0.0
    %2575 = vmatpush1.msra.mxu0 0.0
    %2576 = vmatprep.subr.mxu0 0.0
    %2577 = vmatpush1.msra.mxu0 0.0
    %2578 = vmatprep.subr.mxu0 0.0
    %2579 = vmatpush1.msra.mxu0 %v2543
    %2580 = vmatprep.subr.mxu0 0.0
    %2581 = vmatpush1.msra.mxu0 %v2542
    %2582 = vmatprep.subr.mxu0 0.0
    %2583 = vmatpush1.msra.mxu0 %v2541
    %2584 = vmatprep.subr.mxu0 0.0
    %2585 = vmatpush1.msra.mxu0 %v2540
    %2586 = vmatprep.subr.mxu0 0.0
    %2587 = vmatpush2.msra.mxu0 0.0
    %2588 = vmatprep.subr.mxu0 0.0
    %2589 = vmatpush2.msra.mxu0 0.0
    %2590 = vmatprep.subr.mxu0 0.0
    %2591 = vmatpush2.msra.mxu0 0.0
    %2592 = vmatprep.subr.mxu0 0.0
    %2593 = vmatpush2.msra.mxu0 0.0
    %2594 = vmatprep.subr.mxu0 0.0
    %2595 = vmatpush2.msra.mxu0 0.0
    %2596 = vmatprep.subr.mxu0 0.0
    %2597 = vmatpush2.msra.mxu0 0.0
    %2598 = vmatprep.subr.mxu0 0.0
    %2599 = vmatpush2.msra.mxu0 0.0
    %2600 = vmatprep.subr.mxu0 0.0
    %2601 = vmatpush2.msra.mxu0 0.0
    %2602 = vmatprep.subr.mxu0 0.0
    %2603 = vmatpush2.msra.mxu0 0.0
    %2604 = vmatprep.subr.mxu0 0.0
    %2605 = vmatpush2.msra.mxu0 0.0
    %2606 = vmatprep.subr.mxu0 0.0
    %2607 = vmatpush2.msra.mxu0 0.0
    %2608 = vmatprep.subr.mxu0 0.0
    %2609 = vmatpush2.msra.mxu0 0.0
    %2610 = vmatprep.subr.mxu0 0.0
    %2611 = vmatpush2.msra.mxu0 0.0
    %2612 = vmatprep.subr.mxu0 0.0
    %2613 = vmatpush2.msra.mxu0 0.0
    %2614 = vmatprep.subr.mxu0 0.0
    %2615 = vmatpush2.msra.mxu0 0.0
    %2616 = vmatprep.subr.mxu0 0.0
    %2617 = vmatpush2.msra.mxu0 0.0
    %2618 = vmatprep.mubr.f32.mxu0 0.0
    %2619 = vmatmul.mubr.f32.gmra.mxu0 %v2549
    %v2620 = vpop.f32.mrf.mxu0
    %v2621 = vadd.f32 %v2547, %v2620
    %v2622 = vpop.f32.mrf.mxu0
    %2623 = vmatprep.mubr.f32.mxu0 0.0
    %2624 = vmatmul.mubr.f32.gmra.mxu0 %v2552
    %v2625 = vpop.f32.mrf.mxu0
    %v2626 = vadd.f32 %v2547, %v2625
    %v2627 = vpop.f32.mrf.mxu0
    %2628 = vdwg.mxu0
    %v2629 = vmul.f32 %v2621, %v2621
    %v2630 = vmul.f32 %v2626, %v2626
    %v2631 = vmul.f32 %v2621, %v2629
    %v2632 = vmul.f32 %v2626, %v2630
    %v2633 = vmul.f32 %v2631, 0.044715
    %v2634 = vmul.f32 %v2632, 0.044715
    %v2635 = vadd.f32 %v2621, %v2633
    %v2636 = vadd.f32 %v2626, %v2634
    %v2637 = vmul.f32 %v2635, 0.7978846
    %v2638 = vmul.f32 %v2636, 0.7978846
    %v2639 = vtanh.pop %v2637
    %v2640 = vtanh.pop %v2638
    %v2641 = vadd.f32 %v2639, 1.0
    %v2642 = vadd.f32 %v2640, 1.0
    %v2643 = vmul.f32 %v2641, 0.5
    %v2644 = vmul.f32 %v2642, 0.5
    %v2645 = vmul.f32 %v2621, %v2643
    %v2646 = vmul.f32 %v2626, %v2644
    %v2647 = vld [vmem:[%s7] sm:$0xff]
    %v2648 = vld [vmem:[%s7 + $0x8] sm:$0xff]
    %v2649 = vld [vmem:[%s7 + $0x10] sm:$0xff]
    %v2650 = vld [vmem:[%s7 + $0x18] sm:$0xff]
    %v2651 = vld [vmem:[%s7 + $0x20] sm:$0xff]
    %v2652 = vld [vmem:[%s7 + $0x28] sm:$0xff]
    %v2653 = vld [vmem:[%s7 + $0x30] sm:$0xff]
    %v2654 = vld [vmem:[%s7 + $0x38] sm:$0xff]
    %v2655 = vlaneseq
    %v2656 = vshrl.u32 %v2655, 7
    %v2657 = vsub.s32 5, %v2656
    %v2658 = vrot.slane %v41, %v2657
    %vm2659 = vcmask 523264
    %v2661 = vsel %vm2659, %v2645, 0
    %v2664 = vsel %vm2659, %v2646, 0
    %2666 = vmatprep.subr.mxu0 0.0
    %2667 = vmatpush1.msra.mxu0 0.0
    %2668 = vmatprep.subr.mxu0 0.0
    %2669 = vmatpush1.msra.mxu0 0.0
    %2670 = vmatprep.subr.mxu0 0.0
    %2671 = vmatpush1.msra.mxu0 0.0
    %2672 = vmatprep.subr.mxu0 0.0
    %2673 = vmatpush1.msra.mxu0 0.0
    %2674 = vmatprep.subr.mxu0 0.0
    %2675 = vmatpush1.msra.mxu0 0.0
    %2676 = vmatprep.subr.mxu0 0.0
    %2677 = vmatpush1.msra.mxu0 0.0
    %2678 = vmatprep.subr.mxu0 0.0
    %2679 = vmatpush1.msra.mxu0 0.0
    %2680 = vmatprep.subr.mxu0 0.0
    %2681 = vmatpush1.msra.mxu0 0.0
    %2682 = vmatprep.subr.mxu0 0.0
    %2683 = vmatpush1.msra.mxu0 %v2654
    %2684 = vmatprep.subr.mxu0 0.0
    %2685 = vmatpush1.msra.mxu0 %v2653
    %2686 = vmatprep.subr.mxu0 0.0
    %2687 = vmatpush1.msra.mxu0 %v2652
    %2688 = vmatprep.subr.mxu0 0.0
    %2689 = vmatpush1.msra.mxu0 %v2651
    %2690 = vmatprep.subr.mxu0 0.0
    %2691 = vmatpush1.msra.mxu0 %v2650
    %2692 = vmatprep.subr.mxu0 0.0
    %2693 = vmatpush1.msra.mxu0 %v2649
    %2694 = vmatprep.subr.mxu0 0.0
    %2695 = vmatpush1.msra.mxu0 %v2648
    %2696 = vmatprep.subr.mxu0 0.0
    %2697 = vmatpush1.msra.mxu0 %v2647
    %2698 = vmatprep.subr.mxu0 0.0
    %2699 = vmatpush2.msra.mxu0 0.0
    %2700 = vmatprep.subr.mxu0 0.0
    %2701 = vmatpush2.msra.mxu0 0.0
    %2702 = vmatprep.subr.mxu0 0.0
    %2703 = vmatpush2.msra.mxu0 0.0
    %2704 = vmatprep.subr.mxu0 0.0
    %2705 = vmatpush2.msra.mxu0 0.0
    %2706 = vmatprep.subr.mxu0 0.0
    %2707 = vmatpush2.msra.mxu0 0.0
    %2708 = vmatprep.subr.mxu0 0.0
    %2709 = vmatpush2.msra.mxu0 0.0
    %2710 = vmatprep.subr.mxu0 0.0
    %2711 = vmatpush2.msra.mxu0 0.0
    %2712 = vmatprep.subr.mxu0 0.0
    %2713 = vmatpush2.msra.mxu0 0.0
    %2714 = vmatprep.subr.mxu0 0.0
    %2715 = vmatpush2.msra.mxu0 0.0
    %2716 = vmatprep.subr.mxu0 0.0
    %2717 = vmatpush2.msra.mxu0 0.0
    %2718 = vmatprep.subr.mxu0 0.0
    %2719 = vmatpush2.msra.mxu0 0.0
    %2720 = vmatprep.subr.mxu0 0.0
    %2721 = vmatpush2.msra.mxu0 0.0
    %2722 = vmatprep.subr.mxu0 0.0
    %2723 = vmatpush2.msra.mxu0 0.0
    %2724 = vmatprep.subr.mxu0 0.0
    %2725 = vmatpush2.msra.mxu0 0.0
    %2726 = vmatprep.subr.mxu0 0.0
    %2727 = vmatpush2.msra.mxu0 0.0
    %2728 = vmatprep.subr.mxu0 0.0
    %2729 = vmatpush2.msra.mxu0 0.0
    %2730 = vmatprep.mubr.f32.mxu0 0.0
    %2731 = vmatmul.mubr.f32.gmra.mxu0 %v2661
    %v2732 = vpop.f32.mrf.mxu0
    %v2733 = vadd.f32 %v2658, %v2732
    %v2734 = vpop.f32.mrf.mxu0
    %2735 = vmatprep.mubr.f32.mxu0 0.0
    %2736 = vmatmul.mubr.f32.gmra.mxu0 %v2664
    %v2737 = vpop.f32.mrf.mxu0
    %v2738 = vadd.f32 %v2658, %v2737
    %v2739 = vpop.f32.mrf.mxu0
    %2740 = vdwg.mxu0
    %v2741 = vadd.f32 %v2538, %v2733
    %v2742 = vadd.f32 %v2539, %v2738
    %v2743 = vsel %vm54, %v2741, 0.0
    %2744 = vadd.xlane.f32.xlu0 %v2743
    %v2745 = vpop.xlane.xlu0 %2744
    %v2746 = vsel %vm54, %v2742, 0.0
    %2747 = vadd.xlane.f32.xlu0 %v2746
    %v2748 = vpop.xlane.xlu0 %2747
    %v2749 = vmul.f32 %v2745, %v2507
    %v2750 = vmul.f32 %v2748, %v2507
    %v2751 = vsub.f32 %v2741, %v2749
    %v2752 = vsub.f32 %v2742, %v2750
    %v2753 = vmul.f32 %v2751, %v2751
    %v2754 = vmul.f32 %v2752, %v2752
    %v2755 = vsel %vm54, %v2753, 0.0
    %2756 = vadd.xlane.f32.xlu0 %v2755
    %v2757 = vpop.xlane.xlu0 %2756
    %v2758 = vsel %vm54, %v2754, 0.0
    %2759 = vadd.xlane.f32.xlu0 %v2758
    %v2760 = vpop.xlane.xlu0 %2759
    %v2761 = vmul.f32 %v2757, %v2507
    %v2762 = vmul.f32 %v2760, %v2507
    %v2763 = vadd.f32 %v2761, 1e-12
    %v2764 = vadd.f32 %v2762, 1e-12
    %v2765 = vrsqrt.pop %v2763
    %v2766 = vrsqrt.pop %v2764
    %v2767 = vmul.f32 %v2751, %v2765
    %v2768 = vmul.f32 %v2752, %v2766
    %v2769 = vlaneseq
    %v2770 = vshrl.u32 %v2769, 7
    %v2771 = vsub.s32 6, %v2770
    %v2772 = vrot.slane %v41, %v2771
    %v2773 = vmul.f32 %v2767, %v2772
    %v2774 = vmul.f32 %v2768, %v2772
    %v2775 = vlaneseq
    %v2776 = vshrl.u32 %v2775, 7
    %v2777 = vsub.s32 7, %v2776
    %v2778 = vrot.slane %v41, %v2777
    %v2779 = vadd.f32 %v2773, %v2778
    %v2780 = vadd.f32 %v2774, %v2778
    %s2781 = scalar_lea.vmem %s8, 8
    %v2782 = vld [vmem:[%s2781] sm:$0xff]
    %s2783 = scalar_lea.vmem %s3, 64
    %v2784 = vld [vmem:[%s2783] sm:$0xff]
    %v2785 = vld [vmem:[%s2783 + $0x8] sm:$0xff]
    %v2786 = vld [vmem:[%s2783 + $0x10] sm:$0xff]
    %v2787 = vld [vmem:[%s2783 + $0x18] sm:$0xff]
    %v2788 = vld [vmem:[%s2783 + $0x20] sm:$0xff]
    %v2789 = vld [vmem:[%s2783 + $0x28] sm:$0xff]
    %v2790 = vld [vmem:[%s2783 + $0x30] sm:$0xff]
    %v2791 = vld [vmem:[%s2783 + $0x38] sm:$0xff]
    %s2792 = scalar_lea.vmem %s4, 32
    %v2793 = vld [vmem:[%s2792] sm:$0xff]
    %v2794 = vld [vmem:[%s2792 + $0x8] sm:$0xff]
    %v2795 = vld [vmem:[%s2792 + $0x10] sm:$0xff]
    %v2796 = vld [vmem:[%s2792 + $0x18] sm:$0xff]
    %v2798 = vsel %vm54, %v2779, 0
    %v2801 = vsel %vm54, %v2780, 0
    %2803 = vmatprep.subr.mxu0 0.0
    %2804 = vmatpush1.msra.mxu0 0.0
    %2805 = vmatprep.subr.mxu0 0.0
    %2806 = vmatpush1.msra.mxu0 0.0
    %2807 = vmatprep.subr.mxu0 0.0
    %2808 = vmatpush1.msra.mxu0 0.0
    %2809 = vmatprep.subr.mxu0 0.0
    %2810 = vmatpush1.msra.mxu0 0.0
    %2811 = vmatprep.subr.mxu0 0.0
    %2812 = vmatpush1.msra.mxu0 0.0
    %2813 = vmatprep.subr.mxu0 0.0
    %2814 = vmatpush1.msra.mxu0 0.0
    %2815 = vmatprep.subr.mxu0 0.0
    %2816 = vmatpush1.msra.mxu0 0.0
    %2817 = vmatprep.subr.mxu0 0.0
    %2818 = vmatpush1.msra.mxu0 0.0
    %2819 = vmatprep.subr.mxu0 0.0
    %2820 = vmatpush1.msra.mxu0 0.0
    %2821 = vmatprep.subr.mxu0 0.0
    %2822 = vmatpush1.msra.mxu0 0.0
    %2823 = vmatprep.subr.mxu0 0.0
    %2824 = vmatpush1.msra.mxu0 0.0
    %2825 = vmatprep.subr.mxu0 0.0
    %2826 = vmatpush1.msra.mxu0 0.0
    %2827 = vmatprep.subr.mxu0 0.0
    %2828 = vmatpush1.msra.mxu0 %v2796
    %2829 = vmatprep.subr.mxu0 0.0
    %2830 = vmatpush1.msra.mxu0 %v2795
    %2831 = vmatprep.subr.mxu0 0.0
    %2832 = vmatpush1.msra.mxu0 %v2794
    %2833 = vmatprep.subr.mxu0 0.0
    %2834 = vmatpush1.msra.mxu0 %v2793
    %2835 = vmatprep.subr.mxu0 0.0
    %2836 = vmatpush2.msra.mxu0 0.0
    %2837 = vmatprep.subr.mxu0 0.0
    %2838 = vmatpush2.msra.mxu0 0.0
    %2839 = vmatprep.subr.mxu0 0.0
    %2840 = vmatpush2.msra.mxu0 0.0
    %2841 = vmatprep.subr.mxu0 0.0
    %2842 = vmatpush2.msra.mxu0 0.0
    %2843 = vmatprep.subr.mxu0 0.0
    %2844 = vmatpush2.msra.mxu0 0.0
    %2845 = vmatprep.subr.mxu0 0.0
    %2846 = vmatpush2.msra.mxu0 0.0
    %2847 = vmatprep.subr.mxu0 0.0
    %2848 = vmatpush2.msra.mxu0 0.0
    %2849 = vmatprep.subr.mxu0 0.0
    %2850 = vmatpush2.msra.mxu0 0.0
    %2851 = vmatprep.subr.mxu0 0.0
    %2852 = vmatpush2.msra.mxu0 0.0
    %2853 = vmatprep.subr.mxu0 0.0
    %2854 = vmatpush2.msra.mxu0 0.0
    %2855 = vmatprep.subr.mxu0 0.0
    %2856 = vmatpush2.msra.mxu0 0.0
    %2857 = vmatprep.subr.mxu0 0.0
    %2858 = vmatpush2.msra.mxu0 0.0
    %2859 = vmatprep.subr.mxu0 0.0
    %2860 = vmatpush2.msra.mxu0 0.0
    %2861 = vmatprep.subr.mxu0 0.0
    %2862 = vmatpush2.msra.mxu0 0.0
    %2863 = vmatprep.subr.mxu0 0.0
    %2864 = vmatpush2.msra.mxu0 0.0
    %2865 = vmatprep.subr.mxu0 0.0
    %2866 = vmatpush2.msra.mxu0 0.0
    %2867 = vmatprep.mubr.f32.mxu0 0.0
    %2868 = vmatmul.mubr.f32.gmra.mxu0 %v2798
    %v2869 = vpop.f32.mrf.mxu0
    %v2870 = vadd.f32 0.0, %v2869
    %v2871 = vpop.f32.mrf.mxu0
    %2872 = vmatprep.mubr.f32.mxu0 0.0
    %2873 = vmatmul.mubr.f32.gmra.mxu0 %v2801
    %v2874 = vpop.f32.mrf.mxu0
    %v2875 = vadd.f32 0.0, %v2874
    %v2876 = vpop.f32.mrf.mxu0
    %2877 = vdwg.mxu0
    %v2878 = vlaneseq
    %v2879 = vshrl.u32 %v2878, 7
    %v2880 = vsub.s32 0, %v2879
    %v2881 = vrot.slane %v2782, %v2880
    %v2882 = vadd.f32 %v2870, %v2881
    %v2883 = vadd.f32 %v2875, %v2881
    %v2884 = vlaneseq
    %v2885 = vshrl.u32 %v2884, 7
    %v2886 = vsub.s32 1, %v2885
    %v2887 = vrot.slane %v2782, %v2886
    %v2888 = vadd.f32 %v2870, %v2887
    %v2889 = vadd.f32 %v2875, %v2887
    %2892 = vrot.lane.b32.xlu0 %v2870, 96
    %v2893 = vpop.permute.xlu0 %2892
    %2894 = vrot.lane.b32.xlu0 %v2875, 96
    %v2895 = vpop.permute.xlu0 %2894
    %2896 = vrot.lane.b32.xlu0 %v2870, 64
    %v2897 = vpop.permute.xlu0 %2896
    %2898 = vrot.lane.b32.xlu0 %v2875, 64
    %v2899 = vpop.permute.xlu0 %2898
    %2906 = vrot.lane.b32.xlu0 %v2882, 120
    %v2907 = vpop.permute.xlu0 %2906
    %2908 = vrot.lane.b32.xlu0 %v2883, 120
    %v2909 = vpop.permute.xlu0 %2908
    %2910 = vrot.lane.b32.xlu0 %v2888, 120
    %v2911 = vpop.permute.xlu0 %2910
    %2912 = vrot.lane.b32.xlu0 %v2889, 120
    %v2913 = vpop.permute.xlu0 %2912
    %2914 = vrot.lane.b32.xlu0 %v2893, 120
    %v2915 = vpop.permute.xlu0 %2914
    %2916 = vrot.lane.b32.xlu0 %v2895, 120
    %v2917 = vpop.permute.xlu0 %2916
    %2918 = vrot.lane.b32.xlu0 %v2897, 120
    %v2919 = vpop.permute.xlu0 %2918
    %2920 = vrot.lane.b32.xlu0 %v2899, 120
    %v2921 = vpop.permute.xlu0 %2920
    %2924 = vrot.lane.b32.xlu0 %v2882, 112
    %v2925 = vpop.permute.xlu0 %2924
    %2926 = vrot.lane.b32.xlu0 %v2883, 112
    %v2927 = vpop.permute.xlu0 %2926
    %2928 = vrot.lane.b32.xlu0 %v2888, 112
    %v2929 = vpop.permute.xlu0 %2928
    %2930 = vrot.lane.b32.xlu0 %v2889, 112
    %v2931 = vpop.permute.xlu0 %2930
    %2932 = vrot.lane.b32.xlu0 %v2893, 112
    %v2933 = vpop.permute.xlu0 %2932
    %2934 = vrot.lane.b32.xlu0 %v2895, 112
    %v2935 = vpop.permute.xlu0 %2934
    %2936 = vrot.lane.b32.xlu0 %v2897, 112
    %v2937 = vpop.permute.xlu0 %2936
    %2938 = vrot.lane.b32.xlu0 %v2899, 112
    %v2939 = vpop.permute.xlu0 %2938
    %2942 = vrot.lane.b32.xlu0 %v2882, 104
    %v2943 = vpop.permute.xlu0 %2942
    %2944 = vrot.lane.b32.xlu0 %v2883, 104
    %v2945 = vpop.permute.xlu0 %2944
    %2946 = vrot.lane.b32.xlu0 %v2888, 104
    %v2947 = vpop.permute.xlu0 %2946
    %2948 = vrot.lane.b32.xlu0 %v2889, 104
    %v2949 = vpop.permute.xlu0 %2948
    %2950 = vrot.lane.b32.xlu0 %v2893, 104
    %v2951 = vpop.permute.xlu0 %2950
    %2952 = vrot.lane.b32.xlu0 %v2895, 104
    %v2953 = vpop.permute.xlu0 %2952
    %2954 = vrot.lane.b32.xlu0 %v2897, 104
    %v2955 = vpop.permute.xlu0 %2954
    %2956 = vrot.lane.b32.xlu0 %v2899, 104
    %v2957 = vpop.permute.xlu0 %2956
    %v2960 = vsel %vm218, %v2888, 0
    %v2963 = vsel %vm218, %v2784, 0
    %v2966 = vsel %vm218, %v2785, 0
    %2968 = vmatprep.subr.mxu0 0.0
    %2969 = vmatpush1.xpose.msra.mxu0 0.0
    %2970 = vmatprep.subr.mxu0 0.0
    %2971 = vmatpush1.xpose.msra.mxu0 0.0
    %2972 = vmatprep.subr.mxu0 0.0
    %2973 = vmatpush1.xpose.msra.mxu0 0.0
    %2974 = vmatprep.subr.mxu0 0.0
    %2975 = vmatpush1.xpose.msra.mxu0 0.0
    %2976 = vmatprep.subr.mxu0 0.0
    %2977 = vmatpush1.xpose.msra.mxu0 0.0
    %2978 = vmatprep.subr.mxu0 0.0
    %2979 = vmatpush1.xpose.msra.mxu0 0.0
    %2980 = vmatprep.subr.mxu0 0.0
    %2981 = vmatpush1.xpose.msra.mxu0 0.0
    %2982 = vmatprep.subr.mxu0 0.0
    %2983 = vmatpush1.xpose.msra.mxu0 0.0
    %2984 = vmatprep.subr.mxu0 0.0
    %2985 = vmatpush1.xpose.msra.mxu0 0.0
    %2986 = vmatprep.subr.mxu0 0.0
    %2987 = vmatpush1.xpose.msra.mxu0 0.0
    %2988 = vmatprep.subr.mxu0 0.0
    %2989 = vmatpush1.xpose.msra.mxu0 0.0
    %2990 = vmatprep.subr.mxu0 0.0
    %2991 = vmatpush1.xpose.msra.mxu0 0.0
    %2992 = vmatprep.subr.mxu0 0.0
    %2993 = vmatpush1.xpose.msra.mxu0 0.0
    %2994 = vmatprep.subr.mxu0 0.0
    %2995 = vmatpush1.xpose.msra.mxu0 0.0
    %2996 = vmatprep.subr.mxu0 0.0
    %2997 = vmatpush1.xpose.msra.mxu0 %v2966
    %2998 = vmatprep.subr.mxu0 0.0
    %2999 = vmatpush1.xpose.msra.mxu0 %v2963
    %3000 = vmatprep.subr.mxu0 0.0
    %3001 = vmatpush2.xpose.msra.mxu0 0.0
    %3002 = vmatprep.subr.mxu0 0.0
    %3003 = vmatpush2.xpose.msra.mxu0 0.0
    %3004 = vmatprep.subr.mxu0 0.0
    %3005 = vmatpush2.xpose.msra.mxu0 0.0
    %3006 = vmatprep.subr.mxu0 0.0
    %3007 = vmatpush2.xpose.msra.mxu0 0.0
    %3008 = vmatprep.subr.mxu0 0.0
    %3009 = vmatpush2.xpose.msra.mxu0 0.0
    %3010 = vmatprep.subr.mxu0 0.0
    %3011 = vmatpush2.xpose.msra.mxu0 0.0
    %3012 = vmatprep.subr.mxu0 0.0
    %3013 = vmatpush2.xpose.msra.mxu0 0.0
    %3014 = vmatprep.subr.mxu0 0.0
    %3015 = vmatpush2.xpose.msra.mxu0 0.0
    %3016 = vmatprep.subr.mxu0 0.0
    %3017 = vmatpush2.xpose.msra.mxu0 0.0
    %3018 = vmatprep.subr.mxu0 0.0
    %3019 = vmatpush2.xpose.msra.mxu0 0.0
    %3020 = vmatprep.subr.mxu0 0.0
    %3021 = vmatpush2.xpose.msra.mxu0 0.0
    %3022 = vmatprep.subr.mxu0 0.0
    %3023 = vmatpush2.xpose.msra.mxu0 0.0
    %3024 = vmatprep.subr.mxu0 0.0
    %3025 = vmatpush2.xpose.msra.mxu0 0.0
    %3026 = vmatprep.subr.mxu0 0.0
    %3027 = vmatpush2.xpose.msra.mxu0 0.0
    %3028 = vmatprep.subr.mxu0 0.0
    %3029 = vmatpush2.xpose.msra.mxu0 0.0
    %3030 = vmatprep.subr.mxu0 0.0
    %3031 = vmatpush2.xpose.msra.mxu0 0.0
    %3032 = vmatprep.mubr.f32.mxu0 0.0
    %3033 = vmatmul.mubr.f32.gmra.mxu0 %v2960
    %v3034 = vpop.f32.mrf.mxu0
    %v3035 = vadd.f32 0.0, %v3034
    %v3036 = vpop.f32.mrf.mxu0
    %3037 = vdwg.mxu0
    %v3038 = vsel %vm218, %v2911, 0
    %v3041 = vsel %vm218, %v2786, 0
    %v3044 = vsel %vm218, %v2787, 0
    %3046 = vmatprep.subr.mxu0 0.0
    %3047 = vmatpush1.xpose.msra.mxu0 0.0
    %3048 = vmatprep.subr.mxu0 0.0
    %3049 = vmatpush1.xpose.msra.mxu0 0.0
    %3050 = vmatprep.subr.mxu0 0.0
    %3051 = vmatpush1.xpose.msra.mxu0 0.0
    %3052 = vmatprep.subr.mxu0 0.0
    %3053 = vmatpush1.xpose.msra.mxu0 0.0
    %3054 = vmatprep.subr.mxu0 0.0
    %3055 = vmatpush1.xpose.msra.mxu0 0.0
    %3056 = vmatprep.subr.mxu0 0.0
    %3057 = vmatpush1.xpose.msra.mxu0 0.0
    %3058 = vmatprep.subr.mxu0 0.0
    %3059 = vmatpush1.xpose.msra.mxu0 0.0
    %3060 = vmatprep.subr.mxu0 0.0
    %3061 = vmatpush1.xpose.msra.mxu0 0.0
    %3062 = vmatprep.subr.mxu0 0.0
    %3063 = vmatpush1.xpose.msra.mxu0 0.0
    %3064 = vmatprep.subr.mxu0 0.0
    %3065 = vmatpush1.xpose.msra.mxu0 0.0
    %3066 = vmatprep.subr.mxu0 0.0
    %3067 = vmatpush1.xpose.msra.mxu0 0.0
    %3068 = vmatprep.subr.mxu0 0.0
    %3069 = vmatpush1.xpose.msra.mxu0 0.0
    %3070 = vmatprep.subr.mxu0 0.0
    %3071 = vmatpush1.xpose.msra.mxu0 0.0
    %3072 = vmatprep.subr.mxu0 0.0
    %3073 = vmatpush1.xpose.msra.mxu0 0.0
    %3074 = vmatprep.subr.mxu0 0.0
    %3075 = vmatpush1.xpose.msra.mxu0 %v3044
    %3076 = vmatprep.subr.mxu0 0.0
    %3077 = vmatpush1.xpose.msra.mxu0 %v3041
    %3078 = vmatprep.subr.mxu0 0.0
    %3079 = vmatpush2.xpose.msra.mxu0 0.0
    %3080 = vmatprep.subr.mxu0 0.0
    %3081 = vmatpush2.xpose.msra.mxu0 0.0
    %3082 = vmatprep.subr.mxu0 0.0
    %3083 = vmatpush2.xpose.msra.mxu0 0.0
    %3084 = vmatprep.subr.mxu0 0.0
    %3085 = vmatpush2.xpose.msra.mxu0 0.0
    %3086 = vmatprep.subr.mxu0 0.0
    %3087 = vmatpush2.xpose.msra.mxu0 0.0
    %3088 = vmatprep.subr.mxu0 0.0
    %3089 = vmatpush2.xpose.msra.mxu0 0.0
    %3090 = vmatprep.subr.mxu0 0.0
    %3091 = vmatpush2.xpose.msra.mxu0 0.0
    %3092 = vmatprep.subr.mxu0 0.0
    %3093 = vmatpush2.xpose.msra.mxu0 0.0
    %3094 = vmatprep.subr.mxu0 0.0
    %3095 = vmatpush2.xpose.msra.mxu0 0.0
    %3096 = vmatprep.subr.mxu0 0.0
    %3097 = vmatpush2.xpose.msra.mxu0 0.0
    %3098 = vmatprep.subr.mxu0 0.0
    %3099 = vmatpush2.xpose.msra.mxu0 0.0
    %3100 = vmatprep.subr.mxu0 0.0
    %3101 = vmatpush2.xpose.msra.mxu0 0.0
    %3102 = vmatprep.subr.mxu0 0.0
    %3103 = vmatpush2.xpose.msra.mxu0 0.0
    %3104 = vmatprep.subr.mxu0 0.0
    %3105 = vmatpush2.xpose.msra.mxu0 0.0
    %3106 = vmatprep.subr.mxu0 0.0
    %3107 = vmatpush2.xpose.msra.mxu0 0.0
    %3108 = vmatprep.subr.mxu0 0.0
    %3109 = vmatpush2.xpose.msra.mxu0 0.0
    %3110 = vmatprep.mubr.f32.mxu0 0.0
    %3111 = vmatmul.mubr.f32.gmra.mxu0 %v3038
    %v3112 = vpop.f32.mrf.mxu0
    %v3113 = vadd.f32 0.0, %v3112
    %v3114 = vpop.f32.mrf.mxu0
    %3115 = vdwg.mxu0
    %v3116 = vsel %vm218, %v2929, 0
    %v3119 = vsel %vm218, %v2788, 0
    %v3122 = vsel %vm218, %v2789, 0
    %3124 = vmatprep.subr.mxu0 0.0
    %3125 = vmatpush1.xpose.msra.mxu0 0.0
    %3126 = vmatprep.subr.mxu0 0.0
    %3127 = vmatpush1.xpose.msra.mxu0 0.0
    %3128 = vmatprep.subr.mxu0 0.0
    %3129 = vmatpush1.xpose.msra.mxu0 0.0
    %3130 = vmatprep.subr.mxu0 0.0
    %3131 = vmatpush1.xpose.msra.mxu0 0.0
    %3132 = vmatprep.subr.mxu0 0.0
    %3133 = vmatpush1.xpose.msra.mxu0 0.0
    %3134 = vmatprep.subr.mxu0 0.0
    %3135 = vmatpush1.xpose.msra.mxu0 0.0
    %3136 = vmatprep.subr.mxu0 0.0
    %3137 = vmatpush1.xpose.msra.mxu0 0.0
    %3138 = vmatprep.subr.mxu0 0.0
    %3139 = vmatpush1.xpose.msra.mxu0 0.0
    %3140 = vmatprep.subr.mxu0 0.0
    %3141 = vmatpush1.xpose.msra.mxu0 0.0
    %3142 = vmatprep.subr.mxu0 0.0
    %3143 = vmatpush1.xpose.msra.mxu0 0.0
    %3144 = vmatprep.subr.mxu0 0.0
    %3145 = vmatpush1.xpose.msra.mxu0 0.0
    %3146 = vmatprep.subr.mxu0 0.0
    %3147 = vmatpush1.xpose.msra.mxu0 0.0
    %3148 = vmatprep.subr.mxu0 0.0
    %3149 = vmatpush1.xpose.msra.mxu0 0.0
    %3150 = vmatprep.subr.mxu0 0.0
    %3151 = vmatpush1.xpose.msra.mxu0 0.0
    %3152 = vmatprep.subr.mxu0 0.0
    %3153 = vmatpush1.xpose.msra.mxu0 %v3122
    %3154 = vmatprep.subr.mxu0 0.0
    %3155 = vmatpush1.xpose.msra.mxu0 %v3119
    %3156 = vmatprep.subr.mxu0 0.0
    %3157 = vmatpush2.xpose.msra.mxu0 0.0
    %3158 = vmatprep.subr.mxu0 0.0
    %3159 = vmatpush2.xpose.msra.mxu0 0.0
    %3160 = vmatprep.subr.mxu0 0.0
    %3161 = vmatpush2.xpose.msra.mxu0 0.0
    %3162 = vmatprep.subr.mxu0 0.0
    %3163 = vmatpush2.xpose.msra.mxu0 0.0
    %3164 = vmatprep.subr.mxu0 0.0
    %3165 = vmatpush2.xpose.msra.mxu0 0.0
    %3166 = vmatprep.subr.mxu0 0.0
    %3167 = vmatpush2.xpose.msra.mxu0 0.0
    %3168 = vmatprep.subr.mxu0 0.0
    %3169 = vmatpush2.xpose.msra.mxu0 0.0
    %3170 = vmatprep.subr.mxu0 0.0
    %3171 = vmatpush2.xpose.msra.mxu0 0.0
    %3172 = vmatprep.subr.mxu0 0.0
    %3173 = vmatpush2.xpose.msra.mxu0 0.0
    %3174 = vmatprep.subr.mxu0 0.0
    %3175 = vmatpush2.xpose.msra.mxu0 0.0
    %3176 = vmatprep.subr.mxu0 0.0
    %3177 = vmatpush2.xpose.msra.mxu0 0.0
    %3178 = vmatprep.subr.mxu0 0.0
    %3179 = vmatpush2.xpose.msra.mxu0 0.0
    %3180 = vmatprep.subr.mxu0 0.0
    %3181 = vmatpush2.xpose.msra.mxu0 0.0
    %3182 = vmatprep.subr.mxu0 0.0
    %3183 = vmatpush2.xpose.msra.mxu0 0.0
    %3184 = vmatprep.subr.mxu0 0.0
    %3185 = vmatpush2.xpose.msra.mxu0 0.0
    %3186 = vmatprep.subr.mxu0 0.0
    %3187 = vmatpush2.xpose.msra.mxu0 0.0
    %3188 = vmatprep.mubr.f32.mxu0 0.0
    %3189 = vmatmul.mubr.f32.gmra.mxu0 %v3116
    %v3190 = vpop.f32.mrf.mxu0
    %v3191 = vadd.f32 0.0, %v3190
    %v3192 = vpop.f32.mrf.mxu0
    %3193 = vdwg.mxu0
    %v3194 = vsel %vm218, %v2947, 0
    %v3197 = vsel %vm218, %v2790, 0
    %v3200 = vsel %vm218, %v2791, 0
    %3202 = vmatprep.subr.mxu0 0.0
    %3203 = vmatpush1.xpose.msra.mxu0 0.0
    %3204 = vmatprep.subr.mxu0 0.0
    %3205 = vmatpush1.xpose.msra.mxu0 0.0
    %3206 = vmatprep.subr.mxu0 0.0
    %3207 = vmatpush1.xpose.msra.mxu0 0.0
    %3208 = vmatprep.subr.mxu0 0.0
    %3209 = vmatpush1.xpose.msra.mxu0 0.0
    %3210 = vmatprep.subr.mxu0 0.0
    %3211 = vmatpush1.xpose.msra.mxu0 0.0
    %3212 = vmatprep.subr.mxu0 0.0
    %3213 = vmatpush1.xpose.msra.mxu0 0.0
    %3214 = vmatprep.subr.mxu0 0.0
    %3215 = vmatpush1.xpose.msra.mxu0 0.0
    %3216 = vmatprep.subr.mxu0 0.0
    %3217 = vmatpush1.xpose.msra.mxu0 0.0
    %3218 = vmatprep.subr.mxu0 0.0
    %3219 = vmatpush1.xpose.msra.mxu0 0.0
    %3220 = vmatprep.subr.mxu0 0.0
    %3221 = vmatpush1.xpose.msra.mxu0 0.0
    %3222 = vmatprep.subr.mxu0 0.0
    %3223 = vmatpush1.xpose.msra.mxu0 0.0
    %3224 = vmatprep.subr.mxu0 0.0
    %3225 = vmatpush1.xpose.msra.mxu0 0.0
    %3226 = vmatprep.subr.mxu0 0.0
    %3227 = vmatpush1.xpose.msra.mxu0 0.0
    %3228 = vmatprep.subr.mxu0 0.0
    %3229 = vmatpush1.xpose.msra.mxu0 0.0
    %3230 = vmatprep.subr.mxu0 0.0
    %3231 = vmatpush1.xpose.msra.mxu0 %v3200
    %3232 = vmatprep.subr.mxu0 0.0
    %3233 = vmatpush1.xpose.msra.mxu0 %v3197
    %3234 = vmatprep.subr.mxu0 0.0
    %3235 = vmatpush2.xpose.msra.mxu0 0.0
    %3236 = vmatprep.subr.mxu0 0.0
    %3237 = vmatpush2.xpose.msra.mxu0 0.0
    %3238 = vmatprep.subr.mxu0 0.0
    %3239 = vmatpush2.xpose.msra.mxu0 0.0
    %3240 = vmatprep.subr.mxu0 0.0
    %3241 = vmatpush2.xpose.msra.mxu0 0.0
    %3242 = vmatprep.subr.mxu0 0.0
    %3243 = vmatpush2.xpose.msra.mxu0 0.0
    %3244 = vmatprep.subr.mxu0 0.0
    %3245 = vmatpush2.xpose.msra.mxu0 0.0
    %3246 = vmatprep.subr.mxu0 0.0
    %3247 = vmatpush2.xpose.msra.mxu0 0.0
    %3248 = vmatprep.subr.mxu0 0.0
    %3249 = vmatpush2.xpose.msra.mxu0 0.0
    %3250 = vmatprep.subr.mxu0 0.0
    %3251 = vmatpush2.xpose.msra.mxu0 0.0
    %3252 = vmatprep.subr.mxu0 0.0
    %3253 = vmatpush2.xpose.msra.mxu0 0.0
    %3254 = vmatprep.subr.mxu0 0.0
    %3255 = vmatpush2.xpose.msra.mxu0 0.0
    %3256 = vmatprep.subr.mxu0 0.0
    %3257 = vmatpush2.xpose.msra.mxu0 0.0
    %3258 = vmatprep.subr.mxu0 0.0
    %3259 = vmatpush2.xpose.msra.mxu0 0.0
    %3260 = vmatprep.subr.mxu0 0.0
    %3261 = vmatpush2.xpose.msra.mxu0 0.0
    %3262 = vmatprep.subr.mxu0 0.0
    %3263 = vmatpush2.xpose.msra.mxu0 0.0
    %3264 = vmatprep.subr.mxu0 0.0
    %3265 = vmatpush2.xpose.msra.mxu0 0.0
    %3266 = vmatprep.mubr.f32.mxu0 0.0
    %3267 = vmatmul.mubr.f32.gmra.mxu0 %v3194
    %v3268 = vpop.f32.mrf.mxu0
    %v3269 = vadd.f32 0.0, %v3268
    %v3270 = vpop.f32.mrf.mxu0
    %3271 = vdwg.mxu0
    %3276 = vrot.lane.b32.xlu0 %v3035, 1
    %v3277 = vpop.permute.xlu0 %3276
    %3278 = vrot.lane.b32.xlu0 %v3113, 1
    %v3279 = vpop.permute.xlu0 %3278
    %3280 = vrot.lane.b32.xlu0 %v3191, 1
    %v3281 = vpop.permute.xlu0 %3280
    %3282 = vrot.lane.b32.xlu0 %v3269, 1
    %v3283 = vpop.permute.xlu0 %3282
    %3288 = vrot.lane.b32.xlu0 %v3035, 2
    %v3289 = vpop.permute.xlu0 %3288
    %3290 = vrot.lane.b32.xlu0 %v3113, 2
    %v3291 = vpop.permute.xlu0 %3290
    %3292 = vrot.lane.b32.xlu0 %v3191, 2
    %v3293 = vpop.permute.xlu0 %3292
    %3294 = vrot.lane.b32.xlu0 %v3269, 2
    %v3295 = vpop.permute.xlu0 %3294
    %3300 = vrot.lane.b32.xlu0 %v3035, 3
    %v3301 = vpop.permute.xlu0 %3300
    %3302 = vrot.lane.b32.xlu0 %v3113, 3
    %v3303 = vpop.permute.xlu0 %3302
    %3304 = vrot.lane.b32.xlu0 %v3191, 3
    %v3305 = vpop.permute.xlu0 %3304
    %3306 = vrot.lane.b32.xlu0 %v3269, 3
    %v3307 = vpop.permute.xlu0 %3306
    %3312 = vrot.lane.b32.xlu0 %v3035, 4
    %v3313 = vpop.permute.xlu0 %3312
    %3314 = vrot.lane.b32.xlu0 %v3113, 4
    %v3315 = vpop.permute.xlu0 %3314
    %3316 = vrot.lane.b32.xlu0 %v3191, 4
    %v3317 = vpop.permute.xlu0 %3316
    %3318 = vrot.lane.b32.xlu0 %v3269, 4
    %v3319 = vpop.permute.xlu0 %3318
    %3324 = vrot.lane.b32.xlu0 %v3035, 5
    %v3325 = vpop.permute.xlu0 %3324
    %3326 = vrot.lane.b32.xlu0 %v3113, 5
    %v3327 = vpop.permute.xlu0 %3326
    %3328 = vrot.lane.b32.xlu0 %v3191, 5
    %v3329 = vpop.permute.xlu0 %3328
    %3330 = vrot.lane.b32.xlu0 %v3269, 5
    %v3331 = vpop.permute.xlu0 %3330
    %3336 = vrot.lane.b32.xlu0 %v3035, 6
    %v3337 = vpop.permute.xlu0 %3336
    %3338 = vrot.lane.b32.xlu0 %v3113, 6
    %v3339 = vpop.permute.xlu0 %3338
    %3340 = vrot.lane.b32.xlu0 %v3191, 6
    %v3341 = vpop.permute.xlu0 %3340
    %3342 = vrot.lane.b32.xlu0 %v3269, 6
    %v3343 = vpop.permute.xlu0 %3342
    %3348 = vrot.lane.b32.xlu0 %v3035, 7
    %v3349 = vpop.permute.xlu0 %3348
    %3350 = vrot.lane.b32.xlu0 %v3113, 7
    %v3351 = vpop.permute.xlu0 %3350
    %3352 = vrot.lane.b32.xlu0 %v3191, 7
    %v3353 = vpop.permute.xlu0 %3352
    %3354 = vrot.lane.b32.xlu0 %v3269, 7
    %v3355 = vpop.permute.xlu0 %3354
    %v3360 = vsel %vm619, %v3035, %v3277
    %v3361 = vsel %vm619, %v3113, %v3279
    %v3362 = vsel %vm619, %v3191, %v3281
    %v3363 = vsel %vm619, %v3269, %v3283
    %v3364 = vsel %vm624, %v3360, %v3289
    %v3365 = vsel %vm624, %v3361, %v3291
    %v3366 = vsel %vm624, %v3362, %v3293
    %v3367 = vsel %vm624, %v3363, %v3295
    %v3368 = vsel %vm629, %v3364, %v3301
    %v3369 = vsel %vm629, %v3365, %v3303
    %v3370 = vsel %vm629, %v3366, %v3305
    %v3371 = vsel %vm629, %v3367, %v3307
    %v3372 = vsel %vm634, %v3368, %v3313
    %v3373 = vsel %vm634, %v3369, %v3315
    %v3374 = vsel %vm634, %v3370, %v3317
    %v3375 = vsel %vm634, %v3371, %v3319
    %v3376 = vsel %vm639, %v3372, %v3325
    %v3377 = vsel %vm639, %v3373, %v3327
    %v3378 = vsel %vm639, %v3374, %v3329
    %v3379 = vsel %vm639, %v3375, %v3331
    %v3380 = vsel %vm644, %v3376, %v3337
    %v3381 = vsel %vm644, %v3377, %v3339
    %v3382 = vsel %vm644, %v3378, %v3341
    %v3383 = vsel %vm644, %v3379, %v3343
    %v3384 = vsel %vm649, %v3380, %v3349
    %v3385 = vsel %vm649, %v3381, %v3351
    %v3386 = vsel %vm649, %v3382, %v3353
    %v3387 = vsel %vm649, %v3383, %v3355
    %3389 = vrot.lane.b32.xlu0 %v3384, 120
    %v3390 = vpop.permute.xlu0 %3389
    %v3392 = vsel %vm218, %v2882, 0
    %v3394 = vsel %vm218, %v2893, 0
    %3396 = vmatprep.subr.mxu0 0.0
    %3397 = vmatpush1.xpose.msra.mxu0 0.0
    %3398 = vmatprep.subr.mxu0 0.0
    %3399 = vmatpush1.xpose.msra.mxu0 0.0
    %3400 = vmatprep.subr.mxu0 0.0
    %3401 = vmatpush1.xpose.msra.mxu0 0.0
    %3402 = vmatprep.subr.mxu0 0.0
    %3403 = vmatpush1.xpose.msra.mxu0 0.0
    %3404 = vmatprep.subr.mxu0 0.0
    %3405 = vmatpush1.xpose.msra.mxu0 0.0
    %3406 = vmatprep.subr.mxu0 0.0
    %3407 = vmatpush1.xpose.msra.mxu0 0.0
    %3408 = vmatprep.subr.mxu0 0.0
    %3409 = vmatpush1.xpose.msra.mxu0 0.0
    %3410 = vmatprep.subr.mxu0 0.0
    %3411 = vmatpush1.xpose.msra.mxu0 0.0
    %3412 = vmatprep.subr.mxu0 0.0
    %3413 = vmatpush1.xpose.msra.mxu0 0.0
    %3414 = vmatprep.subr.mxu0 0.0
    %3415 = vmatpush1.xpose.msra.mxu0 0.0
    %3416 = vmatprep.subr.mxu0 0.0
    %3417 = vmatpush1.xpose.msra.mxu0 0.0
    %3418 = vmatprep.subr.mxu0 0.0
    %3419 = vmatpush1.xpose.msra.mxu0 0.0
    %3420 = vmatprep.subr.mxu0 0.0
    %3421 = vmatpush1.xpose.msra.mxu0 0.0
    %3422 = vmatprep.subr.mxu0 0.0
    %3423 = vmatpush1.xpose.msra.mxu0 0.0
    %3424 = vmatprep.subr.mxu0 0.0
    %3425 = vmatpush1.xpose.msra.mxu0 0.0
    %3426 = vmatprep.subr.mxu0 0.0
    %3427 = vmatpush1.xpose.msra.mxu0 %v3394
    %3428 = vmatprep.subr.mxu0 0.0
    %3429 = vmatpush2.xpose.msra.mxu0 0.0
    %3430 = vmatprep.subr.mxu0 0.0
    %3431 = vmatpush2.xpose.msra.mxu0 0.0
    %3432 = vmatprep.subr.mxu0 0.0
    %3433 = vmatpush2.xpose.msra.mxu0 0.0
    %3434 = vmatprep.subr.mxu0 0.0
    %3435 = vmatpush2.xpose.msra.mxu0 0.0
    %3436 = vmatprep.subr.mxu0 0.0
    %3437 = vmatpush2.xpose.msra.mxu0 0.0
    %3438 = vmatprep.subr.mxu0 0.0
    %3439 = vmatpush2.xpose.msra.mxu0 0.0
    %3440 = vmatprep.subr.mxu0 0.0
    %3441 = vmatpush2.xpose.msra.mxu0 0.0
    %3442 = vmatprep.subr.mxu0 0.0
    %3443 = vmatpush2.xpose.msra.mxu0 0.0
    %3444 = vmatprep.subr.mxu0 0.0
    %3445 = vmatpush2.xpose.msra.mxu0 0.0
    %3446 = vmatprep.subr.mxu0 0.0
    %3447 = vmatpush2.xpose.msra.mxu0 0.0
    %3448 = vmatprep.subr.mxu0 0.0
    %3449 = vmatpush2.xpose.msra.mxu0 0.0
    %3450 = vmatprep.subr.mxu0 0.0
    %3451 = vmatpush2.xpose.msra.mxu0 0.0
    %3452 = vmatprep.subr.mxu0 0.0
    %3453 = vmatpush2.xpose.msra.mxu0 0.0
    %3454 = vmatprep.subr.mxu0 0.0
    %3455 = vmatpush2.xpose.msra.mxu0 0.0
    %3456 = vmatprep.subr.mxu0 0.0
    %3457 = vmatpush2.xpose.msra.mxu0 0.0
    %3458 = vmatprep.subr.mxu0 0.0
    %3459 = vmatpush2.xpose.msra.mxu0 0.0
    %3460 = vmatprep.mubr.f32.mxu0 0.0
    %3461 = vmatmul.mubr.f32.gmra.mxu0 %v3392
    %v3462 = vpop.f32.mrf.mxu0
    %v3463 = vadd.f32 %v3390, %v3462
    %v3464 = vpop.f32.mrf.mxu0
    %3465 = vdwg.mxu0
    %3467 = vrot.lane.b32.xlu0 %v3385, 120
    %v3468 = vpop.permute.xlu0 %3467
    %v3470 = vsel %vm218, %v2907, 0
    %v3472 = vsel %vm218, %v2915, 0
    %3474 = vmatprep.subr.mxu0 0.0
    %3475 = vmatpush1.xpose.msra.mxu0 0.0
    %3476 = vmatprep.subr.mxu0 0.0
    %3477 = vmatpush1.xpose.msra.mxu0 0.0
    %3478 = vmatprep.subr.mxu0 0.0
    %3479 = vmatpush1.xpose.msra.mxu0 0.0
    %3480 = vmatprep.subr.mxu0 0.0
    %3481 = vmatpush1.xpose.msra.mxu0 0.0
    %3482 = vmatprep.subr.mxu0 0.0
    %3483 = vmatpush1.xpose.msra.mxu0 0.0
    %3484 = vmatprep.subr.mxu0 0.0
    %3485 = vmatpush1.xpose.msra.mxu0 0.0
    %3486 = vmatprep.subr.mxu0 0.0
    %3487 = vmatpush1.xpose.msra.mxu0 0.0
    %3488 = vmatprep.subr.mxu0 0.0
    %3489 = vmatpush1.xpose.msra.mxu0 0.0
    %3490 = vmatprep.subr.mxu0 0.0
    %3491 = vmatpush1.xpose.msra.mxu0 0.0
    %3492 = vmatprep.subr.mxu0 0.0
    %3493 = vmatpush1.xpose.msra.mxu0 0.0
    %3494 = vmatprep.subr.mxu0 0.0
    %3495 = vmatpush1.xpose.msra.mxu0 0.0
    %3496 = vmatprep.subr.mxu0 0.0
    %3497 = vmatpush1.xpose.msra.mxu0 0.0
    %3498 = vmatprep.subr.mxu0 0.0
    %3499 = vmatpush1.xpose.msra.mxu0 0.0
    %3500 = vmatprep.subr.mxu0 0.0
    %3501 = vmatpush1.xpose.msra.mxu0 0.0
    %3502 = vmatprep.subr.mxu0 0.0
    %3503 = vmatpush1.xpose.msra.mxu0 0.0
    %3504 = vmatprep.subr.mxu0 0.0
    %3505 = vmatpush1.xpose.msra.mxu0 %v3472
    %3506 = vmatprep.subr.mxu0 0.0
    %3507 = vmatpush2.xpose.msra.mxu0 0.0
    %3508 = vmatprep.subr.mxu0 0.0
    %3509 = vmatpush2.xpose.msra.mxu0 0.0
    %3510 = vmatprep.subr.mxu0 0.0
    %3511 = vmatpush2.xpose.msra.mxu0 0.0
    %3512 = vmatprep.subr.mxu0 0.0
    %3513 = vmatpush2.xpose.msra.mxu0 0.0
    %3514 = vmatprep.subr.mxu0 0.0
    %3515 = vmatpush2.xpose.msra.mxu0 0.0
    %3516 = vmatprep.subr.mxu0 0.0
    %3517 = vmatpush2.xpose.msra.mxu0 0.0
    %3518 = vmatprep.subr.mxu0 0.0
    %3519 = vmatpush2.xpose.msra.mxu0 0.0
    %3520 = vmatprep.subr.mxu0 0.0
    %3521 = vmatpush2.xpose.msra.mxu0 0.0
    %3522 = vmatprep.subr.mxu0 0.0
    %3523 = vmatpush2.xpose.msra.mxu0 0.0
    %3524 = vmatprep.subr.mxu0 0.0
    %3525 = vmatpush2.xpose.msra.mxu0 0.0
    %3526 = vmatprep.subr.mxu0 0.0
    %3527 = vmatpush2.xpose.msra.mxu0 0.0
    %3528 = vmatprep.subr.mxu0 0.0
    %3529 = vmatpush2.xpose.msra.mxu0 0.0
    %3530 = vmatprep.subr.mxu0 0.0
    %3531 = vmatpush2.xpose.msra.mxu0 0.0
    %3532 = vmatprep.subr.mxu0 0.0
    %3533 = vmatpush2.xpose.msra.mxu0 0.0
    %3534 = vmatprep.subr.mxu0 0.0
    %3535 = vmatpush2.xpose.msra.mxu0 0.0
    %3536 = vmatprep.subr.mxu0 0.0
    %3537 = vmatpush2.xpose.msra.mxu0 0.0
    %3538 = vmatprep.mubr.f32.mxu0 0.0
    %3539 = vmatmul.mubr.f32.gmra.mxu0 %v3470
    %v3540 = vpop.f32.mrf.mxu0
    %v3541 = vadd.f32 %v3468, %v3540
    %v3542 = vpop.f32.mrf.mxu0
    %3543 = vdwg.mxu0
    %3545 = vrot.lane.b32.xlu0 %v3386, 120
    %v3546 = vpop.permute.xlu0 %3545
    %v3548 = vsel %vm218, %v2925, 0
    %v3550 = vsel %vm218, %v2933, 0
    %3552 = vmatprep.subr.mxu0 0.0
    %3553 = vmatpush1.xpose.msra.mxu0 0.0
    %3554 = vmatprep.subr.mxu0 0.0
    %3555 = vmatpush1.xpose.msra.mxu0 0.0
    %3556 = vmatprep.subr.mxu0 0.0
    %3557 = vmatpush1.xpose.msra.mxu0 0.0
    %3558 = vmatprep.subr.mxu0 0.0
    %3559 = vmatpush1.xpose.msra.mxu0 0.0
    %3560 = vmatprep.subr.mxu0 0.0
    %3561 = vmatpush1.xpose.msra.mxu0 0.0
    %3562 = vmatprep.subr.mxu0 0.0
    %3563 = vmatpush1.xpose.msra.mxu0 0.0
    %3564 = vmatprep.subr.mxu0 0.0
    %3565 = vmatpush1.xpose.msra.mxu0 0.0
    %3566 = vmatprep.subr.mxu0 0.0
    %3567 = vmatpush1.xpose.msra.mxu0 0.0
    %3568 = vmatprep.subr.mxu0 0.0
    %3569 = vmatpush1.xpose.msra.mxu0 0.0
    %3570 = vmatprep.subr.mxu0 0.0
    %3571 = vmatpush1.xpose.msra.mxu0 0.0
    %3572 = vmatprep.subr.mxu0 0.0
    %3573 = vmatpush1.xpose.msra.mxu0 0.0
    %3574 = vmatprep.subr.mxu0 0.0
    %3575 = vmatpush1.xpose.msra.mxu0 0.0
    %3576 = vmatprep.subr.mxu0 0.0
    %3577 = vmatpush1.xpose.msra.mxu0 0.0
    %3578 = vmatprep.subr.mxu0 0.0
    %3579 = vmatpush1.xpose.msra.mxu0 0.0
    %3580 = vmatprep.subr.mxu0 0.0
    %3581 = vmatpush1.xpose.msra.mxu0 0.0
    %3582 = vmatprep.subr.mxu0 0.0
    %3583 = vmatpush1.xpose.msra.mxu0 %v3550
    %3584 = vmatprep.subr.mxu0 0.0
    %3585 = vmatpush2.xpose.msra.mxu0 0.0
    %3586 = vmatprep.subr.mxu0 0.0
    %3587 = vmatpush2.xpose.msra.mxu0 0.0
    %3588 = vmatprep.subr.mxu0 0.0
    %3589 = vmatpush2.xpose.msra.mxu0 0.0
    %3590 = vmatprep.subr.mxu0 0.0
    %3591 = vmatpush2.xpose.msra.mxu0 0.0
    %3592 = vmatprep.subr.mxu0 0.0
    %3593 = vmatpush2.xpose.msra.mxu0 0.0
    %3594 = vmatprep.subr.mxu0 0.0
    %3595 = vmatpush2.xpose.msra.mxu0 0.0
    %3596 = vmatprep.subr.mxu0 0.0
    %3597 = vmatpush2.xpose.msra.mxu0 0.0
    %3598 = vmatprep.subr.mxu0 0.0
    %3599 = vmatpush2.xpose.msra.mxu0 0.0
    %3600 = vmatprep.subr.mxu0 0.0
    %3601 = vmatpush2.xpose.msra.mxu0 0.0
    %3602 = vmatprep.subr.mxu0 0.0
    %3603 = vmatpush2.xpose.msra.mxu0 0.0
    %3604 = vmatprep.subr.mxu0 0.0
    %3605 = vmatpush2.xpose.msra.mxu0 0.0
    %3606 = vmatprep.subr.mxu0 0.0
    %3607 = vmatpush2.xpose.msra.mxu0 0.0
    %3608 = vmatprep.subr.mxu0 0.0
    %3609 = vmatpush2.xpose.msra.mxu0 0.0
    %3610 = vmatprep.subr.mxu0 0.0
    %3611 = vmatpush2.xpose.msra.mxu0 0.0
    %3612 = vmatprep.subr.mxu0 0.0
    %3613 = vmatpush2.xpose.msra.mxu0 0.0
    %3614 = vmatprep.subr.mxu0 0.0
    %3615 = vmatpush2.xpose.msra.mxu0 0.0
    %3616 = vmatprep.mubr.f32.mxu0 0.0
    %3617 = vmatmul.mubr.f32.gmra.mxu0 %v3548
    %v3618 = vpop.f32.mrf.mxu0
    %v3619 = vadd.f32 %v3546, %v3618
    %v3620 = vpop.f32.mrf.mxu0
    %3621 = vdwg.mxu0
    %3623 = vrot.lane.b32.xlu0 %v3387, 120
    %v3624 = vpop.permute.xlu0 %3623
    %v3626 = vsel %vm218, %v2943, 0
    %v3628 = vsel %vm218, %v2951, 0
    %3630 = vmatprep.subr.mxu0 0.0
    %3631 = vmatpush1.xpose.msra.mxu0 0.0
    %3632 = vmatprep.subr.mxu0 0.0
    %3633 = vmatpush1.xpose.msra.mxu0 0.0
    %3634 = vmatprep.subr.mxu0 0.0
    %3635 = vmatpush1.xpose.msra.mxu0 0.0
    %3636 = vmatprep.subr.mxu0 0.0
    %3637 = vmatpush1.xpose.msra.mxu0 0.0
    %3638 = vmatprep.subr.mxu0 0.0
    %3639 = vmatpush1.xpose.msra.mxu0 0.0
    %3640 = vmatprep.subr.mxu0 0.0
    %3641 = vmatpush1.xpose.msra.mxu0 0.0
    %3642 = vmatprep.subr.mxu0 0.0
    %3643 = vmatpush1.xpose.msra.mxu0 0.0
    %3644 = vmatprep.subr.mxu0 0.0
    %3645 = vmatpush1.xpose.msra.mxu0 0.0
    %3646 = vmatprep.subr.mxu0 0.0
    %3647 = vmatpush1.xpose.msra.mxu0 0.0
    %3648 = vmatprep.subr.mxu0 0.0
    %3649 = vmatpush1.xpose.msra.mxu0 0.0
    %3650 = vmatprep.subr.mxu0 0.0
    %3651 = vmatpush1.xpose.msra.mxu0 0.0
    %3652 = vmatprep.subr.mxu0 0.0
    %3653 = vmatpush1.xpose.msra.mxu0 0.0
    %3654 = vmatprep.subr.mxu0 0.0
    %3655 = vmatpush1.xpose.msra.mxu0 0.0
    %3656 = vmatprep.subr.mxu0 0.0
    %3657 = vmatpush1.xpose.msra.mxu0 0.0
    %3658 = vmatprep.subr.mxu0 0.0
    %3659 = vmatpush1.xpose.msra.mxu0 0.0
    %3660 = vmatprep.subr.mxu0 0.0
    %3661 = vmatpush1.xpose.msra.mxu0 %v3628
    %3662 = vmatprep.subr.mxu0 0.0
    %3663 = vmatpush2.xpose.msra.mxu0 0.0
    %3664 = vmatprep.subr.mxu0 0.0
    %3665 = vmatpush2.xpose.msra.mxu0 0.0
    %3666 = vmatprep.subr.mxu0 0.0
    %3667 = vmatpush2.xpose.msra.mxu0 0.0
    %3668 = vmatprep.subr.mxu0 0.0
    %3669 = vmatpush2.xpose.msra.mxu0 0.0
    %3670 = vmatprep.subr.mxu0 0.0
    %3671 = vmatpush2.xpose.msra.mxu0 0.0
    %3672 = vmatprep.subr.mxu0 0.0
    %3673 = vmatpush2.xpose.msra.mxu0 0.0
    %3674 = vmatprep.subr.mxu0 0.0
    %3675 = vmatpush2.xpose.msra.mxu0 0.0
    %3676 = vmatprep.subr.mxu0 0.0
    %3677 = vmatpush2.xpose.msra.mxu0 0.0
    %3678 = vmatprep.subr.mxu0 0.0
    %3679 = vmatpush2.xpose.msra.mxu0 0.0
    %3680 = vmatprep.subr.mxu0 0.0
    %3681 = vmatpush2.xpose.msra.mxu0 0.0
    %3682 = vmatprep.subr.mxu0 0.0
    %3683 = vmatpush2.xpose.msra.mxu0 0.0
    %3684 = vmatprep.subr.mxu0 0.0
    %3685 = vmatpush2.xpose.msra.mxu0 0.0
    %3686 = vmatprep.subr.mxu0 0.0
    %3687 = vmatpush2.xpose.msra.mxu0 0.0
    %3688 = vmatprep.subr.mxu0 0.0
    %3689 = vmatpush2.xpose.msra.mxu0 0.0
    %3690 = vmatprep.subr.mxu0 0.0
    %3691 = vmatpush2.xpose.msra.mxu0 0.0
    %3692 = vmatprep.subr.mxu0 0.0
    %3693 = vmatpush2.xpose.msra.mxu0 0.0
    %3694 = vmatprep.mubr.f32.mxu0 0.0
    %3695 = vmatmul.mubr.f32.gmra.mxu0 %v3626
    %v3696 = vpop.f32.mrf.mxu0
    %v3697 = vadd.f32 %v3624, %v3696
    %v3698 = vpop.f32.mrf.mxu0
    %3699 = vdwg.mxu0
    %v3700 = vmul.f32 %v3463, 0.35355338
    %v3701 = vmul.f32 %v3541, 0.35355338
    %v3702 = vmul.f32 %v3619, 0.35355338
    %v3703 = vmul.f32 %v3697, 0.35355338
    %v3704 = vadd.f32 %v3700, %v974
    %v3705 = vadd.f32 %v3701, %v974
    %v3706 = vadd.f32 %v3702, %v974
    %v3707 = vadd.f32 %v3703, %v974
    %v3708 = vsel %vm218, %v3704, -inf
    %3709 = vmax.xlane.f32.xlu0 %v3708
    %v3710 = vpop.xlane.xlu0 %3709
    %v3711 = vsel %vm218, %v3705, -inf
    %3712 = vmax.xlane.f32.xlu0 %v3711
    %v3713 = vpop.xlane.xlu0 %3712
    %v3714 = vsel %vm218, %v3706, -inf
    %3715 = vmax.xlane.f32.xlu0 %v3714
    %v3716 = vpop.xlane.xlu0 %3715
    %v3717 = vsel %vm218, %v3707, -inf
    %3718 = vmax.xlane.f32.xlu0 %v3717
    %v3719 = vpop.xlane.xlu0 %3718
    %v3720 = vsub.f32 %v3704, %v3710
    %v3721 = vsub.f32 %v3705, %v3713
    %v3722 = vsub.f32 %v3706, %v3716
    %v3723 = vsub.f32 %v3707, %v3719
    %v3724 = vmul.f32 %v3720, 1.442695
    %v3725 = vpow.pop %v3724
    %v3726 = vmul.f32 %v3721, 1.442695
    %v3727 = vpow.pop %v3726
    %v3728 = vmul.f32 %v3722, 1.442695
    %v3729 = vpow.pop %v3728
    %v3730 = vmul.f32 %v3723, 1.442695
    %v3731 = vpow.pop %v3730
    %v3732 = vsel %vm218, %v3725, 0.0
    %3733 = vadd.xlane.f32.xlu0 %v3732
    %v3734 = vpop.xlane.xlu0 %3733
    %v3735 = vsel %vm218, %v3727, 0.0
    %3736 = vadd.xlane.f32.xlu0 %v3735
    %v3737 = vpop.xlane.xlu0 %3736
    %v3738 = vsel %vm218, %v3729, 0.0
    %3739 = vadd.xlane.f32.xlu0 %v3738
    %v3740 = vpop.xlane.xlu0 %3739
    %v3741 = vsel %vm218, %v3731, 0.0
    %3742 = vadd.xlane.f32.xlu0 %v3741
    %v3743 = vpop.xlane.xlu0 %3742
    %v3744 = vrcp.pop %v3734
    %v3745 = vmul.f32 %v3725, %v3744
    %v3746 = vrcp.pop %v3737
    %v3747 = vmul.f32 %v3727, %v3746
    %v3748 = vrcp.pop %v3740
    %v3749 = vmul.f32 %v3729, %v3748
    %v3750 = vrcp.pop %v3743
    %v3751 = vmul.f32 %v3731, %v3750
    %v3753 = vsel %vm218, %v3745, 0
    %3755 = vmatprep.subr.mxu0 0.0
    %3756 = vmatpush1.msra.mxu0 0.0
    %3757 = vmatprep.subr.mxu0 0.0
    %3758 = vmatpush1.msra.mxu0 0.0
    %3759 = vmatprep.subr.mxu0 0.0
    %3760 = vmatpush1.msra.mxu0 0.0
    %3761 = vmatprep.subr.mxu0 0.0
    %3762 = vmatpush1.msra.mxu0 0.0
    %3763 = vmatprep.subr.mxu0 0.0
    %3764 = vmatpush1.msra.mxu0 0.0
    %3765 = vmatprep.subr.mxu0 0.0
    %3766 = vmatpush1.msra.mxu0 0.0
    %3767 = vmatprep.subr.mxu0 0.0
    %3768 = vmatpush1.msra.mxu0 0.0
    %3769 = vmatprep.subr.mxu0 0.0
    %3770 = vmatpush1.msra.mxu0 0.0
    %3771 = vmatprep.subr.mxu0 0.0
    %3772 = vmatpush1.msra.mxu0 0.0
    %3773 = vmatprep.subr.mxu0 0.0
    %3774 = vmatpush1.msra.mxu0 0.0
    %3775 = vmatprep.subr.mxu0 0.0
    %3776 = vmatpush1.msra.mxu0 0.0
    %3777 = vmatprep.subr.mxu0 0.0
    %3778 = vmatpush1.msra.mxu0 0.0
    %3779 = vmatprep.subr.mxu0 0.0
    %3780 = vmatpush1.msra.mxu0 0.0
    %3781 = vmatprep.subr.mxu0 0.0
    %3782 = vmatpush1.msra.mxu0 0.0
    %3783 = vmatprep.subr.mxu0 0.0
    %3784 = vmatpush1.msra.mxu0 0.0
    %3785 = vmatprep.subr.mxu0 0.0
    %3786 = vmatpush1.msra.mxu0 %v2897
    %3787 = vmatprep.subr.mxu0 0.0
    %3788 = vmatpush2.msra.mxu0 0.0
    %3789 = vmatprep.subr.mxu0 0.0
    %3790 = vmatpush2.msra.mxu0 0.0
    %3791 = vmatprep.subr.mxu0 0.0
    %3792 = vmatpush2.msra.mxu0 0.0
    %3793 = vmatprep.subr.mxu0 0.0
    %3794 = vmatpush2.msra.mxu0 0.0
    %3795 = vmatprep.subr.mxu0 0.0
    %3796 = vmatpush2.msra.mxu0 0.0
    %3797 = vmatprep.subr.mxu0 0.0
    %3798 = vmatpush2.msra.mxu0 0.0
    %3799 = vmatprep.subr.mxu0 0.0
    %3800 = vmatpush2.msra.mxu0 0.0
    %3801 = vmatprep.subr.mxu0 0.0
    %3802 = vmatpush2.msra.mxu0 0.0
    %3803 = vmatprep.subr.mxu0 0.0
    %3804 = vmatpush2.msra.mxu0 0.0
    %3805 = vmatprep.subr.mxu0 0.0
    %3806 = vmatpush2.msra.mxu0 0.0
    %3807 = vmatprep.subr.mxu0 0.0
    %3808 = vmatpush2.msra.mxu0 0.0
    %3809 = vmatprep.subr.mxu0 0.0
    %3810 = vmatpush2.msra.mxu0 0.0
    %3811 = vmatprep.subr.mxu0 0.0
    %3812 = vmatpush2.msra.mxu0 0.0
    %3813 = vmatprep.subr.mxu0 0.0
    %3814 = vmatpush2.msra.mxu0 0.0
    %3815 = vmatprep.subr.mxu0 0.0
    %3816 = vmatpush2.msra.mxu0 0.0
    %3817 = vmatprep.subr.mxu0 0.0
    %3818 = vmatpush2.msra.mxu0 0.0
    %3819 = vmatprep.mubr.f32.mxu0 0.0
    %3820 = vmatmul.mubr.f32.gmra.mxu0 %v3753
    %v3821 = vpop.f32.mrf.mxu0
    %v3822 = vadd.f32 0.0, %v3821
    %v3823 = vpop.f32.mrf.mxu0
    %3824 = vdwg.mxu0
    %v3826 = vsel %vm218, %v3747, 0
    %3828 = vmatprep.subr.mxu0 0.0
    %3829 = vmatpush1.msra.mxu0 0.0
    %3830 = vmatprep.subr.mxu0 0.0
    %3831 = vmatpush1.msra.mxu0 0.0
    %3832 = vmatprep.subr.mxu0 0.0
    %3833 = vmatpush1.msra.mxu0 0.0
    %3834 = vmatprep.subr.mxu0 0.0
    %3835 = vmatpush1.msra.mxu0 0.0
    %3836 = vmatprep.subr.mxu0 0.0
    %3837 = vmatpush1.msra.mxu0 0.0
    %3838 = vmatprep.subr.mxu0 0.0
    %3839 = vmatpush1.msra.mxu0 0.0
    %3840 = vmatprep.subr.mxu0 0.0
    %3841 = vmatpush1.msra.mxu0 0.0
    %3842 = vmatprep.subr.mxu0 0.0
    %3843 = vmatpush1.msra.mxu0 0.0
    %3844 = vmatprep.subr.mxu0 0.0
    %3845 = vmatpush1.msra.mxu0 0.0
    %3846 = vmatprep.subr.mxu0 0.0
    %3847 = vmatpush1.msra.mxu0 0.0
    %3848 = vmatprep.subr.mxu0 0.0
    %3849 = vmatpush1.msra.mxu0 0.0
    %3850 = vmatprep.subr.mxu0 0.0
    %3851 = vmatpush1.msra.mxu0 0.0
    %3852 = vmatprep.subr.mxu0 0.0
    %3853 = vmatpush1.msra.mxu0 0.0
    %3854 = vmatprep.subr.mxu0 0.0
    %3855 = vmatpush1.msra.mxu0 0.0
    %3856 = vmatprep.subr.mxu0 0.0
    %3857 = vmatpush1.msra.mxu0 0.0
    %3858 = vmatprep.subr.mxu0 0.0
    %3859 = vmatpush1.msra.mxu0 %v2919
    %3860 = vmatprep.subr.mxu0 0.0
    %3861 = vmatpush2.msra.mxu0 0.0
    %3862 = vmatprep.subr.mxu0 0.0
    %3863 = vmatpush2.msra.mxu0 0.0
    %3864 = vmatprep.subr.mxu0 0.0
    %3865 = vmatpush2.msra.mxu0 0.0
    %3866 = vmatprep.subr.mxu0 0.0
    %3867 = vmatpush2.msra.mxu0 0.0
    %3868 = vmatprep.subr.mxu0 0.0
    %3869 = vmatpush2.msra.mxu0 0.0
    %3870 = vmatprep.subr.mxu0 0.0
    %3871 = vmatpush2.msra.mxu0 0.0
    %3872 = vmatprep.subr.mxu0 0.0
    %3873 = vmatpush2.msra.mxu0 0.0
    %3874 = vmatprep.subr.mxu0 0.0
    %3875 = vmatpush2.msra.mxu0 0.0
    %3876 = vmatprep.subr.mxu0 0.0
    %3877 = vmatpush2.msra.mxu0 0.0
    %3878 = vmatprep.subr.mxu0 0.0
    %3879 = vmatpush2.msra.mxu0 0.0
    %3880 = vmatprep.subr.mxu0 0.0
    %3881 = vmatpush2.msra.mxu0 0.0
    %3882 = vmatprep.subr.mxu0 0.0
    %3883 = vmatpush2.msra.mxu0 0.0
    %3884 = vmatprep.subr.mxu0 0.0
    %3885 = vmatpush2.msra.mxu0 0.0
    %3886 = vmatprep.subr.mxu0 0.0
    %3887 = vmatpush2.msra.mxu0 0.0
    %3888 = vmatprep.subr.mxu0 0.0
    %3889 = vmatpush2.msra.mxu0 0.0
    %3890 = vmatprep.subr.mxu0 0.0
    %3891 = vmatpush2.msra.mxu0 0.0
    %3892 = vmatprep.mubr.f32.mxu0 0.0
    %3893 = vmatmul.mubr.f32.gmra.mxu0 %v3826
    %v3894 = vpop.f32.mrf.mxu0
    %v3895 = vadd.f32 0.0, %v3894
    %v3896 = vpop.f32.mrf.mxu0
    %3897 = vdwg.mxu0
    %v3899 = vsel %vm218, %v3749, 0
    %3901 = vmatprep.subr.mxu0 0.0
    %3902 = vmatpush1.msra.mxu0 0.0
    %3903 = vmatprep.subr.mxu0 0.0
    %3904 = vmatpush1.msra.mxu0 0.0
    %3905 = vmatprep.subr.mxu0 0.0
    %3906 = vmatpush1.msra.mxu0 0.0
    %3907 = vmatprep.subr.mxu0 0.0
    %3908 = vmatpush1.msra.mxu0 0.0
    %3909 = vmatprep.subr.mxu0 0.0
    %3910 = vmatpush1.msra.mxu0 0.0
    %3911 = vmatprep.subr.mxu0 0.0
    %3912 = vmatpush1.msra.mxu0 0.0
    %3913 = vmatprep.subr.mxu0 0.0
    %3914 = vmatpush1.msra.mxu0 0.0
    %3915 = vmatprep.subr.mxu0 0.0
    %3916 = vmatpush1.msra.mxu0 0.0
    %3917 = vmatprep.subr.mxu0 0.0
    %3918 = vmatpush1.msra.mxu0 0.0
    %3919 = vmatprep.subr.mxu0 0.0
    %3920 = vmatpush1.msra.mxu0 0.0
    %3921 = vmatprep.subr.mxu0 0.0
    %3922 = vmatpush1.msra.mxu0 0.0
    %3923 = vmatprep.subr.mxu0 0.0
    %3924 = vmatpush1.msra.mxu0 0.0
    %3925 = vmatprep.subr.mxu0 0.0
    %3926 = vmatpush1.msra.mxu0 0.0
    %3927 = vmatprep.subr.mxu0 0.0
    %3928 = vmatpush1.msra.mxu0 0.0
    %3929 = vmatprep.subr.mxu0 0.0
    %3930 = vmatpush1.msra.mxu0 0.0
    %3931 = vmatprep.subr.mxu0 0.0
    %3932 = vmatpush1.msra.mxu0 %v2937
    %3933 = vmatprep.subr.mxu0 0.0
    %3934 = vmatpush2.msra.mxu0 0.0
    %3935 = vmatprep.subr.mxu0 0.0
    %3936 = vmatpush2.msra.mxu0 0.0
    %3937 = vmatprep.subr.mxu0 0.0
    %3938 = vmatpush2.msra.mxu0 0.0
    %3939 = vmatprep.subr.mxu0 0.0
    %3940 = vmatpush2.msra.mxu0 0.0
    %3941 = vmatprep.subr.mxu0 0.0
    %3942 = vmatpush2.msra.mxu0 0.0
    %3943 = vmatprep.subr.mxu0 0.0
    %3944 = vmatpush2.msra.mxu0 0.0
    %3945 = vmatprep.subr.mxu0 0.0
    %3946 = vmatpush2.msra.mxu0 0.0
    %3947 = vmatprep.subr.mxu0 0.0
    %3948 = vmatpush2.msra.mxu0 0.0
    %3949 = vmatprep.subr.mxu0 0.0
    %3950 = vmatpush2.msra.mxu0 0.0
    %3951 = vmatprep.subr.mxu0 0.0
    %3952 = vmatpush2.msra.mxu0 0.0
    %3953 = vmatprep.subr.mxu0 0.0
    %3954 = vmatpush2.msra.mxu0 0.0
    %3955 = vmatprep.subr.mxu0 0.0
    %3956 = vmatpush2.msra.mxu0 0.0
    %3957 = vmatprep.subr.mxu0 0.0
    %3958 = vmatpush2.msra.mxu0 0.0
    %3959 = vmatprep.subr.mxu0 0.0
    %3960 = vmatpush2.msra.mxu0 0.0
    %3961 = vmatprep.subr.mxu0 0.0
    %3962 = vmatpush2.msra.mxu0 0.0
    %3963 = vmatprep.subr.mxu0 0.0
    %3964 = vmatpush2.msra.mxu0 0.0
    %3965 = vmatprep.mubr.f32.mxu0 0.0
    %3966 = vmatmul.mubr.f32.gmra.mxu0 %v3899
    %v3967 = vpop.f32.mrf.mxu0
    %v3968 = vadd.f32 0.0, %v3967
    %v3969 = vpop.f32.mrf.mxu0
    %3970 = vdwg.mxu0
    %v3972 = vsel %vm218, %v3751, 0
    %3974 = vmatprep.subr.mxu0 0.0
    %3975 = vmatpush1.msra.mxu0 0.0
    %3976 = vmatprep.subr.mxu0 0.0
    %3977 = vmatpush1.msra.mxu0 0.0
    %3978 = vmatprep.subr.mxu0 0.0
    %3979 = vmatpush1.msra.mxu0 0.0
    %3980 = vmatprep.subr.mxu0 0.0
    %3981 = vmatpush1.msra.mxu0 0.0
    %3982 = vmatprep.subr.mxu0 0.0
    %3983 = vmatpush1.msra.mxu0 0.0
    %3984 = vmatprep.subr.mxu0 0.0
    %3985 = vmatpush1.msra.mxu0 0.0
    %3986 = vmatprep.subr.mxu0 0.0
    %3987 = vmatpush1.msra.mxu0 0.0
    %3988 = vmatprep.subr.mxu0 0.0
    %3989 = vmatpush1.msra.mxu0 0.0
    %3990 = vmatprep.subr.mxu0 0.0
    %3991 = vmatpush1.msra.mxu0 0.0
    %3992 = vmatprep.subr.mxu0 0.0
    %3993 = vmatpush1.msra.mxu0 0.0
    %3994 = vmatprep.subr.mxu0 0.0
    %3995 = vmatpush1.msra.mxu0 0.0
    %3996 = vmatprep.subr.mxu0 0.0
    %3997 = vmatpush1.msra.mxu0 0.0
    %3998 = vmatprep.subr.mxu0 0.0
    %3999 = vmatpush1.msra.mxu0 0.0
    %4000 = vmatprep.subr.mxu0 0.0
    %4001 = vmatpush1.msra.mxu0 0.0
    %4002 = vmatprep.subr.mxu0 0.0
    %4003 = vmatpush1.msra.mxu0 0.0
    %4004 = vmatprep.subr.mxu0 0.0
    %4005 = vmatpush1.msra.mxu0 %v2955
    %4006 = vmatprep.subr.mxu0 0.0
    %4007 = vmatpush2.msra.mxu0 0.0
    %4008 = vmatprep.subr.mxu0 0.0
    %4009 = vmatpush2.msra.mxu0 0.0
    %4010 = vmatprep.subr.mxu0 0.0
    %4011 = vmatpush2.msra.mxu0 0.0
    %4012 = vmatprep.subr.mxu0 0.0
    %4013 = vmatpush2.msra.mxu0 0.0
    %4014 = vmatprep.subr.mxu0 0.0
    %4015 = vmatpush2.msra.mxu0 0.0
    %4016 = vmatprep.subr.mxu0 0.0
    %4017 = vmatpush2.msra.mxu0 0.0
    %4018 = vmatprep.subr.mxu0 0.0
    %4019 = vmatpush2.msra.mxu0 0.0
    %4020 = vmatprep.subr.mxu0 0.0
    %4021 = vmatpush2.msra.mxu0 0.0
    %4022 = vmatprep.subr.mxu0 0.0
    %4023 = vmatpush2.msra.mxu0 0.0
    %4024 = vmatprep.subr.mxu0 0.0
    %4025 = vmatpush2.msra.mxu0 0.0
    %4026 = vmatprep.subr.mxu0 0.0
    %4027 = vmatpush2.msra.mxu0 0.0
    %4028 = vmatprep.subr.mxu0 0.0
    %4029 = vmatpush2.msra.mxu0 0.0
    %4030 = vmatprep.subr.mxu0 0.0
    %4031 = vmatpush2.msra.mxu0 0.0
    %4032 = vmatprep.subr.mxu0 0.0
    %4033 = vmatpush2.msra.mxu0 0.0
    %4034 = vmatprep.subr.mxu0 0.0
    %4035 = vmatpush2.msra.mxu0 0.0
    %4036 = vmatprep.subr.mxu0 0.0
    %4037 = vmatpush2.msra.mxu0 0.0
    %4038 = vmatprep.mubr.f32.mxu0 0.0
    %4039 = vmatmul.mubr.f32.gmra.mxu0 %v3972
    %v4040 = vpop.f32.mrf.mxu0
    %v4041 = vadd.f32 0.0, %v4040
    %v4042 = vpop.f32.mrf.mxu0
    %4043 = vdwg.mxu0
    %4045 = vrot.lane.b32.xlu0 %v3895, 8
    %v4046 = vpop.permute.xlu0 %4045
    %4049 = vrot.lane.b32.xlu0 %v3968, 16
    %v4050 = vpop.permute.xlu0 %4049
    %4053 = vrot.lane.b32.xlu0 %v4041, 24
    %v4054 = vpop.permute.xlu0 %4053
    %v4056 = vsel %vm218, %v3822, %v4046
    %v4057 = vsel %vm1329, %v4056, %v4050
    %v4058 = vsel %vm1331, %v4057, %v4054
    %v4059 = vsel %vm218, %v2889, 0
    %4061 = vmatprep.subr.mxu0 0.0
    %4062 = vmatpush1.xpose.msra.mxu0 0.0
    %4063 = vmatprep.subr.mxu0 0.0
    %4064 = vmatpush1.xpose.msra.mxu0 0.0
    %4065 = vmatprep.subr.mxu0 0.0
    %4066 = vmatpush1.xpose.msra.mxu0 0.0
    %4067 = vmatprep.subr.mxu0 0.0
    %4068 = vmatpush1.xpose.msra.mxu0 0.0
    %4069 = vmatprep.subr.mxu0 0.0
    %4070 = vmatpush1.xpose.msra.mxu0 0.0
    %4071 = vmatprep.subr.mxu0 0.0
    %4072 = vmatpush1.xpose.msra.mxu0 0.0
    %4073 = vmatprep.subr.mxu0 0.0
    %4074 = vmatpush1.xpose.msra.mxu0 0.0
    %4075 = vmatprep.subr.mxu0 0.0
    %4076 = vmatpush1.xpose.msra.mxu0 0.0
    %4077 = vmatprep.subr.mxu0 0.0
    %4078 = vmatpush1.xpose.msra.mxu0 0.0
    %4079 = vmatprep.subr.mxu0 0.0
    %4080 = vmatpush1.xpose.msra.mxu0 0.0
    %4081 = vmatprep.subr.mxu0 0.0
    %4082 = vmatpush1.xpose.msra.mxu0 0.0
    %4083 = vmatprep.subr.mxu0 0.0
    %4084 = vmatpush1.xpose.msra.mxu0 0.0
    %4085 = vmatprep.subr.mxu0 0.0
    %4086 = vmatpush1.xpose.msra.mxu0 0.0
    %4087 = vmatprep.subr.mxu0 0.0
    %4088 = vmatpush1.xpose.msra.mxu0 0.0
    %4089 = vmatprep.subr.mxu0 0.0
    %4090 = vmatpush1.xpose.msra.mxu0 %v2966
    %4091 = vmatprep.subr.mxu0 0.0
    %4092 = vmatpush1.xpose.msra.mxu0 %v2963
    %4093 = vmatprep.subr.mxu0 0.0
    %4094 = vmatpush2.xpose.msra.mxu0 0.0
    %4095 = vmatprep.subr.mxu0 0.0
    %4096 = vmatpush2.xpose.msra.mxu0 0.0
    %4097 = vmatprep.subr.mxu0 0.0
    %4098 = vmatpush2.xpose.msra.mxu0 0.0
    %4099 = vmatprep.subr.mxu0 0.0
    %4100 = vmatpush2.xpose.msra.mxu0 0.0
    %4101 = vmatprep.subr.mxu0 0.0
    %4102 = vmatpush2.xpose.msra.mxu0 0.0
    %4103 = vmatprep.subr.mxu0 0.0
    %4104 = vmatpush2.xpose.msra.mxu0 0.0
    %4105 = vmatprep.subr.mxu0 0.0
    %4106 = vmatpush2.xpose.msra.mxu0 0.0
    %4107 = vmatprep.subr.mxu0 0.0
    %4108 = vmatpush2.xpose.msra.mxu0 0.0
    %4109 = vmatprep.subr.mxu0 0.0
    %4110 = vmatpush2.xpose.msra.mxu0 0.0
    %4111 = vmatprep.subr.mxu0 0.0
    %4112 = vmatpush2.xpose.msra.mxu0 0.0
    %4113 = vmatprep.subr.mxu0 0.0
    %4114 = vmatpush2.xpose.msra.mxu0 0.0
    %4115 = vmatprep.subr.mxu0 0.0
    %4116 = vmatpush2.xpose.msra.mxu0 0.0
    %4117 = vmatprep.subr.mxu0 0.0
    %4118 = vmatpush2.xpose.msra.mxu0 0.0
    %4119 = vmatprep.subr.mxu0 0.0
    %4120 = vmatpush2.xpose.msra.mxu0 0.0
    %4121 = vmatprep.subr.mxu0 0.0
    %4122 = vmatpush2.xpose.msra.mxu0 0.0
    %4123 = vmatprep.subr.mxu0 0.0
    %4124 = vmatpush2.xpose.msra.mxu0 0.0
    %4125 = vmatprep.mubr.f32.mxu0 0.0
    %4126 = vmatmul.mubr.f32.gmra.mxu0 %v4059
    %v4127 = vpop.f32.mrf.mxu0
    %v4128 = vadd.f32 0.0, %v4127
    %v4129 = vpop.f32.mrf.mxu0
    %4130 = vdwg.mxu0
    %v4131 = vsel %vm218, %v2913, 0
    %4133 = vmatprep.subr.mxu0 0.0
    %4134 = vmatpush1.xpose.msra.mxu0 0.0
    %4135 = vmatprep.subr.mxu0 0.0
    %4136 = vmatpush1.xpose.msra.mxu0 0.0
    %4137 = vmatprep.subr.mxu0 0.0
    %4138 = vmatpush1.xpose.msra.mxu0 0.0
    %4139 = vmatprep.subr.mxu0 0.0
    %4140 = vmatpush1.xpose.msra.mxu0 0.0
    %4141 = vmatprep.subr.mxu0 0.0
    %4142 = vmatpush1.xpose.msra.mxu0 0.0
    %4143 = vmatprep.subr.mxu0 0.0
    %4144 = vmatpush1.xpose.msra.mxu0 0.0
    %4145 = vmatprep.subr.mxu0 0.0
    %4146 = vmatpush1.xpose.msra.mxu0 0.0
    %4147 = vmatprep.subr.mxu0 0.0
    %4148 = vmatpush1.xpose.msra.mxu0 0.0
    %4149 = vmatprep.subr.mxu0 0.0
    %4150 = vmatpush1.xpose.msra.mxu0 0.0
    %4151 = vmatprep.subr.mxu0 0.0
    %4152 = vmatpush1.xpose.msra.mxu0 0.0
    %4153 = vmatprep.subr.mxu0 0.0
    %4154 = vmatpush1.xpose.msra.mxu0 0.0
    %4155 = vmatprep.subr.mxu0 0.0
    %4156 = vmatpush1.xpose.msra.mxu0 0.0
    %4157 = vmatprep.subr.mxu0 0.0
    %4158 = vmatpush1.xpose.msra.mxu0 0.0
    %4159 = vmatprep.subr.mxu0 0.0
    %4160 = vmatpush1.xpose.msra.mxu0 0.0
    %4161 = vmatprep.subr.mxu0 0.0
    %4162 = vmatpush1.xpose.msra.mxu0 %v3044
    %4163 = vmatprep.subr.mxu0 0.0
    %4164 = vmatpush1.xpose.msra.mxu0 %v3041
    %4165 = vmatprep.subr.mxu0 0.0
    %4166 = vmatpush2.xpose.msra.mxu0 0.0
    %4167 = vmatprep.subr.mxu0 0.0
    %4168 = vmatpush2.xpose.msra.mxu0 0.0
    %4169 = vmatprep.subr.mxu0 0.0
    %4170 = vmatpush2.xpose.msra.mxu0 0.0
    %4171 = vmatprep.subr.mxu0 0.0
    %4172 = vmatpush2.xpose.msra.mxu0 0.0
    %4173 = vmatprep.subr.mxu0 0.0
    %4174 = vmatpush2.xpose.msra.mxu0 0.0
    %4175 = vmatprep.subr.mxu0 0.0
    %4176 = vmatpush2.xpose.msra.mxu0 0.0
    %4177 = vmatprep.subr.mxu0 0.0
    %4178 = vmatpush2.xpose.msra.mxu0 0.0
    %4179 = vmatprep.subr.mxu0 0.0
    %4180 = vmatpush2.xpose.msra.mxu0 0.0
    %4181 = vmatprep.subr.mxu0 0.0
    %4182 = vmatpush2.xpose.msra.mxu0 0.0
    %4183 = vmatprep.subr.mxu0 0.0
    %4184 = vmatpush2.xpose.msra.mxu0 0.0
    %4185 = vmatprep.subr.mxu0 0.0
    %4186 = vmatpush2.xpose.msra.mxu0 0.0
    %4187 = vmatprep.subr.mxu0 0.0
    %4188 = vmatpush2.xpose.msra.mxu0 0.0
    %4189 = vmatprep.subr.mxu0 0.0
    %4190 = vmatpush2.xpose.msra.mxu0 0.0
    %4191 = vmatprep.subr.mxu0 0.0
    %4192 = vmatpush2.xpose.msra.mxu0 0.0
    %4193 = vmatprep.subr.mxu0 0.0
    %4194 = vmatpush2.xpose.msra.mxu0 0.0
    %4195 = vmatprep.subr.mxu0 0.0
    %4196 = vmatpush2.xpose.msra.mxu0 0.0
    %4197 = vmatprep.mubr.f32.mxu0 0.0
    %4198 = vmatmul.mubr.f32.gmra.mxu0 %v4131
    %v4199 = vpop.f32.mrf.mxu0
    %v4200 = vadd.f32 0.0, %v4199
    %v4201 = vpop.f32.mrf.mxu0
    %4202 = vdwg.mxu0
    %v4203 = vsel %vm218, %v2931, 0
    %4205 = vmatprep.subr.mxu0 0.0
    %4206 = vmatpush1.xpose.msra.mxu0 0.0
    %4207 = vmatprep.subr.mxu0 0.0
    %4208 = vmatpush1.xpose.msra.mxu0 0.0
    %4209 = vmatprep.subr.mxu0 0.0
    %4210 = vmatpush1.xpose.msra.mxu0 0.0
    %4211 = vmatprep.subr.mxu0 0.0
    %4212 = vmatpush1.xpose.msra.mxu0 0.0
    %4213 = vmatprep.subr.mxu0 0.0
    %4214 = vmatpush1.xpose.msra.mxu0 0.0
    %4215 = vmatprep.subr.mxu0 0.0
    %4216 = vmatpush1.xpose.msra.mxu0 0.0
    %4217 = vmatprep.subr.mxu0 0.0
    %4218 = vmatpush1.xpose.msra.mxu0 0.0
    %4219 = vmatprep.subr.mxu0 0.0
    %4220 = vmatpush1.xpose.msra.mxu0 0.0
    %4221 = vmatprep.subr.mxu0 0.0
    %4222 = vmatpush1.xpose.msra.mxu0 0.0
    %4223 = vmatprep.subr.mxu0 0.0
    %4224 = vmatpush1.xpose.msra.mxu0 0.0
    %4225 = vmatprep.subr.mxu0 0.0
    %4226 = vmatpush1.xpose.msra.mxu0 0.0
    %4227 = vmatprep.subr.mxu0 0.0
    %4228 = vmatpush1.xpose.msra.mxu0 0.0
    %4229 = vmatprep.subr.mxu0 0.0
    %4230 = vmatpush1.xpose.msra.mxu0 0.0
    %4231 = vmatprep.subr.mxu0 0.0
    %4232 = vmatpush1.xpose.msra.mxu0 0.0
    %4233 = vmatprep.subr.mxu0 0.0
    %4234 = vmatpush1.xpose.msra.mxu0 %v3122
    %4235 = vmatprep.subr.mxu0 0.0
    %4236 = vmatpush1.xpose.msra.mxu0 %v3119
    %4237 = vmatprep.subr.mxu0 0.0
    %4238 = vmatpush2.xpose.msra.mxu0 0.0
    %4239 = vmatprep.subr.mxu0 0.0
    %4240 = vmatpush2.xpose.msra.mxu0 0.0
    %4241 = vmatprep.subr.mxu0 0.0
    %4242 = vmatpush2.xpose.msra.mxu0 0.0
    %4243 = vmatprep.subr.mxu0 0.0
    %4244 = vmatpush2.xpose.msra.mxu0 0.0
    %4245 = vmatprep.subr.mxu0 0.0
    %4246 = vmatpush2.xpose.msra.mxu0 0.0
    %4247 = vmatprep.subr.mxu0 0.0
    %4248 = vmatpush2.xpose.msra.mxu0 0.0
    %4249 = vmatprep.subr.mxu0 0.0
    %4250 = vmatpush2.xpose.msra.mxu0 0.0
    %4251 = vmatprep.subr.mxu0 0.0
    %4252 = vmatpush2.xpose.msra.mxu0 0.0
    %4253 = vmatprep.subr.mxu0 0.0
    %4254 = vmatpush2.xpose.msra.mxu0 0.0
    %4255 = vmatprep.subr.mxu0 0.0
    %4256 = vmatpush2.xpose.msra.mxu0 0.0
    %4257 = vmatprep.subr.mxu0 0.0
    %4258 = vmatpush2.xpose.msra.mxu0 0.0
    %4259 = vmatprep.subr.mxu0 0.0
    %4260 = vmatpush2.xpose.msra.mxu0 0.0
    %4261 = vmatprep.subr.mxu0 0.0
    %4262 = vmatpush2.xpose.msra.mxu0 0.0
    %4263 = vmatprep.subr.mxu0 0.0
    %4264 = vmatpush2.xpose.msra.mxu0 0.0
    %4265 = vmatprep.subr.mxu0 0.0
    %4266 = vmatpush2.xpose.msra.mxu0 0.0
    %4267 = vmatprep.subr.mxu0 0.0
    %4268 = vmatpush2.xpose.msra.mxu0 0.0
    %4269 = vmatprep.mubr.f32.mxu0 0.0
    %4270 = vmatmul.mubr.f32.gmra.mxu0 %v4203
    %v4271 = vpop.f32.mrf.mxu0
    %v4272 = vadd.f32 0.0, %v4271
    %v4273 = vpop.f32.mrf.mxu0
    %4274 = vdwg.mxu0
    %v4275 = vsel %vm218, %v2949, 0
    %4277 = vmatprep.subr.mxu0 0.0
    %4278 = vmatpush1.xpose.msra.mxu0 0.0
    %4279 = vmatprep.subr.mxu0 0.0
    %4280 = vmatpush1.xpose.msra.mxu0 0.0
    %4281 = vmatprep.subr.mxu0 0.0
    %4282 = vmatpush1.xpose.msra.mxu0 0.0
    %4283 = vmatprep.subr.mxu0 0.0
    %4284 = vmatpush1.xpose.msra.mxu0 0.0
    %4285 = vmatprep.subr.mxu0 0.0
    %4286 = vmatpush1.xpose.msra.mxu0 0.0
    %4287 = vmatprep.subr.mxu0 0.0
    %4288 = vmatpush1.xpose.msra.mxu0 0.0
    %4289 = vmatprep.subr.mxu0 0.0
    %4290 = vmatpush1.xpose.msra.mxu0 0.0
    %4291 = vmatprep.subr.mxu0 0.0
    %4292 = vmatpush1.xpose.msra.mxu0 0.0
    %4293 = vmatprep.subr.mxu0 0.0
    %4294 = vmatpush1.xpose.msra.mxu0 0.0
    %4295 = vmatprep.subr.mxu0 0.0
    %4296 = vmatpush1.xpose.msra.mxu0 0.0
    %4297 = vmatprep.subr.mxu0 0.0
    %4298 = vmatpush1.xpose.msra.mxu0 0.0
    %4299 = vmatprep.subr.mxu0 0.0
    %4300 = vmatpush1.xpose.msra.mxu0 0.0
    %4301 = vmatprep.subr.mxu0 0.0
    %4302 = vmatpush1.xpose.msra.mxu0 0.0
    %4303 = vmatprep.subr.mxu0 0.0
    %4304 = vmatpush1.xpose.msra.mxu0 0.0
    %4305 = vmatprep.subr.mxu0 0.0
    %4306 = vmatpush1.xpose.msra.mxu0 %v3200
    %4307 = vmatprep.subr.mxu0 0.0
    %4308 = vmatpush1.xpose.msra.mxu0 %v3197
    %4309 = vmatprep.subr.mxu0 0.0
    %4310 = vmatpush2.xpose.msra.mxu0 0.0
    %4311 = vmatprep.subr.mxu0 0.0
    %4312 = vmatpush2.xpose.msra.mxu0 0.0
    %4313 = vmatprep.subr.mxu0 0.0
    %4314 = vmatpush2.xpose.msra.mxu0 0.0
    %4315 = vmatprep.subr.mxu0 0.0
    %4316 = vmatpush2.xpose.msra.mxu0 0.0
    %4317 = vmatprep.subr.mxu0 0.0
    %4318 = vmatpush2.xpose.msra.mxu0 0.0
    %4319 = vmatprep.subr.mxu0 0.0
    %4320 = vmatpush2.xpose.msra.mxu0 0.0
    %4321 = vmatprep.subr.mxu0 0.0
    %4322 = vmatpush2.xpose.msra.mxu0 0.0
    %4323 = vmatprep.subr.mxu0 0.0
    %4324 = vmatpush2.xpose.msra.mxu0 0.0
    %4325 = vmatprep.subr.mxu0 0.0
    %4326 = vmatpush2.xpose.msra.mxu0 0.0
    %4327 = vmatprep.subr.mxu0 0.0
    %4328 = vmatpush2.xpose.msra.mxu0 0.0
    %4329 = vmatprep.subr.mxu0 0.0
    %4330 = vmatpush2.xpose.msra.mxu0 0.0
    %4331 = vmatprep.subr.mxu0 0.0
    %4332 = vmatpush2.xpose.msra.mxu0 0.0
    %4333 = vmatprep.subr.mxu0 0.0
    %4334 = vmatpush2.xpose.msra.mxu0 0.0
    %4335 = vmatprep.subr.mxu0 0.0
    %4336 = vmatpush2.xpose.msra.mxu0 0.0
    %4337 = vmatprep.subr.mxu0 0.0
    %4338 = vmatpush2.xpose.msra.mxu0 0.0
    %4339 = vmatprep.subr.mxu0 0.0
    %4340 = vmatpush2.xpose.msra.mxu0 0.0
    %4341 = vmatprep.mubr.f32.mxu0 0.0
    %4342 = vmatmul.mubr.f32.gmra.mxu0 %v4275
    %v4343 = vpop.f32.mrf.mxu0
    %v4344 = vadd.f32 0.0, %v4343
    %v4345 = vpop.f32.mrf.mxu0
    %4346 = vdwg.mxu0
    %4351 = vrot.lane.b32.xlu0 %v4128, 1
    %v4352 = vpop.permute.xlu0 %4351
    %4353 = vrot.lane.b32.xlu0 %v4200, 1
    %v4354 = vpop.permute.xlu0 %4353
    %4355 = vrot.lane.b32.xlu0 %v4272, 1
    %v4356 = vpop.permute.xlu0 %4355
    %4357 = vrot.lane.b32.xlu0 %v4344, 1
    %v4358 = vpop.permute.xlu0 %4357
    %4363 = vrot.lane.b32.xlu0 %v4128, 2
    %v4364 = vpop.permute.xlu0 %4363
    %4365 = vrot.lane.b32.xlu0 %v4200, 2
    %v4366 = vpop.permute.xlu0 %4365
    %4367 = vrot.lane.b32.xlu0 %v4272, 2
    %v4368 = vpop.permute.xlu0 %4367
    %4369 = vrot.lane.b32.xlu0 %v4344, 2
    %v4370 = vpop.permute.xlu0 %4369
    %4375 = vrot.lane.b32.xlu0 %v4128, 3
    %v4376 = vpop.permute.xlu0 %4375
    %4377 = vrot.lane.b32.xlu0 %v4200, 3
    %v4378 = vpop.permute.xlu0 %4377
    %4379 = vrot.lane.b32.xlu0 %v4272, 3
    %v4380 = vpop.permute.xlu0 %4379
    %4381 = vrot.lane.b32.xlu0 %v4344, 3
    %v4382 = vpop.permute.xlu0 %4381
    %4387 = vrot.lane.b32.xlu0 %v4128, 4
    %v4388 = vpop.permute.xlu0 %4387
    %4389 = vrot.lane.b32.xlu0 %v4200, 4
    %v4390 = vpop.permute.xlu0 %4389
    %4391 = vrot.lane.b32.xlu0 %v4272, 4
    %v4392 = vpop.permute.xlu0 %4391
    %4393 = vrot.lane.b32.xlu0 %v4344, 4
    %v4394 = vpop.permute.xlu0 %4393
    %4399 = vrot.lane.b32.xlu0 %v4128, 5
    %v4400 = vpop.permute.xlu0 %4399
    %4401 = vrot.lane.b32.xlu0 %v4200, 5
    %v4402 = vpop.permute.xlu0 %4401
    %4403 = vrot.lane.b32.xlu0 %v4272, 5
    %v4404 = vpop.permute.xlu0 %4403
    %4405 = vrot.lane.b32.xlu0 %v4344, 5
    %v4406 = vpop.permute.xlu0 %4405
    %4411 = vrot.lane.b32.xlu0 %v4128, 6
    %v4412 = vpop.permute.xlu0 %4411
    %4413 = vrot.lane.b32.xlu0 %v4200, 6
    %v4414 = vpop.permute.xlu0 %4413
    %4415 = vrot.lane.b32.xlu0 %v4272, 6
    %v4416 = vpop.permute.xlu0 %4415
    %4417 = vrot.lane.b32.xlu0 %v4344, 6
    %v4418 = vpop.permute.xlu0 %4417
    %4423 = vrot.lane.b32.xlu0 %v4128, 7
    %v4424 = vpop.permute.xlu0 %4423
    %4425 = vrot.lane.b32.xlu0 %v4200, 7
    %v4426 = vpop.permute.xlu0 %4425
    %4427 = vrot.lane.b32.xlu0 %v4272, 7
    %v4428 = vpop.permute.xlu0 %4427
    %4429 = vrot.lane.b32.xlu0 %v4344, 7
    %v4430 = vpop.permute.xlu0 %4429
    %v4435 = vsel %vm619, %v4128, %v4352
    %v4436 = vsel %vm619, %v4200, %v4354
    %v4437 = vsel %vm619, %v4272, %v4356
    %v4438 = vsel %vm619, %v4344, %v4358
    %v4439 = vsel %vm624, %v4435, %v4364
    %v4440 = vsel %vm624, %v4436, %v4366
    %v4441 = vsel %vm624, %v4437, %v4368
    %v4442 = vsel %vm624, %v4438, %v4370
    %v4443 = vsel %vm629, %v4439, %v4376
    %v4444 = vsel %vm629, %v4440, %v4378
    %v4445 = vsel %vm629, %v4441, %v4380
    %v4446 = vsel %vm629, %v4442, %v4382
    %v4447 = vsel %vm634, %v4443, %v4388
    %v4448 = vsel %vm634, %v4444, %v4390
    %v4449 = vsel %vm634, %v4445, %v4392
    %v4450 = vsel %vm634, %v4446, %v4394
    %v4451 = vsel %vm639, %v4447, %v4400
    %v4452 = vsel %vm639, %v4448, %v4402
    %v4453 = vsel %vm639, %v4449, %v4404
    %v4454 = vsel %vm639, %v4450, %v4406
    %v4455 = vsel %vm644, %v4451, %v4412
    %v4456 = vsel %vm644, %v4452, %v4414
    %v4457 = vsel %vm644, %v4453, %v4416
    %v4458 = vsel %vm644, %v4454, %v4418
    %v4459 = vsel %vm649, %v4455, %v4424
    %v4460 = vsel %vm649, %v4456, %v4426
    %v4461 = vsel %vm649, %v4457, %v4428
    %v4462 = vsel %vm649, %v4458, %v4430
    %4464 = vrot.lane.b32.xlu0 %v4459, 120
    %v4465 = vpop.permute.xlu0 %4464
    %v4467 = vsel %vm218, %v2883, 0
    %v4469 = vsel %vm218, %v2895, 0
    %4471 = vmatprep.subr.mxu0 0.0
    %4472 = vmatpush1.xpose.msra.mxu0 0.0
    %4473 = vmatprep.subr.mxu0 0.0
    %4474 = vmatpush1.xpose.msra.mxu0 0.0
    %4475 = vmatprep.subr.mxu0 0.0
    %4476 = vmatpush1.xpose.msra.mxu0 0.0
    %4477 = vmatprep.subr.mxu0 0.0
    %4478 = vmatpush1.xpose.msra.mxu0 0.0
    %4479 = vmatprep.subr.mxu0 0.0
    %4480 = vmatpush1.xpose.msra.mxu0 0.0
    %4481 = vmatprep.subr.mxu0 0.0
    %4482 = vmatpush1.xpose.msra.mxu0 0.0
    %4483 = vmatprep.subr.mxu0 0.0
    %4484 = vmatpush1.xpose.msra.mxu0 0.0
    %4485 = vmatprep.subr.mxu0 0.0
    %4486 = vmatpush1.xpose.msra.mxu0 0.0
    %4487 = vmatprep.subr.mxu0 0.0
    %4488 = vmatpush1.xpose.msra.mxu0 0.0
    %4489 = vmatprep.subr.mxu0 0.0
    %4490 = vmatpush1.xpose.msra.mxu0 0.0
    %4491 = vmatprep.subr.mxu0 0.0
    %4492 = vmatpush1.xpose.msra.mxu0 0.0
    %4493 = vmatprep.subr.mxu0 0.0
    %4494 = vmatpush1.xpose.msra.mxu0 0.0
    %4495 = vmatprep.subr.mxu0 0.0
    %4496 = vmatpush1.xpose.msra.mxu0 0.0
    %4497 = vmatprep.subr.mxu0 0.0
    %4498 = vmatpush1.xpose.msra.mxu0 0.0
    %4499 = vmatprep.subr.mxu0 0.0
    %4500 = vmatpush1.xpose.msra.mxu0 0.0
    %4501 = vmatprep.subr.mxu0 0.0
    %4502 = vmatpush1.xpose.msra.mxu0 %v4469
    %4503 = vmatprep.subr.mxu0 0.0
    %4504 = vmatpush2.xpose.msra.mxu0 0.0
    %4505 = vmatprep.subr.mxu0 0.0
    %4506 = vmatpush2.xpose.msra.mxu0 0.0
    %4507 = vmatprep.subr.mxu0 0.0
    %4508 = vmatpush2.xpose.msra.mxu0 0.0
    %4509 = vmatprep.subr.mxu0 0.0
    %4510 = vmatpush2.xpose.msra.mxu0 0.0
    %4511 = vmatprep.subr.mxu0 0.0
    %4512 = vmatpush2.xpose.msra.mxu0 0.0
    %4513 = vmatprep.subr.mxu0 0.0
    %4514 = vmatpush2.xpose.msra.mxu0 0.0
    %4515 = vmatprep.subr.mxu0 0.0
    %4516 = vmatpush2.xpose.msra.mxu0 0.0
    %4517 = vmatprep.subr.mxu0 0.0
    %4518 = vmatpush2.xpose.msra.mxu0 0.0
    %4519 = vmatprep.subr.mxu0 0.0
    %4520 = vmatpush2.xpose.msra.mxu0 0.0
    %4521 = vmatprep.subr.mxu0 0.0
    %4522 = vmatpush2.xpose.msra.mxu0 0.0
    %4523 = vmatprep.subr.mxu0 0.0
    %4524 = vmatpush2.xpose.msra.mxu0 0.0
    %4525 = vmatprep.subr.mxu0 0.0
    %4526 = vmatpush2.xpose.msra.mxu0 0.0
    %4527 = vmatprep.subr.mxu0 0.0
    %4528 = vmatpush2.xpose.msra.mxu0 0.0
    %4529 = vmatprep.subr.mxu0 0.0
    %4530 = vmatpush2.xpose.msra.mxu0 0.0
    %4531 = vmatprep.subr.mxu0 0.0
    %4532 = vmatpush2.xpose.msra.mxu0 0.0
    %4533 = vmatprep.subr.mxu0 0.0
    %4534 = vmatpush2.xpose.msra.mxu0 0.0
    %4535 = vmatprep.mubr.f32.mxu0 0.0
    %4536 = vmatmul.mubr.f32.gmra.mxu0 %v4467
    %v4537 = vpop.f32.mrf.mxu0
    %v4538 = vadd.f32 %v4465, %v4537
    %v4539 = vpop.f32.mrf.mxu0
    %4540 = vdwg.mxu0
    %4542 = vrot.lane.b32.xlu0 %v4460, 120
    %v4543 = vpop.permute.xlu0 %4542
    %v4545 = vsel %vm218, %v2909, 0
    %v4547 = vsel %vm218, %v2917, 0
    %4549 = vmatprep.subr.mxu0 0.0
    %4550 = vmatpush1.xpose.msra.mxu0 0.0
    %4551 = vmatprep.subr.mxu0 0.0
    %4552 = vmatpush1.xpose.msra.mxu0 0.0
    %4553 = vmatprep.subr.mxu0 0.0
    %4554 = vmatpush1.xpose.msra.mxu0 0.0
    %4555 = vmatprep.subr.mxu0 0.0
    %4556 = vmatpush1.xpose.msra.mxu0 0.0
    %4557 = vmatprep.subr.mxu0 0.0
    %4558 = vmatpush1.xpose.msra.mxu0 0.0
    %4559 = vmatprep.subr.mxu0 0.0
    %4560 = vmatpush1.xpose.msra.mxu0 0.0
    %4561 = vmatprep.subr.mxu0 0.0
    %4562 = vmatpush1.xpose.msra.mxu0 0.0
    %4563 = vmatprep.subr.mxu0 0.0
    %4564 = vmatpush1.xpose.msra.mxu0 0.0
    %4565 = vmatprep.subr.mxu0 0.0
    %4566 = vmatpush1.xpose.msra.mxu0 0.0
    %4567 = vmatprep.subr.mxu0 0.0
    %4568 = vmatpush1.xpose.msra.mxu0 0.0
    %4569 = vmatprep.subr.mxu0 0.0
    %4570 = vmatpush1.xpose.msra.mxu0 0.0
    %4571 = vmatprep.subr.mxu0 0.0
    %4572 = vmatpush1.xpose.msra.mxu0 0.0
    %4573 = vmatprep.subr.mxu0 0.0
    %4574 = vmatpush1.xpose.msra.mxu0 0.0
    %4575 = vmatprep.subr.mxu0 0.0
    %4576 = vmatpush1.xpose.msra.mxu0 0.0
    %4577 = vmatprep.subr.mxu0 0.0
    %4578 = vmatpush1.xpose.msra.mxu0 0.0
    %4579 = vmatprep.subr.mxu0 0.0
    %4580 = vmatpush1.xpose.msra.mxu0 %v4547
    %4581 = vmatprep.subr.mxu0 0.0
    %4582 = vmatpush2.xpose.msra.mxu0 0.0
    %4583 = vmatprep.subr.mxu0 0.0
    %4584 = vmatpush2.xpose.msra.mxu0 0.0
    %4585 = vmatprep.subr.mxu0 0.0
    %4586 = vmatpush2.xpose.msra.mxu0 0.0
    %4587 = vmatprep.subr.mxu0 0.0
    %4588 = vmatpush2.xpose.msra.mxu0 0.0
    %4589 = vmatprep.subr.mxu0 0.0
    %4590 = vmatpush2.xpose.msra.mxu0 0.0
    %4591 = vmatprep.subr.mxu0 0.0
    %4592 = vmatpush2.xpose.msra.mxu0 0.0
    %4593 = vmatprep.subr.mxu0 0.0
    %4594 = vmatpush2.xpose.msra.mxu0 0.0
    %4595 = vmatprep.subr.mxu0 0.0
    %4596 = vmatpush2.xpose.msra.mxu0 0.0
    %4597 = vmatprep.subr.mxu0 0.0
    %4598 = vmatpush2.xpose.msra.mxu0 0.0
    %4599 = vmatprep.subr.mxu0 0.0
    %4600 = vmatpush2.xpose.msra.mxu0 0.0
    %4601 = vmatprep.subr.mxu0 0.0
    %4602 = vmatpush2.xpose.msra.mxu0 0.0
    %4603 = vmatprep.subr.mxu0 0.0
    %4604 = vmatpush2.xpose.msra.mxu0 0.0
    %4605 = vmatprep.subr.mxu0 0.0
    %4606 = vmatpush2.xpose.msra.mxu0 0.0
    %4607 = vmatprep.subr.mxu0 0.0
    %4608 = vmatpush2.xpose.msra.mxu0 0.0
    %4609 = vmatprep.subr.mxu0 0.0
    %4610 = vmatpush2.xpose.msra.mxu0 0.0
    %4611 = vmatprep.subr.mxu0 0.0
    %4612 = vmatpush2.xpose.msra.mxu0 0.0
    %4613 = vmatprep.mubr.f32.mxu0 0.0
    %4614 = vmatmul.mubr.f32.gmra.mxu0 %v4545
    %v4615 = vpop.f32.mrf.mxu0
    %v4616 = vadd.f32 %v4543, %v4615
    %v4617 = vpop.f32.mrf.mxu0
    %4618 = vdwg.mxu0
    %4620 = vrot.lane.b32.xlu0 %v4461, 120
    %v4621 = vpop.permute.xlu0 %4620
    %v4623 = vsel %vm218, %v2927, 0
    %v4625 = vsel %vm218, %v2935, 0
    %4627 = vmatprep.subr.mxu0 0.0
    %4628 = vmatpush1.xpose.msra.mxu0 0.0
    %4629 = vmatprep.subr.mxu0 0.0
    %4630 = vmatpush1.xpose.msra.mxu0 0.0
    %4631 = vmatprep.subr.mxu0 0.0
    %4632 = vmatpush1.xpose.msra.mxu0 0.0
    %4633 = vmatprep.subr.mxu0 0.0
    %4634 = vmatpush1.xpose.msra.mxu0 0.0
    %4635 = vmatprep.subr.mxu0 0.0
    %4636 = vmatpush1.xpose.msra.mxu0 0.0
    %4637 = vmatprep.subr.mxu0 0.0
    %4638 = vmatpush1.xpose.msra.mxu0 0.0
    %4639 = vmatprep.subr.mxu0 0.0
    %4640 = vmatpush1.xpose.msra.mxu0 0.0
    %4641 = vmatprep.subr.mxu0 0.0
    %4642 = vmatpush1.xpose.msra.mxu0 0.0
    %4643 = vmatprep.subr.mxu0 0.0
    %4644 = vmatpush1.xpose.msra.mxu0 0.0
    %4645 = vmatprep.subr.mxu0 0.0
    %4646 = vmatpush1.xpose.msra.mxu0 0.0
    %4647 = vmatprep.subr.mxu0 0.0
    %4648 = vmatpush1.xpose.msra.mxu0 0.0
    %4649 = vmatprep.subr.mxu0 0.0
    %4650 = vmatpush1.xpose.msra.mxu0 0.0
    %4651 = vmatprep.subr.mxu0 0.0
    %4652 = vmatpush1.xpose.msra.mxu0 0.0
    %4653 = vmatprep.subr.mxu0 0.0
    %4654 = vmatpush1.xpose.msra.mxu0 0.0
    %4655 = vmatprep.subr.mxu0 0.0
    %4656 = vmatpush1.xpose.msra.mxu0 0.0
    %4657 = vmatprep.subr.mxu0 0.0
    %4658 = vmatpush1.xpose.msra.mxu0 %v4625
    %4659 = vmatprep.subr.mxu0 0.0
    %4660 = vmatpush2.xpose.msra.mxu0 0.0
    %4661 = vmatprep.subr.mxu0 0.0
    %4662 = vmatpush2.xpose.msra.mxu0 0.0
    %4663 = vmatprep.subr.mxu0 0.0
    %4664 = vmatpush2.xpose.msra.mxu0 0.0
    %4665 = vmatprep.subr.mxu0 0.0
    %4666 = vmatpush2.xpose.msra.mxu0 0.0
    %4667 = vmatprep.subr.mxu0 0.0
    %4668 = vmatpush2.xpose.msra.mxu0 0.0
    %4669 = vmatprep.subr.mxu0 0.0
    %4670 = vmatpush2.xpose.msra.mxu0 0.0
    %4671 = vmatprep.subr.mxu0 0.0
    %4672 = vmatpush2.xpose.msra.mxu0 0.0
    %4673 = vmatprep.subr.mxu0 0.0
    %4674 = vmatpush2.xpose.msra.mxu0 0.0
    %4675 = vmatprep.subr.mxu0 0.0
    %4676 = vmatpush2.xpose.msra.mxu0 0.0
    %4677 = vmatprep.subr.mxu0 0.0
    %4678 = vmatpush2.xpose.msra.mxu0 0.0
    %4679 = vmatprep.subr.mxu0 0.0
    %4680 = vmatpush2.xpose.msra.mxu0 0.0
    %4681 = vmatprep.subr.mxu0 0.0
    %4682 = vmatpush2.xpose.msra.mxu0 0.0
    %4683 = vmatprep.subr.mxu0 0.0
    %4684 = vmatpush2.xpose.msra.mxu0 0.0
    %4685 = vmatprep.subr.mxu0 0.0
    %4686 = vmatpush2.xpose.msra.mxu0 0.0
    %4687 = vmatprep.subr.mxu0 0.0
    %4688 = vmatpush2.xpose.msra.mxu0 0.0
    %4689 = vmatprep.subr.mxu0 0.0
    %4690 = vmatpush2.xpose.msra.mxu0 0.0
    %4691 = vmatprep.mubr.f32.mxu0 0.0
    %4692 = vmatmul.mubr.f32.gmra.mxu0 %v4623
    %v4693 = vpop.f32.mrf.mxu0
    %v4694 = vadd.f32 %v4621, %v4693
    %v4695 = vpop.f32.mrf.mxu0
    %4696 = vdwg.mxu0
    %4698 = vrot.lane.b32.xlu0 %v4462, 120
    %v4699 = vpop.permute.xlu0 %4698
    %v4701 = vsel %vm218, %v2945, 0
    %v4703 = vsel %vm218, %v2953, 0
    %4705 = vmatprep.subr.mxu0 0.0
    %4706 = vmatpush1.xpose.msra.mxu0 0.0
    %4707 = vmatprep.subr.mxu0 0.0
    %4708 = vmatpush1.xpose.msra.mxu0 0.0
    %4709 = vmatprep.subr.mxu0 0.0
    %4710 = vmatpush1.xpose.msra.mxu0 0.0
    %4711 = vmatprep.subr.mxu0 0.0
    %4712 = vmatpush1.xpose.msra.mxu0 0.0
    %4713 = vmatprep.subr.mxu0 0.0
    %4714 = vmatpush1.xpose.msra.mxu0 0.0
    %4715 = vmatprep.subr.mxu0 0.0
    %4716 = vmatpush1.xpose.msra.mxu0 0.0
    %4717 = vmatprep.subr.mxu0 0.0
    %4718 = vmatpush1.xpose.msra.mxu0 0.0
    %4719 = vmatprep.subr.mxu0 0.0
    %4720 = vmatpush1.xpose.msra.mxu0 0.0
    %4721 = vmatprep.subr.mxu0 0.0
    %4722 = vmatpush1.xpose.msra.mxu0 0.0
    %4723 = vmatprep.subr.mxu0 0.0
    %4724 = vmatpush1.xpose.msra.mxu0 0.0
    %4725 = vmatprep.subr.mxu0 0.0
    %4726 = vmatpush1.xpose.msra.mxu0 0.0
    %4727 = vmatprep.subr.mxu0 0.0
    %4728 = vmatpush1.xpose.msra.mxu0 0.0
    %4729 = vmatprep.subr.mxu0 0.0
    %4730 = vmatpush1.xpose.msra.mxu0 0.0
    %4731 = vmatprep.subr.mxu0 0.0
    %4732 = vmatpush1.xpose.msra.mxu0 0.0
    %4733 = vmatprep.subr.mxu0 0.0
    %4734 = vmatpush1.xpose.msra.mxu0 0.0
    %4735 = vmatprep.subr.mxu0 0.0
    %4736 = vmatpush1.xpose.msra.mxu0 %v4703
    %4737 = vmatprep.subr.mxu0 0.0
    %4738 = vmatpush2.xpose.msra.mxu0 0.0
    %4739 = vmatprep.subr.mxu0 0.0
    %4740 = vmatpush2.xpose.msra.mxu0 0.0
    %4741 = vmatprep.subr.mxu0 0.0
    %4742 = vmatpush2.xpose.msra.mxu0 0.0
    %4743 = vmatprep.subr.mxu0 0.0
    %4744 = vmatpush2.xpose.msra.mxu0 0.0
    %4745 = vmatprep.subr.mxu0 0.0
    %4746 = vmatpush2.xpose.msra.mxu0 0.0
    %4747 = vmatprep.subr.mxu0 0.0
    %4748 = vmatpush2.xpose.msra.mxu0 0.0
    %4749 = vmatprep.subr.mxu0 0.0
    %4750 = vmatpush2.xpose.msra.mxu0 0.0
    %4751 = vmatprep.subr.mxu0 0.0
    %4752 = vmatpush2.xpose.msra.mxu0 0.0
    %4753 = vmatprep.subr.mxu0 0.0
    %4754 = vmatpush2.xpose.msra.mxu0 0.0
    %4755 = vmatprep.subr.mxu0 0.0
    %4756 = vmatpush2.xpose.msra.mxu0 0.0
    %4757 = vmatprep.subr.mxu0 0.0
    %4758 = vmatpush2.xpose.msra.mxu0 0.0
    %4759 = vmatprep.subr.mxu0 0.0
    %4760 = vmatpush2.xpose.msra.mxu0 0.0
    %4761 = vmatprep.subr.mxu0 0.0
    %4762 = vmatpush2.xpose.msra.mxu0 0.0
    %4763 = vmatprep.subr.mxu0 0.0
    %4764 = vmatpush2.xpose.msra.mxu0 0.0
    %4765 = vmatprep.subr.mxu0 0.0
    %4766 = vmatpush2.xpose.msra.mxu0 0.0
    %4767 = vmatprep.subr.mxu0 0.0
    %4768 = vmatpush2.xpose.msra.mxu0 0.0
    %4769 = vmatprep.mubr.f32.mxu0 0.0
    %4770 = vmatmul.mubr.f32.gmra.mxu0 %v4701
    %v4771 = vpop.f32.mrf.mxu0
    %v4772 = vadd.f32 %v4699, %v4771
    %v4773 = vpop.f32.mrf.mxu0
    %4774 = vdwg.mxu0
    %v4775 = vmul.f32 %v4538, 0.35355338
    %v4776 = vmul.f32 %v4616, 0.35355338
    %v4777 = vmul.f32 %v4694, 0.35355338
    %v4778 = vmul.f32 %v4772, 0.35355338
    %v4779 = vadd.f32 %v4775, %v2057
    %v4780 = vadd.f32 %v4776, %v2057
    %v4781 = vadd.f32 %v4777, %v2057
    %v4782 = vadd.f32 %v4778, %v2057
    %v4783 = vsel %vm218, %v4779, -inf
    %4784 = vmax.xlane.f32.xlu0 %v4783
    %v4785 = vpop.xlane.xlu0 %4784
    %v4786 = vsel %vm218, %v4780, -inf
    %4787 = vmax.xlane.f32.xlu0 %v4786
    %v4788 = vpop.xlane.xlu0 %4787
    %v4789 = vsel %vm218, %v4781, -inf
    %4790 = vmax.xlane.f32.xlu0 %v4789
    %v4791 = vpop.xlane.xlu0 %4790
    %v4792 = vsel %vm218, %v4782, -inf
    %4793 = vmax.xlane.f32.xlu0 %v4792
    %v4794 = vpop.xlane.xlu0 %4793
    %v4795 = vsub.f32 %v4779, %v4785
    %v4796 = vsub.f32 %v4780, %v4788
    %v4797 = vsub.f32 %v4781, %v4791
    %v4798 = vsub.f32 %v4782, %v4794
    %v4799 = vmul.f32 %v4795, 1.442695
    %v4800 = vpow.pop %v4799
    %v4801 = vmul.f32 %v4796, 1.442695
    %v4802 = vpow.pop %v4801
    %v4803 = vmul.f32 %v4797, 1.442695
    %v4804 = vpow.pop %v4803
    %v4805 = vmul.f32 %v4798, 1.442695
    %v4806 = vpow.pop %v4805
    %v4807 = vsel %vm218, %v4800, 0.0
    %4808 = vadd.xlane.f32.xlu0 %v4807
    %v4809 = vpop.xlane.xlu0 %4808
    %v4810 = vsel %vm218, %v4802, 0.0
    %4811 = vadd.xlane.f32.xlu0 %v4810
    %v4812 = vpop.xlane.xlu0 %4811
    %v4813 = vsel %vm218, %v4804, 0.0
    %4814 = vadd.xlane.f32.xlu0 %v4813
    %v4815 = vpop.xlane.xlu0 %4814
    %v4816 = vsel %vm218, %v4806, 0.0
    %4817 = vadd.xlane.f32.xlu0 %v4816
    %v4818 = vpop.xlane.xlu0 %4817
    %v4819 = vrcp.pop %v4809
    %v4820 = vmul.f32 %v4800, %v4819
    %v4821 = vrcp.pop %v4812
    %v4822 = vmul.f32 %v4802, %v4821
    %v4823 = vrcp.pop %v4815
    %v4824 = vmul.f32 %v4804, %v4823
    %v4825 = vrcp.pop %v4818
    %v4826 = vmul.f32 %v4806, %v4825
    %v4828 = vsel %vm218, %v4820, 0
    %4830 = vmatprep.subr.mxu0 0.0
    %4831 = vmatpush1.msra.mxu0 0.0
    %4832 = vmatprep.subr.mxu0 0.0
    %4833 = vmatpush1.msra.mxu0 0.0
    %4834 = vmatprep.subr.mxu0 0.0
    %4835 = vmatpush1.msra.mxu0 0.0
    %4836 = vmatprep.subr.mxu0 0.0
    %4837 = vmatpush1.msra.mxu0 0.0
    %4838 = vmatprep.subr.mxu0 0.0
    %4839 = vmatpush1.msra.mxu0 0.0
    %4840 = vmatprep.subr.mxu0 0.0
    %4841 = vmatpush1.msra.mxu0 0.0
    %4842 = vmatprep.subr.mxu0 0.0
    %4843 = vmatpush1.msra.mxu0 0.0
    %4844 = vmatprep.subr.mxu0 0.0
    %4845 = vmatpush1.msra.mxu0 0.0
    %4846 = vmatprep.subr.mxu0 0.0
    %4847 = vmatpush1.msra.mxu0 0.0
    %4848 = vmatprep.subr.mxu0 0.0
    %4849 = vmatpush1.msra.mxu0 0.0
    %4850 = vmatprep.subr.mxu0 0.0
    %4851 = vmatpush1.msra.mxu0 0.0
    %4852 = vmatprep.subr.mxu0 0.0
    %4853 = vmatpush1.msra.mxu0 0.0
    %4854 = vmatprep.subr.mxu0 0.0
    %4855 = vmatpush1.msra.mxu0 0.0
    %4856 = vmatprep.subr.mxu0 0.0
    %4857 = vmatpush1.msra.mxu0 0.0
    %4858 = vmatprep.subr.mxu0 0.0
    %4859 = vmatpush1.msra.mxu0 0.0
    %4860 = vmatprep.subr.mxu0 0.0
    %4861 = vmatpush1.msra.mxu0 %v2899
    %4862 = vmatprep.subr.mxu0 0.0
    %4863 = vmatpush2.msra.mxu0 0.0
    %4864 = vmatprep.subr.mxu0 0.0
    %4865 = vmatpush2.msra.mxu0 0.0
    %4866 = vmatprep.subr.mxu0 0.0
    %4867 = vmatpush2.msra.mxu0 0.0
    %4868 = vmatprep.subr.mxu0 0.0
    %4869 = vmatpush2.msra.mxu0 0.0
    %4870 = vmatprep.subr.mxu0 0.0
    %4871 = vmatpush2.msra.mxu0 0.0
    %4872 = vmatprep.subr.mxu0 0.0
    %4873 = vmatpush2.msra.mxu0 0.0
    %4874 = vmatprep.subr.mxu0 0.0
    %4875 = vmatpush2.msra.mxu0 0.0
    %4876 = vmatprep.subr.mxu0 0.0
    %4877 = vmatpush2.msra.mxu0 0.0
    %4878 = vmatprep.subr.mxu0 0.0
    %4879 = vmatpush2.msra.mxu0 0.0
    %4880 = vmatprep.subr.mxu0 0.0
    %4881 = vmatpush2.msra.mxu0 0.0
    %4882 = vmatprep.subr.mxu0 0.0
    %4883 = vmatpush2.msra.mxu0 0.0
    %4884 = vmatprep.subr.mxu0 0.0
    %4885 = vmatpush2.msra.mxu0 0.0
    %4886 = vmatprep.subr.mxu0 0.0
    %4887 = vmatpush2.msra.mxu0 0.0
    %4888 = vmatprep.subr.mxu0 0.0
    %4889 = vmatpush2.msra.mxu0 0.0
    %4890 = vmatprep.subr.mxu0 0.0
    %4891 = vmatpush2.msra.mxu0 0.0
    %4892 = vmatprep.subr.mxu0 0.0
    %4893 = vmatpush2.msra.mxu0 0.0
    %4894 = vmatprep.mubr.f32.mxu0 0.0
    %4895 = vmatmul.mubr.f32.gmra.mxu0 %v4828
    %v4896 = vpop.f32.mrf.mxu0
    %v4897 = vadd.f32 0.0, %v4896
    %v4898 = vpop.f32.mrf.mxu0
    %4899 = vdwg.mxu0
    %v4901 = vsel %vm218, %v4822, 0
    %4903 = vmatprep.subr.mxu0 0.0
    %4904 = vmatpush1.msra.mxu0 0.0
    %4905 = vmatprep.subr.mxu0 0.0
    %4906 = vmatpush1.msra.mxu0 0.0
    %4907 = vmatprep.subr.mxu0 0.0
    %4908 = vmatpush1.msra.mxu0 0.0
    %4909 = vmatprep.subr.mxu0 0.0
    %4910 = vmatpush1.msra.mxu0 0.0
    %4911 = vmatprep.subr.mxu0 0.0
    %4912 = vmatpush1.msra.mxu0 0.0
    %4913 = vmatprep.subr.mxu0 0.0
    %4914 = vmatpush1.msra.mxu0 0.0
    %4915 = vmatprep.subr.mxu0 0.0
    %4916 = vmatpush1.msra.mxu0 0.0
    %4917 = vmatprep.subr.mxu0 0.0
    %4918 = vmatpush1.msra.mxu0 0.0
    %4919 = vmatprep.subr.mxu0 0.0
    %4920 = vmatpush1.msra.mxu0 0.0
    %4921 = vmatprep.subr.mxu0 0.0
    %4922 = vmatpush1.msra.mxu0 0.0
    %4923 = vmatprep.subr.mxu0 0.0
    %4924 = vmatpush1.msra.mxu0 0.0
    %4925 = vmatprep.subr.mxu0 0.0
    %4926 = vmatpush1.msra.mxu0 0.0
    %4927 = vmatprep.subr.mxu0 0.0
    %4928 = vmatpush1.msra.mxu0 0.0
    %4929 = vmatprep.subr.mxu0 0.0
    %4930 = vmatpush1.msra.mxu0 0.0
    %4931 = vmatprep.subr.mxu0 0.0
    %4932 = vmatpush1.msra.mxu0 0.0
    %4933 = vmatprep.subr.mxu0 0.0
    %4934 = vmatpush1.msra.mxu0 %v2921
    %4935 = vmatprep.subr.mxu0 0.0
    %4936 = vmatpush2.msra.mxu0 0.0
    %4937 = vmatprep.subr.mxu0 0.0
    %4938 = vmatpush2.msra.mxu0 0.0
    %4939 = vmatprep.subr.mxu0 0.0
    %4940 = vmatpush2.msra.mxu0 0.0
    %4941 = vmatprep.subr.mxu0 0.0
    %4942 = vmatpush2.msra.mxu0 0.0
    %4943 = vmatprep.subr.mxu0 0.0
    %4944 = vmatpush2.msra.mxu0 0.0
    %4945 = vmatprep.subr.mxu0 0.0
    %4946 = vmatpush2.msra.mxu0 0.0
    %4947 = vmatprep.subr.mxu0 0.0
    %4948 = vmatpush2.msra.mxu0 0.0
    %4949 = vmatprep.subr.mxu0 0.0
    %4950 = vmatpush2.msra.mxu0 0.0
    %4951 = vmatprep.subr.mxu0 0.0
    %4952 = vmatpush2.msra.mxu0 0.0
    %4953 = vmatprep.subr.mxu0 0.0
    %4954 = vmatpush2.msra.mxu0 0.0
    %4955 = vmatprep.subr.mxu0 0.0
    %4956 = vmatpush2.msra.mxu0 0.0
    %4957 = vmatprep.subr.mxu0 0.0
    %4958 = vmatpush2.msra.mxu0 0.0
    %4959 = vmatprep.subr.mxu0 0.0
    %4960 = vmatpush2.msra.mxu0 0.0
    %4961 = vmatprep.subr.mxu0 0.0
    %4962 = vmatpush2.msra.mxu0 0.0
    %4963 = vmatprep.subr.mxu0 0.0
    %4964 = vmatpush2.msra.mxu0 0.0
    %4965 = vmatprep.subr.mxu0 0.0
    %4966 = vmatpush2.msra.mxu0 0.0
    %4967 = vmatprep.mubr.f32.mxu0 0.0
    %4968 = vmatmul.mubr.f32.gmra.mxu0 %v4901
    %v4969 = vpop.f32.mrf.mxu0
    %v4970 = vadd.f32 0.0, %v4969
    %v4971 = vpop.f32.mrf.mxu0
    %4972 = vdwg.mxu0
    %v4974 = vsel %vm218, %v4824, 0
    %4976 = vmatprep.subr.mxu0 0.0
    %4977 = vmatpush1.msra.mxu0 0.0
    %4978 = vmatprep.subr.mxu0 0.0
    %4979 = vmatpush1.msra.mxu0 0.0
    %4980 = vmatprep.subr.mxu0 0.0
    %4981 = vmatpush1.msra.mxu0 0.0
    %4982 = vmatprep.subr.mxu0 0.0
    %4983 = vmatpush1.msra.mxu0 0.0
    %4984 = vmatprep.subr.mxu0 0.0
    %4985 = vmatpush1.msra.mxu0 0.0
    %4986 = vmatprep.subr.mxu0 0.0
    %4987 = vmatpush1.msra.mxu0 0.0
    %4988 = vmatprep.subr.mxu0 0.0
    %4989 = vmatpush1.msra.mxu0 0.0
    %4990 = vmatprep.subr.mxu0 0.0
    %4991 = vmatpush1.msra.mxu0 0.0
    %4992 = vmatprep.subr.mxu0 0.0
    %4993 = vmatpush1.msra.mxu0 0.0
    %4994 = vmatprep.subr.mxu0 0.0
    %4995 = vmatpush1.msra.mxu0 0.0
    %4996 = vmatprep.subr.mxu0 0.0
    %4997 = vmatpush1.msra.mxu0 0.0
    %4998 = vmatprep.subr.mxu0 0.0
    %4999 = vmatpush1.msra.mxu0 0.0
    %5000 = vmatprep.subr.mxu0 0.0
    %5001 = vmatpush1.msra.mxu0 0.0
    %5002 = vmatprep.subr.mxu0 0.0
    %5003 = vmatpush1.msra.mxu0 0.0
    %5004 = vmatprep.subr.mxu0 0.0
    %5005 = vmatpush1.msra.mxu0 0.0
    %5006 = vmatprep.subr.mxu0 0.0
    %5007 = vmatpush1.msra.mxu0 %v2939
    %5008 = vmatprep.subr.mxu0 0.0
    %5009 = vmatpush2.msra.mxu0 0.0
    %5010 = vmatprep.subr.mxu0 0.0
    %5011 = vmatpush2.msra.mxu0 0.0
    %5012 = vmatprep.subr.mxu0 0.0
    %5013 = vmatpush2.msra.mxu0 0.0
    %5014 = vmatprep.subr.mxu0 0.0
    %5015 = vmatpush2.msra.mxu0 0.0
    %5016 = vmatprep.subr.mxu0 0.0
    %5017 = vmatpush2.msra.mxu0 0.0
    %5018 = vmatprep.subr.mxu0 0.0
    %5019 = vmatpush2.msra.mxu0 0.0
    %5020 = vmatprep.subr.mxu0 0.0
    %5021 = vmatpush2.msra.mxu0 0.0
    %5022 = vmatprep.subr.mxu0 0.0
    %5023 = vmatpush2.msra.mxu0 0.0
    %5024 = vmatprep.subr.mxu0 0.0
    %5025 = vmatpush2.msra.mxu0 0.0
    %5026 = vmatprep.subr.mxu0 0.0
    %5027 = vmatpush2.msra.mxu0 0.0
    %5028 = vmatprep.subr.mxu0 0.0
    %5029 = vmatpush2.msra.mxu0 0.0
    %5030 = vmatprep.subr.mxu0 0.0
    %5031 = vmatpush2.msra.mxu0 0.0
    %5032 = vmatprep.subr.mxu0 0.0
    %5033 = vmatpush2.msra.mxu0 0.0
    %5034 = vmatprep.subr.mxu0 0.0
    %5035 = vmatpush2.msra.mxu0 0.0
    %5036 = vmatprep.subr.mxu0 0.0
    %5037 = vmatpush2.msra.mxu0 0.0
    %5038 = vmatprep.subr.mxu0 0.0
    %5039 = vmatpush2.msra.mxu0 0.0
    %5040 = vmatprep.mubr.f32.mxu0 0.0
    %5041 = vmatmul.mubr.f32.gmra.mxu0 %v4974
    %v5042 = vpop.f32.mrf.mxu0
    %v5043 = vadd.f32 0.0, %v5042
    %v5044 = vpop.f32.mrf.mxu0
    %5045 = vdwg.mxu0
    %v5047 = vsel %vm218, %v4826, 0
    %5049 = vmatprep.subr.mxu0 0.0
    %5050 = vmatpush1.msra.mxu0 0.0
    %5051 = vmatprep.subr.mxu0 0.0
    %5052 = vmatpush1.msra.mxu0 0.0
    %5053 = vmatprep.subr.mxu0 0.0
    %5054 = vmatpush1.msra.mxu0 0.0
    %5055 = vmatprep.subr.mxu0 0.0
    %5056 = vmatpush1.msra.mxu0 0.0
    %5057 = vmatprep.subr.mxu0 0.0
    %5058 = vmatpush1.msra.mxu0 0.0
    %5059 = vmatprep.subr.mxu0 0.0
    %5060 = vmatpush1.msra.mxu0 0.0
    %5061 = vmatprep.subr.mxu0 0.0
    %5062 = vmatpush1.msra.mxu0 0.0
    %5063 = vmatprep.subr.mxu0 0.0
    %5064 = vmatpush1.msra.mxu0 0.0
    %5065 = vmatprep.subr.mxu0 0.0
    %5066 = vmatpush1.msra.mxu0 0.0
    %5067 = vmatprep.subr.mxu0 0.0
    %5068 = vmatpush1.msra.mxu0 0.0
    %5069 = vmatprep.subr.mxu0 0.0
    %5070 = vmatpush1.msra.mxu0 0.0
    %5071 = vmatprep.subr.mxu0 0.0
    %5072 = vmatpush1.msra.mxu0 0.0
    %5073 = vmatprep.subr.mxu0 0.0
    %5074 = vmatpush1.msra.mxu0 0.0
    %5075 = vmatprep.subr.mxu0 0.0
    %5076 = vmatpush1.msra.mxu0 0.0
    %5077 = vmatprep.subr.mxu0 0.0
    %5078 = vmatpush1.msra.mxu0 0.0
    %5079 = vmatprep.subr.mxu0 0.0
    %5080 = vmatpush1.msra.mxu0 %v2957
    %5081 = vmatprep.subr.mxu0 0.0
    %5082 = vmatpush2.msra.mxu0 0.0
    %5083 = vmatprep.subr.mxu0 0.0
    %5084 = vmatpush2.msra.mxu0 0.0
    %5085 = vmatprep.subr.mxu0 0.0
    %5086 = vmatpush2.msra.mxu0 0.0
    %5087 = vmatprep.subr.mxu0 0.0
    %5088 = vmatpush2.msra.mxu0 0.0
    %5089 = vmatprep.subr.mxu0 0.0
    %5090 = vmatpush2.msra.mxu0 0.0
    %5091 = vmatprep.subr.mxu0 0.0
    %5092 = vmatpush2.msra.mxu0 0.0
    %5093 = vmatprep.subr.mxu0 0.0
    %5094 = vmatpush2.msra.mxu0 0.0
    %5095 = vmatprep.subr.mxu0 0.0
    %5096 = vmatpush2.msra.mxu0 0.0
    %5097 = vmatprep.subr.mxu0 0.0
    %5098 = vmatpush2.msra.mxu0 0.0
    %5099 = vmatprep.subr.mxu0 0.0
    %5100 = vmatpush2.msra.mxu0 0.0
    %5101 = vmatprep.subr.mxu0 0.0
    %5102 = vmatpush2.msra.mxu0 0.0
    %5103 = vmatprep.subr.mxu0 0.0
    %5104 = vmatpush2.msra.mxu0 0.0
    %5105 = vmatprep.subr.mxu0 0.0
    %5106 = vmatpush2.msra.mxu0 0.0
    %5107 = vmatprep.subr.mxu0 0.0
    %5108 = vmatpush2.msra.mxu0 0.0
    %5109 = vmatprep.subr.mxu0 0.0
    %5110 = vmatpush2.msra.mxu0 0.0
    %5111 = vmatprep.subr.mxu0 0.0
    %5112 = vmatpush2.msra.mxu0 0.0
    %5113 = vmatprep.mubr.f32.mxu0 0.0
    %5114 = vmatmul.mubr.f32.gmra.mxu0 %v5047
    %v5115 = vpop.f32.mrf.mxu0
    %v5116 = vadd.f32 0.0, %v5115
    %v5117 = vpop.f32.mrf.mxu0
    %5118 = vdwg.mxu0
    %5120 = vrot.lane.b32.xlu0 %v4970, 8
    %v5121 = vpop.permute.xlu0 %5120
    %5124 = vrot.lane.b32.xlu0 %v5043, 16
    %v5125 = vpop.permute.xlu0 %5124
    %5128 = vrot.lane.b32.xlu0 %v5116, 24
    %v5129 = vpop.permute.xlu0 %5128
    %v5131 = vsel %vm218, %v4897, %v5121
    %v5132 = vsel %vm1329, %v5131, %v5125
    %v5133 = vsel %vm1331, %v5132, %v5129
    %s5134 = scalar_lea.vmem %s5, 32
    %v5135 = vld [vmem:[%s5134] sm:$0xff]
    %v5136 = vld [vmem:[%s5134 + $0x8] sm:$0xff]
    %v5137 = vld [vmem:[%s5134 + $0x10] sm:$0xff]
    %v5138 = vld [vmem:[%s5134 + $0x18] sm:$0xff]
    %v5140 = vsel %vm54, %v4058, 0
    %v5143 = vsel %vm54, %v5133, 0
    %5145 = vmatprep.subr.mxu0 0.0
    %5146 = vmatpush1.msra.mxu0 0.0
    %5147 = vmatprep.subr.mxu0 0.0
    %5148 = vmatpush1.msra.mxu0 0.0
    %5149 = vmatprep.subr.mxu0 0.0
    %5150 = vmatpush1.msra.mxu0 0.0
    %5151 = vmatprep.subr.mxu0 0.0
    %5152 = vmatpush1.msra.mxu0 0.0
    %5153 = vmatprep.subr.mxu0 0.0
    %5154 = vmatpush1.msra.mxu0 0.0
    %5155 = vmatprep.subr.mxu0 0.0
    %5156 = vmatpush1.msra.mxu0 0.0
    %5157 = vmatprep.subr.mxu0 0.0
    %5158 = vmatpush1.msra.mxu0 0.0
    %5159 = vmatprep.subr.mxu0 0.0
    %5160 = vmatpush1.msra.mxu0 0.0
    %5161 = vmatprep.subr.mxu0 0.0
    %5162 = vmatpush1.msra.mxu0 0.0
    %5163 = vmatprep.subr.mxu0 0.0
    %5164 = vmatpush1.msra.mxu0 0.0
    %5165 = vmatprep.subr.mxu0 0.0
    %5166 = vmatpush1.msra.mxu0 0.0
    %5167 = vmatprep.subr.mxu0 0.0
    %5168 = vmatpush1.msra.mxu0 0.0
    %5169 = vmatprep.subr.mxu0 0.0
    %5170 = vmatpush1.msra.mxu0 %v5138
    %5171 = vmatprep.subr.mxu0 0.0
    %5172 = vmatpush1.msra.mxu0 %v5137
    %5173 = vmatprep.subr.mxu0 0.0
    %5174 = vmatpush1.msra.mxu0 %v5136
    %5175 = vmatprep.subr.mxu0 0.0
    %5176 = vmatpush1.msra.mxu0 %v5135
    %5177 = vmatprep.subr.mxu0 0.0
    %5178 = vmatpush2.msra.mxu0 0.0
    %5179 = vmatprep.subr.mxu0 0.0
    %5180 = vmatpush2.msra.mxu0 0.0
    %5181 = vmatprep.subr.mxu0 0.0
    %5182 = vmatpush2.msra.mxu0 0.0
    %5183 = vmatprep.subr.mxu0 0.0
    %5184 = vmatpush2.msra.mxu0 0.0
    %5185 = vmatprep.subr.mxu0 0.0
    %5186 = vmatpush2.msra.mxu0 0.0
    %5187 = vmatprep.subr.mxu0 0.0
    %5188 = vmatpush2.msra.mxu0 0.0
    %5189 = vmatprep.subr.mxu0 0.0
    %5190 = vmatpush2.msra.mxu0 0.0
    %5191 = vmatprep.subr.mxu0 0.0
    %5192 = vmatpush2.msra.mxu0 0.0
    %5193 = vmatprep.subr.mxu0 0.0
    %5194 = vmatpush2.msra.mxu0 0.0
    %5195 = vmatprep.subr.mxu0 0.0
    %5196 = vmatpush2.msra.mxu0 0.0
    %5197 = vmatprep.subr.mxu0 0.0
    %5198 = vmatpush2.msra.mxu0 0.0
    %5199 = vmatprep.subr.mxu0 0.0
    %5200 = vmatpush2.msra.mxu0 0.0
    %5201 = vmatprep.subr.mxu0 0.0
    %5202 = vmatpush2.msra.mxu0 0.0
    %5203 = vmatprep.subr.mxu0 0.0
    %5204 = vmatpush2.msra.mxu0 0.0
    %5205 = vmatprep.subr.mxu0 0.0
    %5206 = vmatpush2.msra.mxu0 0.0
    %5207 = vmatprep.subr.mxu0 0.0
    %5208 = vmatpush2.msra.mxu0 0.0
    %5209 = vmatprep.mubr.f32.mxu0 0.0
    %5210 = vmatmul.mubr.f32.gmra.mxu0 %v5140
    %v5211 = vpop.f32.mrf.mxu0
    %v5212 = vadd.f32 0.0, %v5211
    %v5213 = vpop.f32.mrf.mxu0
    %5214 = vmatprep.mubr.f32.mxu0 0.0
    %5215 = vmatmul.mubr.f32.gmra.mxu0 %v5143
    %v5216 = vpop.f32.mrf.mxu0
    %v5217 = vadd.f32 0.0, %v5216
    %v5218 = vpop.f32.mrf.mxu0
    %5219 = vdwg.mxu0
    %v5220 = vadd.f32 %v2779, %v5212
    %v5221 = vadd.f32 %v2780, %v5217
    %v5222 = vsel %vm54, %v5220, 0.0
    %5223 = vadd.xlane.f32.xlu0 %v5222
    %v5224 = vpop.xlane.xlu0 %5223
    %v5225 = vsel %vm54, %v5221, 0.0
    %5226 = vadd.xlane.f32.xlu0 %v5225
    %v5227 = vpop.xlane.xlu0 %5226
    %v5228 = vmul.f32 %v5224, %v2507
    %v5229 = vmul.f32 %v5227, %v2507
    %v5230 = vsub.f32 %v5220, %v5228
    %v5231 = vsub.f32 %v5221, %v5229
    %v5232 = vmul.f32 %v5230, %v5230
    %v5233 = vmul.f32 %v5231, %v5231
    %v5234 = vsel %vm54, %v5232, 0.0
    %5235 = vadd.xlane.f32.xlu0 %v5234
    %v5236 = vpop.xlane.xlu0 %5235
    %v5237 = vsel %vm54, %v5233, 0.0
    %5238 = vadd.xlane.f32.xlu0 %v5237
    %v5239 = vpop.xlane.xlu0 %5238
    %v5240 = vmul.f32 %v5236, %v2507
    %v5241 = vmul.f32 %v5239, %v2507
    %v5242 = vadd.f32 %v5240, 1e-12
    %v5243 = vadd.f32 %v5241, 1e-12
    %v5244 = vrsqrt.pop %v5242
    %v5245 = vrsqrt.pop %v5243
    %v5246 = vmul.f32 %v5230, %v5244
    %v5247 = vmul.f32 %v5231, %v5245
    %v5248 = vlaneseq
    %v5249 = vshrl.u32 %v5248, 7
    %v5250 = vsub.s32 2, %v5249
    %v5251 = vrot.slane %v2782, %v5250
    %v5252 = vmul.f32 %v5246, %v5251
    %v5253 = vmul.f32 %v5247, %v5251
    %v5254 = vlaneseq
    %v5255 = vshrl.u32 %v5254, 7
    %v5256 = vsub.s32 3, %v5255
    %v5257 = vrot.slane %v2782, %v5256
    %v5258 = vadd.f32 %v5252, %v5257
    %v5259 = vadd.f32 %v5253, %v5257
    %s5260 = scalar_lea.vmem %s6, 32
    %v5261 = vld [vmem:[%s5260] sm:$0xff]
    %v5262 = vld [vmem:[%s5260 + $0x8] sm:$0xff]
    %v5263 = vld [vmem:[%s5260 + $0x10] sm:$0xff]
    %v5264 = vld [vmem:[%s5260 + $0x18] sm:$0xff]
    %v5265 = vlaneseq
    %v5266 = vshrl.u32 %v5265, 7
    %v5267 = vsub.s32 4, %v5266
    %v5268 = vrot.slane %v2782, %v5267
    %v5270 = vsel %vm54, %v5258, 0
    %v5273 = vsel %vm54, %v5259, 0
    %5275 = vmatprep.subr.mxu0 0.0
    %5276 = vmatpush1.msra.mxu0 0.0
    %5277 = vmatprep.subr.mxu0 0.0
    %5278 = vmatpush1.msra.mxu0 0.0
    %5279 = vmatprep.subr.mxu0 0.0
    %5280 = vmatpush1.msra.mxu0 0.0
    %5281 = vmatprep.subr.mxu0 0.0
    %5282 = vmatpush1.msra.mxu0 0.0
    %5283 = vmatprep.subr.mxu0 0.0
    %5284 = vmatpush1.msra.mxu0 0.0
    %5285 = vmatprep.subr.mxu0 0.0
    %5286 = vmatpush1.msra.mxu0 0.0
    %5287 = vmatprep.subr.mxu0 0.0
    %5288 = vmatpush1.msra.mxu0 0.0
    %5289 = vmatprep.subr.mxu0 0.0
    %5290 = vmatpush1.msra.mxu0 0.0
    %5291 = vmatprep.subr.mxu0 0.0
    %5292 = vmatpush1.msra.mxu0 0.0
    %5293 = vmatprep.subr.mxu0 0.0
    %5294 = vmatpush1.msra.mxu0 0.0
    %5295 = vmatprep.subr.mxu0 0.0
    %5296 = vmatpush1.msra.mxu0 0.0
    %5297 = vmatprep.subr.mxu0 0.0
    %5298 = vmatpush1.msra.mxu0 0.0
    %5299 = vmatprep.subr.mxu0 0.0
    %5300 = vmatpush1.msra.mxu0 %v5264
    %5301 = vmatprep.subr.mxu0 0.0
    %5302 = vmatpush1.msra.mxu0 %v5263
    %5303 = vmatprep.subr.mxu0 0.0
    %5304 = vmatpush1.msra.mxu0 %v5262
    %5305 = vmatprep.subr.mxu0 0.0
    %5306 = vmatpush1.msra.mxu0 %v5261
    %5307 = vmatprep.subr.mxu0 0.0
    %5308 = vmatpush2.msra.mxu0 0.0
    %5309 = vmatprep.subr.mxu0 0.0
    %5310 = vmatpush2.msra.mxu0 0.0
    %5311 = vmatprep.subr.mxu0 0.0
    %5312 = vmatpush2.msra.mxu0 0.0
    %5313 = vmatprep.subr.mxu0 0.0
    %5314 = vmatpush2.msra.mxu0 0.0
    %5315 = vmatprep.subr.mxu0 0.0
    %5316 = vmatpush2.msra.mxu0 0.0
    %5317 = vmatprep.subr.mxu0 0.0
    %5318 = vmatpush2.msra.mxu0 0.0
    %5319 = vmatprep.subr.mxu0 0.0
    %5320 = vmatpush2.msra.mxu0 0.0
    %5321 = vmatprep.subr.mxu0 0.0
    %5322 = vmatpush2.msra.mxu0 0.0
    %5323 = vmatprep.subr.mxu0 0.0
    %5324 = vmatpush2.msra.mxu0 0.0
    %5325 = vmatprep.subr.mxu0 0.0
    %5326 = vmatpush2.msra.mxu0 0.0
    %5327 = vmatprep.subr.mxu0 0.0
    %5328 = vmatpush2.msra.mxu0 0.0
    %5329 = vmatprep.subr.mxu0 0.0
    %5330 = vmatpush2.msra.mxu0 0.0
    %5331 = vmatprep.subr.mxu0 0.0
    %5332 = vmatpush2.msra.mxu0 0.0
    %5333 = vmatprep.subr.mxu0 0.0
    %5334 = vmatpush2.msra.mxu0 0.0
    %5335 = vmatprep.subr.mxu0 0.0
    %5336 = vmatpush2.msra.mxu0 0.0
    %5337 = vmatprep.subr.mxu0 0.0
    %5338 = vmatpush2.msra.mxu0 0.0
    %5339 = vmatprep.mubr.f32.mxu0 0.0
    %5340 = vmatmul.mubr.f32.gmra.mxu0 %v5270
    %v5341 = vpop.f32.mrf.mxu0
    %v5342 = vadd.f32 %v5268, %v5341
    %v5343 = vpop.f32.mrf.mxu0
    %5344 = vmatprep.mubr.f32.mxu0 0.0
    %5345 = vmatmul.mubr.f32.gmra.mxu0 %v5273
    %v5346 = vpop.f32.mrf.mxu0
    %v5347 = vadd.f32 %v5268, %v5346
    %v5348 = vpop.f32.mrf.mxu0
    %5349 = vdwg.mxu0
    %v5350 = vmul.f32 %v5342, %v5342
    %v5351 = vmul.f32 %v5347, %v5347
    %v5352 = vmul.f32 %v5342, %v5350
    %v5353 = vmul.f32 %v5347, %v5351
    %v5354 = vmul.f32 %v5352, 0.044715
    %v5355 = vmul.f32 %v5353, 0.044715
    %v5356 = vadd.f32 %v5342, %v5354
    %v5357 = vadd.f32 %v5347, %v5355
    %v5358 = vmul.f32 %v5356, 0.7978846
    %v5359 = vmul.f32 %v5357, 0.7978846
    %v5360 = vtanh.pop %v5358
    %v5361 = vtanh.pop %v5359
    %v5362 = vadd.f32 %v5360, 1.0
    %v5363 = vadd.f32 %v5361, 1.0
    %v5364 = vmul.f32 %v5362, 0.5
    %v5365 = vmul.f32 %v5363, 0.5
    %v5366 = vmul.f32 %v5342, %v5364
    %v5367 = vmul.f32 %v5347, %v5365
    %s5368 = scalar_lea.vmem %s7, 64
    %v5369 = vld [vmem:[%s5368] sm:$0xff]
    %v5370 = vld [vmem:[%s5368 + $0x8] sm:$0xff]
    %v5371 = vld [vmem:[%s5368 + $0x10] sm:$0xff]
    %v5372 = vld [vmem:[%s5368 + $0x18] sm:$0xff]
    %v5373 = vld [vmem:[%s5368 + $0x20] sm:$0xff]
    %v5374 = vld [vmem:[%s5368 + $0x28] sm:$0xff]
    %v5375 = vld [vmem:[%s5368 + $0x30] sm:$0xff]
    %v5376 = vld [vmem:[%s5368 + $0x38] sm:$0xff]
    %v5377 = vlaneseq
    %v5378 = vshrl.u32 %v5377, 7
    %v5379 = vsub.s32 5, %v5378
    %v5380 = vrot.slane %v2782, %v5379
    %v5382 = vsel %vm2659, %v5366, 0
    %v5385 = vsel %vm2659, %v5367, 0
    %5387 = vmatprep.subr.mxu0 0.0
    %5388 = vmatpush1.msra.mxu0 0.0
    %5389 = vmatprep.subr.mxu0 0.0
    %5390 = vmatpush1.msra.mxu0 0.0
    %5391 = vmatprep.subr.mxu0 0.0
    %5392 = vmatpush1.msra.mxu0 0.0
    %5393 = vmatprep.subr.mxu0 0.0
    %5394 = vmatpush1.msra.mxu0 0.0
    %5395 = vmatprep.subr.mxu0 0.0
    %5396 = vmatpush1.msra.mxu0 0.0
    %5397 = vmatprep.subr.mxu0 0.0
    %5398 = vmatpush1.msra.mxu0 0.0
    %5399 = vmatprep.subr.mxu0 0.0
    %5400 = vmatpush1.msra.mxu0 0.0
    %5401 = vmatprep.subr.mxu0 0.0
    %5402 = vmatpush1.msra.mxu0 0.0
    %5403 = vmatprep.subr.mxu0 0.0
    %5404 = vmatpush1.msra.mxu0 %v5376
    %5405 = vmatprep.subr.mxu0 0.0
    %5406 = vmatpush1.msra.mxu0 %v5375
    %5407 = vmatprep.subr.mxu0 0.0
    %5408 = vmatpush1.msra.mxu0 %v5374
    %5409 = vmatprep.subr.mxu0 0.0
    %5410 = vmatpush1.msra.mxu0 %v5373
    %5411 = vmatprep.subr.mxu0 0.0
    %5412 = vmatpush1.msra.mxu0 %v5372
    %5413 = vmatprep.subr.mxu0 0.0
    %5414 = vmatpush1.msra.mxu0 %v5371
    %5415 = vmatprep.subr.mxu0 0.0
    %5416 = vmatpush1.msra.mxu0 %v5370
    %5417 = vmatprep.subr.mxu0 0.0
    %5418 = vmatpush1.msra.mxu0 %v5369
    %5419 = vmatprep.subr.mxu0 0.0
    %5420 = vmatpush2.msra.mxu0 0.0
    %5421 = vmatprep.subr.mxu0 0.0
    %5422 = vmatpush2.msra.mxu0 0.0
    %5423 = vmatprep.subr.mxu0 0.0
    %5424 = vmatpush2.msra.mxu0 0.0
    %5425 = vmatprep.subr.mxu0 0.0
    %5426 = vmatpush2.msra.mxu0 0.0
    %5427 = vmatprep.subr.mxu0 0.0
    %5428 = vmatpush2.msra.mxu0 0.0
    %5429 = vmatprep.subr.mxu0 0.0
    %5430 = vmatpush2.msra.mxu0 0.0
    %5431 = vmatprep.subr.mxu0 0.0
    %5432 = vmatpush2.msra.mxu0 0.0
    %5433 = vmatprep.subr.mxu0 0.0
    %5434 = vmatpush2.msra.mxu0 0.0
    %5435 = vmatprep.subr.mxu0 0.0
    %5436 = vmatpush2.msra.mxu0 0.0
    %5437 = vmatprep.subr.mxu0 0.0
    %5438 = vmatpush2.msra.mxu0 0.0
    %5439 = vmatprep.subr.mxu0 0.0
    %5440 = vmatpush2.msra.mxu0 0.0
    %5441 = vmatprep.subr.mxu0 0.0
    %5442 = vmatpush2.msra.mxu0 0.0
    %5443 = vmatprep.subr.mxu0 0.0
    %5444 = vmatpush2.msra.mxu0 0.0
    %5445 = vmatprep.subr.mxu0 0.0
    %5446 = vmatpush2.msra.mxu0 0.0
    %5447 = vmatprep.subr.mxu0 0.0
    %5448 = vmatpush2.msra.mxu0 0.0
    %5449 = vmatprep.subr.mxu0 0.0
    %5450 = vmatpush2.msra.mxu0 0.0
    %5451 = vmatprep.mubr.f32.mxu0 0.0
    %5452 = vmatmul.mubr.f32.gmra.mxu0 %v5382
    %v5453 = vpop.f32.mrf.mxu0
    %v5454 = vadd.f32 %v5380, %v5453
    %v5455 = vpop.f32.mrf.mxu0
    %5456 = vmatprep.mubr.f32.mxu0 0.0
    %5457 = vmatmul.mubr.f32.gmra.mxu0 %v5385
    %v5458 = vpop.f32.mrf.mxu0
    %v5459 = vadd.f32 %v5380, %v5458
    %v5460 = vpop.f32.mrf.mxu0
    %5461 = vdwg.mxu0
    %v5462 = vadd.f32 %v5258, %v5454
    %v5463 = vadd.f32 %v5259, %v5459
    %v5464 = vsel %vm54, %v5462, 0.0
    %5465 = vadd.xlane.f32.xlu0 %v5464
    %v5466 = vpop.xlane.xlu0 %5465
    %v5467 = vsel %vm54, %v5463, 0.0
    %5468 = vadd.xlane.f32.xlu0 %v5467
    %v5469 = vpop.xlane.xlu0 %5468
    %v5470 = vmul.f32 %v5466, %v2507
    %v5471 = vmul.f32 %v5469, %v2507
    %v5472 = vsub.f32 %v5462, %v5470
    %v5473 = vsub.f32 %v5463, %v5471
    %v5474 = vmul.f32 %v5472, %v5472
    %v5475 = vmul.f32 %v5473, %v5473
    %v5476 = vsel %vm54, %v5474, 0.0
    %5477 = vadd.xlane.f32.xlu0 %v5476
    %v5478 = vpop.xlane.xlu0 %5477
    %v5479 = vsel %vm54, %v5475, 0.0
    %5480 = vadd.xlane.f32.xlu0 %v5479
    %v5481 = vpop.xlane.xlu0 %5480
    %v5482 = vmul.f32 %v5478, %v2507
    %v5483 = vmul.f32 %v5481, %v2507
    %v5484 = vadd.f32 %v5482, 1e-12
    %v5485 = vadd.f32 %v5483, 1e-12
    %v5486 = vrsqrt.pop %v5484
    %v5487 = vrsqrt.pop %v5485
    %v5488 = vmul.f32 %v5472, %v5486
    %v5489 = vmul.f32 %v5473, %v5487
    %v5490 = vlaneseq
    %v5491 = vshrl.u32 %v5490, 7
    %v5492 = vsub.s32 6, %v5491
    %v5493 = vrot.slane %v2782, %v5492
    %v5494 = vmul.f32 %v5488, %v5493
    %v5495 = vmul.f32 %v5489, %v5493
    %v5496 = vlaneseq
    %v5497 = vshrl.u32 %v5496, 7
    %v5498 = vsub.s32 7, %v5497
    %v5499 = vrot.slane %v2782, %v5498
    %v5500 = vadd.f32 %v5494, %v5499
    %v5501 = vadd.f32 %v5495, %v5499
    %v5502 = vld [vmem:[%s2] sm:$0xff]
    %v5503 = vld [vmem:[%s2 + $0x8] sm:$0xff]
    %5505 = vset.pattern.permute.xlu0 0
    %5506 = vperm.xlu0 %5505, %v5502
    %v5507 = vpop.permute.xlu0 %5506
    %5510 = vset.pattern.permute.xlu0 0
    %5511 = vperm.xlu0 %5510, %v5503
    %v5512 = vpop.permute.xlu0 %5511
    %v5514 = vmul.f32 %v5500, %v5507
    %v5515 = vmul.f32 %v5501, %v5512
    %5516 = vst.msk [vmem:[#allocation2] sm:$0xff] %vm54, %v5514
    %5517 = vst.msk [vmem:[#allocation2 + $0x8] sm:$0xff] %vm54, %v5515
    // Predicated region
    $region38: #{encoder_xlnet_forward.1} parent=1 // pred_check
      _
    $region39: #{encoder_xlnet_forward.1} parent=1 // pred_check_branch
      %5519 = sbr.rel (0) target = $region41
    $region40: #{encoder_xlnet_forward.1} parent=1 // pred_region
      %s5521 = ssub.s32 256, 256
      %5522 = vsyncadd [#allocation3], %s5521
      %s5523 = sshll.u32 [#allocation2], 4
      %s5524 = int_to_ptr.vmem [resolvable:$true] %s5523
      %5529 = dma.vmem_to_hbm [thread:$0]  %s5524, 256, %s9, [#allocation3], 128, 128, 8
    $region41: #{encoder_xlnet_forward.1} parent=1 // pred_fallthru
      _
    // Predicated region
    $region42: #{encoder_xlnet_forward.1} parent=1 // pred_check
      _
    $region43: #{encoder_xlnet_forward.1} parent=1 // pred_check_branch
      %5531 = sbr.rel (0) target = $region45
    $region44: #{encoder_xlnet_forward.1} parent=1 // pred_region
      %5532 = dma.done [#allocation3], 256
    $region45: #{encoder_xlnet_forward.1} parent=1 // pred_fallthru
      _
    %5533 = vsyncpa [#allocation3], 1

</llo_original>
